<compile_context>
chip_gen: v6e
topology: v6e:2x2x1
jax: 0.10.0
libtpu: 0.0.40
codegen_flags: <defaults>
</compile_context>

<pallas_src>
import functools

import numpy as np
import jax
import jax.numpy as jnp
from jax.experimental import pallas as pl
from jax.experimental.pallas import tpu as pltpu

EPS = 1e-5
_VMEM_LIMIT = 48 * 1024 * 1024  # headroom above defaults, < v7x physical 64 MiB


def _compiler_params():
    return pltpu.CompilerParams(dimension_semantics=("parallel",),
                                vmem_limit_bytes=_VMEM_LIMIT)


# --------------------------- Pallas kernels ---------------------------------

def _phase_conv_stats_kernel(x_ref, w_ref, y_ref, sum_ref, ssq_ref, *, taps):
    """Direct 3x3 stride-2 conv (phase-decomposed, pre-padded bf16 input) for
    one image, plus per-image BN partial statistics.

    x_ref : (1, 4, Hh, Wh, Cin) bf16   w_ref : (9, Cin, Cout) bf16
    y_ref : (1, Ho, Wo, Cout)   f32    sum/ssq: (1, 1, Cout)  f32
    """
    Ho, Wo = y_ref.shape[1], y_ref.shape[2]
    cin = x_ref.shape[-1]
    cout = w_ref.shape[-1]
    acc = jnp.zeros((Ho * Wo, cout), jnp.float32)
    for k, (ph, oy, ox) in enumerate(taps):            # 9 taps, static unroll
        patch = x_ref[0, ph, oy:oy + Ho, ox:ox + Wo, :]            # (Ho, Wo, Cin)
        acc = acc + jnp.dot(patch.reshape(Ho * Wo, cin), w_ref[k],
                            preferred_element_type=jnp.float32)
    y_ref[...] = acc.reshape(1, Ho, Wo, cout)
    sum_ref[...] = jnp.sum(acc, axis=0, keepdims=True).reshape(1, 1, cout)
    ssq_ref[...] = jnp.sum(acc * acc, axis=0, keepdims=True).reshape(1, 1, cout)


def _affine_pad_conv_stats_kernel(x_ref, s_ref, t_ref, w_ref,
                                  y_ref, sum_ref, ssq_ref, pad_ref):
    """Fused: per-channel affine (BN apply or identity) -> zero-padded bf16
    VMEM scratch -> direct 3x3 stride-1 conv (9 MXU taps) -> per-image BN
    partial statistics.  One HBM read of x, one HBM write of y, no padded
    intermediate in HBM.

    x_ref : (1, Ho, Wo, Cin) f32   s_ref/t_ref : (1, 1, Cin) f32
    w_ref : (9, Cin, Cout)   bf16  pad_ref     : (Ho+2, Wo+2, Cin) bf16 scratch
    y_ref : (1, Ho, Wo, Cout) f32  sum/ssq     : (1, 1, Cout) f32
    """
    Ho, Wo = x_ref.shape[1], x_ref.shape[2]
    cin = x_ref.shape[-1]
    cout = w_ref.shape[-1]
    xn = x_ref[0] * s_ref[0] + t_ref[0]                 # f32 elementwise (VPU)
    pad_ref[...] = jnp.zeros(pad_ref.shape, pad_ref.dtype)   # zero border
    pad_ref[1:Ho + 1, 1:Wo + 1, :] = xn.astype(pad_ref.dtype)
    acc = jnp.zeros((Ho * Wo, cout), jnp.float32)
    for k in range(9):                                  # static unroll
        ky, kx = k // 3, k % 3
        patch = pad_ref[ky:ky + Ho, kx:kx + Wo, :]                 # (Ho, Wo, Cin)
        acc = acc + jnp.dot(patch.reshape(Ho * Wo, cin), w_ref[k],
                            preferred_element_type=jnp.float32)
    y_ref[...] = acc.reshape(1, Ho, Wo, cout)
    sum_ref[...] = jnp.sum(acc, axis=0, keepdims=True).reshape(1, 1, cout)
    ssq_ref[...] = jnp.sum(acc * acc, axis=0, keepdims=True).reshape(1, 1, cout)


def _bn_skip_relu_kernel(y_ref, s_ref, t_ref, skip_ref, o_ref):
    """Fused BN2 apply + residual add (in-kernel channel zero-extension of the
    skip for the bottleneck case) + ReLU."""
    z = y_ref[0] * s_ref[0] + t_ref[0]                 # (Ho, Wo, C) f32
    sk = skip_ref[0].astype(jnp.float32)               # (Ho, Wo, Cs)
    c_out = z.shape[-1]
    c_skip = sk.shape[-1]
    if c_skip < c_out:  # static; zero-pad channels here instead of in HBM
        sk = jnp.concatenate(
            [sk, jnp.zeros(sk.shape[:-1] + (c_out - c_skip,), jnp.float32)],
            axis=-1)
    o_ref[0] = jnp.maximum(z + sk, 0.0).astype(o_ref.dtype)


# --------------------------- kernel wrappers ---------------------------------

def _phase_conv_call(xph, w9, taps, Ho, Wo):
    N, P, Hh, Wh, Cin = xph.shape
    Cout = w9.shape[2]
    kernel = functools.partial(_phase_conv_stats_kernel, taps=tuple(taps))
    return pl.pallas_call(
        kernel,
        out_shape=(jax.ShapeDtypeStruct((N, Ho, Wo, Cout), jnp.float32),
                   jax.ShapeDtypeStruct((N, 1, Cout), jnp.float32),
                   jax.ShapeDtypeStruct((N, 1, Cout), jnp.float32)),
        grid=(N,),
        in_specs=[pl.BlockSpec((1, P, Hh, Wh, Cin), lambda n: (n, 0, 0, 0, 0)),
                  pl.BlockSpec((9, Cin, Cout), lambda n: (0, 0, 0))],
        out_specs=(pl.BlockSpec((1, Ho, Wo, Cout), lambda n: (n, 0, 0, 0)),
                   pl.BlockSpec((1, 1, Cout), lambda n: (n, 0, 0)),
                   pl.BlockSpec((1, 1, Cout), lambda n: (n, 0, 0))),
        compiler_params=_compiler_params(),
    )(xph, w9)


def _affine_conv_call(x, scale, shift, w9):
    """Affine (scale, shift per channel) + pad + stride-1 3x3 conv + stats."""
    N, Ho, Wo, Cin = x.shape
    Cout = w9.shape[2]
    return pl.pallas_call(
        _affine_pad_conv_stats_kernel,
        out_shape=(jax.ShapeDtypeStruct((N, Ho, Wo, Cout), jnp.float32),
                   jax.ShapeDtypeStruct((N, 1, Cout), jnp.float32),
                   jax.ShapeDtypeStruct((N, 1, Cout), jnp.float32)),
        grid=(N,),
        in_specs=[pl.BlockSpec((1, Ho, Wo, Cin), lambda n: (n, 0, 0, 0)),
                  pl.BlockSpec((1, 1, Cin), lambda n: (0, 0, 0)),
                  pl.BlockSpec((1, 1, Cin), lambda n: (0, 0, 0)),
                  pl.BlockSpec((9, Cin, Cout), lambda n: (0, 0, 0))],
        out_specs=(pl.BlockSpec((1, Ho, Wo, Cout), lambda n: (n, 0, 0, 0)),
                   pl.BlockSpec((1, 1, Cout), lambda n: (n, 0, 0)),
                   pl.BlockSpec((1, 1, Cout), lambda n: (n, 0, 0))),
        scratch_shapes=[pltpu.VMEM((Ho + 2, Wo + 2, Cin), jnp.bfloat16)],
        compiler_params=_compiler_params(),
    )(x, scale, shift, w9)


def _bn_skip_relu(y, scale, shift, skip):
    N, Ho, Wo, C = y.shape
    Cs = skip.shape[-1]
    return pl.pallas_call(
        _bn_skip_relu_kernel,
        out_shape=jax.ShapeDtypeStruct((N, Ho, Wo, C), jnp.float32),
        grid=(N,),
        in_specs=[pl.BlockSpec((1, Ho, Wo, C), lambda n: (n, 0, 0, 0)),
                  pl.BlockSpec((1, 1, C), lambda n: (0, 0, 0)),
                  pl.BlockSpec((1, 1, C), lambda n: (0, 0, 0)),
                  pl.BlockSpec((1, Ho, Wo, Cs), lambda n: (n, 0, 0, 0))],
        out_specs=pl.BlockSpec((1, Ho, Wo, C), lambda n: (n, 0, 0, 0)),
        compiler_params=_compiler_params(),
    )(y, scale, shift, skip)


# --------------------------- wrapper-side prep --------------------------------

def _prep_conv_input_stride2(x_nhwc):
    """Spatial zero-pad + 2x2 phase decomposition + bf16 cast for stride-2 conv.

    Returns (x_phases (N, 4, Hh, Wh, C) bf16, taps [(phase, oy, ox)]*9, Ho, Wo).
    taps are ky-major to match the (9, Cin, Cout) weight layout.
    """
    N, H, W, C = x_nhwc.shape
    Ho = (H - 1) // 2 + 1
    Wo = (W - 1) // 2 + 1
    Hh, Wh = Ho + 1, Wo + 1
    xp = jnp.pad(x_nhwc,
                 ((0, 0), (1, 2 * Hh - H - 1), (1, 2 * Wh - W - 1), (0, 0)))
    xph = (xp.reshape(N, Hh, 2, Wh, 2, C)
             .transpose(0, 2, 4, 1, 3, 5)
             .reshape(N, 4, Hh, Wh, C))                 # phase = (r%2)*2+(c%2)
    taps = [((ky % 2) * 2 + (kx % 2), ky // 2, kx // 2)
            for ky in range(3) for kx in range(3)]
    return xph.astype(jnp.bfloat16), taps, Ho, Wo


def _prep_weight(w_oihw):
    """PyTorch OIHW -> tap-major (9, Cin, Cout) bf16.  Conv bias is dropped:
    a conv followed by train-mode BatchNorm is invariant to a per-channel bias."""
    Cout, Cin, _, _ = w_oihw.shape
    return jnp.transpose(w_oihw, (2, 3, 1, 0)).reshape(9, Cin, Cout).astype(jnp.bfloat16)


def _bn_scale_shift(sums, ssqs, count, gamma, beta):
    """Per-image partial sums -> train-mode BN affine: y_norm = y*scale + shift."""
    s = jnp.sum(sums, axis=0).reshape(-1)
    q = jnp.sum(ssqs, axis=0).reshape(-1)
    mean = s / count
    var = q / count - mean * mean                       # biased variance
    scale = gamma * jax.lax.rsqrt(var + EPS)
    shift = beta - mean * scale
    C = scale.shape[0]
    return (scale.reshape(1, 1, C).astype(jnp.float32),
            shift.reshape(1, 1, C).astype(jnp.float32))


# --------------------------- Block forward -----------------------------------

@functools.partial(jax.jit, static_argnums=(2, 3))
def block_forward(params, x_nchw, in_channels, out_channels):
    bottleneck = in_channels != out_channels
    x = jnp.transpose(x_nchw, (0, 2, 3, 1)).astype(jnp.float32)   # NCHW -> NHWC
    N = x.shape[0]

    w1 = _prep_weight(params['conv1_w'])
    w2 = _prep_weight(params['conv2_w'])

    # conv1 (stride 2 iff bottleneck, bias dropped) + BN1 partial statistics
    if bottleneck:
        xph, taps1, Ho, Wo = _prep_conv_input_stride2(x)
        y1, s1, q1 = _phase_conv_call(xph, w1, taps1, Ho, Wo)
    else:
        Ho, Wo = x.shape[1], x.shape[2]
        ident_s = jnp.ones((1, 1, in_channels), jnp.float32)
        ident_t = jnp.zeros((1, 1, in_channels), jnp.float32)
        y1, s1, q1 = _affine_conv_call(x, ident_s, ident_t, w1)   # identity affine

    scale1, shift1 = _bn_scale_shift(s1, q1, N * Ho * Wo,
                                     params['bn1_g'], params['bn1_b'])

    # conv2 fused with BN1 apply + zero padding (no padded intermediate in HBM)
    y2, s2, q2 = _affine_conv_call(y1, scale1, shift1, w2)
    scale2, shift2 = _bn_scale_shift(s2, q2, N * Ho * Wo,
                                     params['bn2_g'], params['bn2_b'])

    # skip path: identity, or maxpool(k=1, s=2) == stride-2 spatial subsample;
    # the channel zero-extension happens inside the epilogue kernel.
    skip = x[:, ::2, ::2, :] if bottleneck else x

    # fused BN2 apply + residual add + ReLU
    out = _bn_skip_relu(y2, scale2, shift2, skip)
    return jnp.transpose(out, (0, 3, 1, 2))             # NHWC -> NCHW


# --------------------------- pure-JAX reference -------------------------------

def block_reference(params, x_nchw, in_channels, out_channels):
    bottleneck = in_channels != out_channels
    x = jnp.transpose(x_nchw, (0, 2, 3, 1)).astype(jnp.float32)

    def conv(xx, w, b, stride):
        out = jax.lax.conv_general_dilated(
            xx, jnp.transpose(w, (2, 3, 1, 0)),
            window_strides=(stride, stride), padding=((1, 1), (1, 1)),
            dimension_numbers=('NHWC', 'HWIO', 'NHWC'))
        return out + b

    def bn(yy, g, be):
        mean = yy.mean(axis=(0, 1, 2), keepdims=True)
        var = ((yy - mean) ** 2).mean(axis=(0, 1, 2), keepdims=True)
        return (yy - mean) * jax.lax.rsqrt(var + EPS) * g + be

    stride1 = 2 if bottleneck else 1
    y = conv(x, params['conv1_w'], params['conv1_b'], stride1)
    y = bn(y, params['bn1_g'], params['bn1_b'])
    y = conv(y, params['conv2_w'], params['conv2_b'], 1)
    y = bn(y, params['bn2_g'], params['bn2_b'])
    if bottleneck:
        skip = x[:, ::2, ::2, :]
        skip = jnp.pad(skip, ((0, 0), (0, 0), (0, 0),
                              (0, out_channels - in_channels)))
    else:
        skip = x
    out = jnp.maximum(skip + y, 0.0)
    return jnp.transpose(out, (0, 3, 1, 2))


# --------------------------- params ------------------------------------------

def init_params(key, in_channels, out_channels):
    ks = jax.random.split(key, 4)
    return {
        'conv1_w': 0.1 * jax.random.normal(ks[0], (out_channels, in_channels, 3, 3), jnp.float32),
        'conv1_b': 0.05 * jax.random.normal(ks[1], (out_channels,), jnp.float32),
        'conv2_w': 0.1 * jax.random.normal(ks[2], (out_channels, out_channels, 3, 3), jnp.float32),
        'conv2_b': 0.05 * jax.random.normal(ks[3], (out_channels,), jnp.float32),
        # conv biases are only used by the reference: the Pallas path drops them
        # because train-mode BN cancels any per-channel constant exactly.
        'bn1_g': jnp.ones((out_channels,), jnp.float32),
        'bn1_b': jnp.zeros((out_channels,), jnp.float32),
        'bn2_g': jnp.ones((out_channels,), jnp.float32),
        'bn2_b': jnp.zeros((out_channels,), jnp.float32),
    }


# --------------------------- main ---------------------------------------------

if __name__ == "__main__":
    key = jax.random.PRNGKey(0)
    kx, kp1, kp2 = jax.random.split(key, 3)

    x = jax.random.normal(kx, (2, 4, 16, 16), jnp.float32)   # NCHW

    # Bottleneck case: in != out (stride-2 conv1, zero-padded skip)
    p_b = init_params(kp1, 4, 8)
    out_b = jax.block_until_ready(block_forward(p_b, x, 4, 8))        # (2, 8, 8, 8)
    ref_b = block_reference(p_b, x, 4, 8)
    assert out_b.shape == (2, 8, 8, 8)
    # bf16 MXU operands vs f32 reference -> slightly loose tolerance
    assert np.allclose(np.asarray(out_b), np.asarray(ref_b), atol=4e-2, rtol=4e-2), \
        float(np.max(np.abs(np.asarray(out_b) - np.asarray(ref_b))))

    # Identity case: in == out (stride-1 conv1, identity skip)
    p_i = init_params(kp2, 4, 4)
    out_i = jax.block_until_ready(block_forward(p_i, x, 4, 4))        # (2, 4, 16, 16)
    ref_i = block_reference(p_i, x, 4, 4)
    assert out_i.shape == (2, 4, 16, 16)
    assert np.allclose(np.asarray(out_i), np.asarray(ref_i), atol=4e-2, rtol=4e-2), \
        float(np.max(np.abs(np.asarray(out_i) - np.asarray(ref_i))))

    print("KERNEL_OK")
</pallas_src>

<mosaic_0001>
module attributes {stable_mosaic.version = 11 : i64} {
  func.func @_phase_conv_stats_kernel(%arg0: i32, %arg1: memref<1x4x9x9x4xbf16, #tpu.memory_space<vmem>>, %arg2: memref<9x4x8xbf16, #tpu.memory_space<vmem>>, %arg3: memref<1x8x8x8xf32, #tpu.memory_space<vmem>>, %arg4: memref<1x1x8xf32, #tpu.memory_space<vmem>>, %arg5: memref<1x1x8xf32, #tpu.memory_space<vmem>>) attributes {dimension_semantics = [#tpu.dimension_semantics<parallel>], iteration_bounds = array<i64: 2>, scalar_prefetch = 0 : i64, scratch_operands = 0 : i64, tpu.core_type = #tpu.core_type<tc>, window_params = [{transform_indices = @transform_0, window_bounds = array<i64: 1, 4, 9, 9, 4>}, {pipeline_mode = #tpu.pipeline_mode<synchronous>, transform_indices = @transform_1, window_bounds = array<i64: 9, 4, 8>}, {transform_indices = @transform_2, window_bounds = array<i64: 1, 8, 8, 8>}, {transform_indices = @transform_3, window_bounds = array<i64: 1, 1, 8>}, {transform_indices = @transform_4, window_bounds = array<i64: 1, 1, 8>}]} {
    %cst = arith.constant 0.000000e+00 : f32
    %0 = vector.broadcast %cst : f32 to vector<64x8xf32>
    %c0 = arith.constant 0 : index
    %c0_0 = arith.constant 0 : index
    %c0_1 = arith.constant 0 : index
    %c0_2 = arith.constant 0 : index
    %c0_3 = arith.constant 0 : index
    %1 = vector.load %arg1[%c0, %c0_0, %c0_1, %c0_2, %c0_3] : memref<1x4x9x9x4xbf16, #tpu.memory_space<vmem>>, vector<1x1x8x8x4xbf16>
    %2 = vector.shape_cast %1 : vector<1x1x8x8x4xbf16> to vector<8x8x4xbf16>
    %3 = vector.shape_cast %2 : vector<8x8x4xbf16> to vector<64x4xbf16>
    %c0_4 = arith.constant 0 : index
    %c0_5 = arith.constant 0 : index
    %c0_6 = arith.constant 0 : index
    %4 = vector.load %arg2[%c0_4, %c0_5, %c0_6] : memref<9x4x8xbf16, #tpu.memory_space<vmem>>, vector<1x4x8xbf16>
    %5 = vector.shape_cast %4 : vector<1x4x8xbf16> to vector<4x8xbf16>
    %cst_7 = arith.constant dense<0.000000e+00> : vector<64x8xf32>
    %6 = tpu.matmul %3, %5, %cst_7 {dimension_numbers = #tpu.dot_dimension_numbers<[1], [0], [0], [1], [0, 0, 1, 1], [], []>} : vector<64x4xbf16>, vector<4x8xbf16>, vector<64x8xf32> -> vector<64x8xf32>
    %7 = arith.addf %0, %6 : vector<64x8xf32>
    %c0_8 = arith.constant 0 : index
    %c1 = arith.constant 1 : index
    %c0_9 = arith.constant 0 : index
    %c0_10 = arith.constant 0 : index
    %c0_11 = arith.constant 0 : index
    %8 = vector.load %arg1[%c0_8, %c1, %c0_9, %c0_10, %c0_11] : memref<1x4x9x9x4xbf16, #tpu.memory_space<vmem>>, vector<1x1x8x8x4xbf16>
    %9 = vector.shape_cast %8 : vector<1x1x8x8x4xbf16> to vector<8x8x4xbf16>
    %10 = vector.shape_cast %9 : vector<8x8x4xbf16> to vector<64x4xbf16>
    %c1_12 = arith.constant 1 : index
    %c0_13 = arith.constant 0 : index
    %c0_14 = arith.constant 0 : index
    %11 = vector.load %arg2[%c1_12, %c0_13, %c0_14] : memref<9x4x8xbf16, #tpu.memory_space<vmem>>, vector<1x4x8xbf16>
    %12 = vector.shape_cast %11 : vector<1x4x8xbf16> to vector<4x8xbf16>
    %cst_15 = arith.constant dense<0.000000e+00> : vector<64x8xf32>
    %13 = tpu.matmul %10, %12, %cst_15 {dimension_numbers = #tpu.dot_dimension_numbers<[1], [0], [0], [1], [0, 0, 1, 1], [], []>} : vector<64x4xbf16>, vector<4x8xbf16>, vector<64x8xf32> -> vector<64x8xf32>
    %14 = arith.addf %7, %13 : vector<64x8xf32>
    %c0_16 = arith.constant 0 : index
    %c0_17 = arith.constant 0 : index
    %c0_18 = arith.constant 0 : index
    %c1_19 = arith.constant 1 : index
    %c0_20 = arith.constant 0 : index
    %15 = vector.load %arg1[%c0_16, %c0_17, %c0_18, %c1_19, %c0_20] : memref<1x4x9x9x4xbf16, #tpu.memory_space<vmem>>, vector<1x1x8x8x4xbf16>
    %16 = vector.shape_cast %15 : vector<1x1x8x8x4xbf16> to vector<8x8x4xbf16>
    %17 = vector.shape_cast %16 : vector<8x8x4xbf16> to vector<64x4xbf16>
    %c2 = arith.constant 2 : index
    %c0_21 = arith.constant 0 : index
    %c0_22 = arith.constant 0 : index
    %18 = vector.load %arg2[%c2, %c0_21, %c0_22] : memref<9x4x8xbf16, #tpu.memory_space<vmem>>, vector<1x4x8xbf16>
    %19 = vector.shape_cast %18 : vector<1x4x8xbf16> to vector<4x8xbf16>
    %cst_23 = arith.constant dense<0.000000e+00> : vector<64x8xf32>
    %20 = tpu.matmul %17, %19, %cst_23 {dimension_numbers = #tpu.dot_dimension_numbers<[1], [0], [0], [1], [0, 0, 1, 1], [], []>} : vector<64x4xbf16>, vector<4x8xbf16>, vector<64x8xf32> -> vector<64x8xf32>
    %21 = arith.addf %14, %20 : vector<64x8xf32>
    %c0_24 = arith.constant 0 : index
    %c2_25 = arith.constant 2 : index
    %c0_26 = arith.constant 0 : index
    %c0_27 = arith.constant 0 : index
    %c0_28 = arith.constant 0 : index
    %22 = vector.load %arg1[%c0_24, %c2_25, %c0_26, %c0_27, %c0_28] : memref<1x4x9x9x4xbf16, #tpu.memory_space<vmem>>, vector<1x1x8x8x4xbf16>
    %23 = vector.shape_cast %22 : vector<1x1x8x8x4xbf16> to vector<8x8x4xbf16>
    %24 = vector.shape_cast %23 : vector<8x8x4xbf16> to vector<64x4xbf16>
    %c3 = arith.constant 3 : index
    %c0_29 = arith.constant 0 : index
    %c0_30 = arith.constant 0 : index
    %25 = vector.load %arg2[%c3, %c0_29, %c0_30] : memref<9x4x8xbf16, #tpu.memory_space<vmem>>, vector<1x4x8xbf16>
    %26 = vector.shape_cast %25 : vector<1x4x8xbf16> to vector<4x8xbf16>
    %cst_31 = arith.constant dense<0.000000e+00> : vector<64x8xf32>
    %27 = tpu.matmul %24, %26, %cst_31 {dimension_numbers = #tpu.dot_dimension_numbers<[1], [0], [0], [1], [0, 0, 1, 1], [], []>} : vector<64x4xbf16>, vector<4x8xbf16>, vector<64x8xf32> -> vector<64x8xf32>
    %28 = arith.addf %21, %27 : vector<64x8xf32>
    %c0_32 = arith.constant 0 : index
    %c3_33 = arith.constant 3 : index
    %c0_34 = arith.constant 0 : index
    %c0_35 = arith.constant 0 : index
    %c0_36 = arith.constant 0 : index
    %29 = vector.load %arg1[%c0_32, %c3_33, %c0_34, %c0_35, %c0_36] : memref<1x4x9x9x4xbf16, #tpu.memory_space<vmem>>, vector<1x1x8x8x4xbf16>
    %30 = vector.shape_cast %29 : vector<1x1x8x8x4xbf16> to vector<8x8x4xbf16>
    %31 = vector.shape_cast %30 : vector<8x8x4xbf16> to vector<64x4xbf16>
    %c4 = arith.constant 4 : index
    %c0_37 = arith.constant 0 : index
    %c0_38 = arith.constant 0 : index
    %32 = vector.load %arg2[%c4, %c0_37, %c0_38] : memref<9x4x8xbf16, #tpu.memory_space<vmem>>, vector<1x4x8xbf16>
    %33 = vector.shape_cast %32 : vector<1x4x8xbf16> to vector<4x8xbf16>
    %cst_39 = arith.constant dense<0.000000e+00> : vector<64x8xf32>
    %34 = tpu.matmul %31, %33, %cst_39 {dimension_numbers = #tpu.dot_dimension_numbers<[1], [0], [0], [1], [0, 0, 1, 1], [], []>} : vector<64x4xbf16>, vector<4x8xbf16>, vector<64x8xf32> -> vector<64x8xf32>
    %35 = arith.addf %28, %34 : vector<64x8xf32>
    %c0_40 = arith.constant 0 : index
    %c2_41 = arith.constant 2 : index
    %c0_42 = arith.constant 0 : index
    %c1_43 = arith.constant 1 : index
    %c0_44 = arith.constant 0 : index
    %36 = vector.load %arg1[%c0_40, %c2_41, %c0_42, %c1_43, %c0_44] : memref<1x4x9x9x4xbf16, #tpu.memory_space<vmem>>, vector<1x1x8x8x4xbf16>
    %37 = vector.shape_cast %36 : vector<1x1x8x8x4xbf16> to vector<8x8x4xbf16>
    %38 = vector.shape_cast %37 : vector<8x8x4xbf16> to vector<64x4xbf16>
    %c5 = arith.constant 5 : index
    %c0_45 = arith.constant 0 : index
    %c0_46 = arith.constant 0 : index
    %39 = vector.load %arg2[%c5, %c0_45, %c0_46] : memref<9x4x8xbf16, #tpu.memory_space<vmem>>, vector<1x4x8xbf16>
    %40 = vector.shape_cast %39 : vector<1x4x8xbf16> to vector<4x8xbf16>
    %cst_47 = arith.constant dense<0.000000e+00> : vector<64x8xf32>
    %41 = tpu.matmul %38, %40, %cst_47 {dimension_numbers = #tpu.dot_dimension_numbers<[1], [0], [0], [1], [0, 0, 1, 1], [], []>} : vector<64x4xbf16>, vector<4x8xbf16>, vector<64x8xf32> -> vector<64x8xf32>
    %42 = arith.addf %35, %41 : vector<64x8xf32>
    %c0_48 = arith.constant 0 : index
    %c0_49 = arith.constant 0 : index
    %c1_50 = arith.constant 1 : index
    %c0_51 = arith.constant 0 : index
    %c0_52 = arith.constant 0 : index
    %43 = vector.load %arg1[%c0_48, %c0_49, %c1_50, %c0_51, %c0_52] : memref<1x4x9x9x4xbf16, #tpu.memory_space<vmem>>, vector<1x1x8x8x4xbf16>
    %44 = vector.shape_cast %43 : vector<1x1x8x8x4xbf16> to vector<8x8x4xbf16>
    %45 = vector.shape_cast %44 : vector<8x8x4xbf16> to vector<64x4xbf16>
    %c6 = arith.constant 6 : index
    %c0_53 = arith.constant 0 : index
    %c0_54 = arith.constant 0 : index
    %46 = vector.load %arg2[%c6, %c0_53, %c0_54] : memref<9x4x8xbf16, #tpu.memory_space<vmem>>, vector<1x4x8xbf16>
    %47 = vector.shape_cast %46 : vector<1x4x8xbf16> to vector<4x8xbf16>
    %cst_55 = arith.constant dense<0.000000e+00> : vector<64x8xf32>
    %48 = tpu.matmul %45, %47, %cst_55 {dimension_numbers = #tpu.dot_dimension_numbers<[1], [0], [0], [1], [0, 0, 1, 1], [], []>} : vector<64x4xbf16>, vector<4x8xbf16>, vector<64x8xf32> -> vector<64x8xf32>
    %49 = arith.addf %42, %48 : vector<64x8xf32>
    %c0_56 = arith.constant 0 : index
    %c1_57 = arith.constant 1 : index
    %c1_58 = arith.constant 1 : index
    %c0_59 = arith.constant 0 : index
    %c0_60 = arith.constant 0 : index
    %50 = vector.load %arg1[%c0_56, %c1_57, %c1_58, %c0_59, %c0_60] : memref<1x4x9x9x4xbf16, #tpu.memory_space<vmem>>, vector<1x1x8x8x4xbf16>
    %51 = vector.shape_cast %50 : vector<1x1x8x8x4xbf16> to vector<8x8x4xbf16>
    %52 = vector.shape_cast %51 : vector<8x8x4xbf16> to vector<64x4xbf16>
    %c7 = arith.constant 7 : index
    %c0_61 = arith.constant 0 : index
    %c0_62 = arith.constant 0 : index
    %53 = vector.load %arg2[%c7, %c0_61, %c0_62] : memref<9x4x8xbf16, #tpu.memory_space<vmem>>, vector<1x4x8xbf16>
    %54 = vector.shape_cast %53 : vector<1x4x8xbf16> to vector<4x8xbf16>
    %cst_63 = arith.constant dense<0.000000e+00> : vector<64x8xf32>
    %55 = tpu.matmul %52, %54, %cst_63 {dimension_numbers = #tpu.dot_dimension_numbers<[1], [0], [0], [1], [0, 0, 1, 1], [], []>} : vector<64x4xbf16>, vector<4x8xbf16>, vector<64x8xf32> -> vector<64x8xf32>
    %56 = arith.addf %49, %55 : vector<64x8xf32>
    %c0_64 = arith.constant 0 : index
    %c0_65 = arith.constant 0 : index
    %c1_66 = arith.constant 1 : index
    %c1_67 = arith.constant 1 : index
    %c0_68 = arith.constant 0 : index
    %57 = vector.load %arg1[%c0_64, %c0_65, %c1_66, %c1_67, %c0_68] : memref<1x4x9x9x4xbf16, #tpu.memory_space<vmem>>, vector<1x1x8x8x4xbf16>
    %58 = vector.shape_cast %57 : vector<1x1x8x8x4xbf16> to vector<8x8x4xbf16>
    %59 = vector.shape_cast %58 : vector<8x8x4xbf16> to vector<64x4xbf16>
    %c8 = arith.constant 8 : index
    %c0_69 = arith.constant 0 : index
    %c0_70 = arith.constant 0 : index
    %60 = vector.load %arg2[%c8, %c0_69, %c0_70] : memref<9x4x8xbf16, #tpu.memory_space<vmem>>, vector<1x4x8xbf16>
    %61 = vector.shape_cast %60 : vector<1x4x8xbf16> to vector<4x8xbf16>
    %cst_71 = arith.constant dense<0.000000e+00> : vector<64x8xf32>
    %62 = tpu.matmul %59, %61, %cst_71 {dimension_numbers = #tpu.dot_dimension_numbers<[1], [0], [0], [1], [0, 0, 1, 1], [], []>} : vector<64x4xbf16>, vector<4x8xbf16>, vector<64x8xf32> -> vector<64x8xf32>
    %63 = arith.addf %56, %62 : vector<64x8xf32>
    %64 = vector.shape_cast %63 : vector<64x8xf32> to vector<1x8x8x8xf32>
    %c0_72 = arith.constant 0 : index
    %c0_73 = arith.constant 0 : index
    %c0_74 = arith.constant 0 : index
    %c0_75 = arith.constant 0 : index
    %65 = vector.load %arg3[%c0_72, %c0_73, %c0_74, %c0_75] : memref<1x8x8x8xf32, #tpu.memory_space<vmem>>, vector<1x8x8x8xf32>
    tpu.vector_store %arg3[%c0_72, %c0_73, %c0_74, %c0_75], %64 {strides = array<i32>} : memref<1x8x8x8xf32, #tpu.memory_space<vmem>>, vector<1x8x8x8xf32>,
    %cst_76 = arith.constant dense<0.000000e+00> : vector<8xf32>
    %66 = vector.multi_reduction <add>, %63, %cst_76 [0] : vector<64x8xf32> to vector<8xf32>
    %67 = vector.shape_cast %66 : vector<8xf32> to vector<1x8xf32>
    %68 = vector.shape_cast %67 : vector<1x8xf32> to vector<1x1x8xf32>
    %c0_77 = arith.constant 0 : index
    %c0_78 = arith.constant 0 : index
    %c0_79 = arith.constant 0 : index
    %69 = vector.load %arg4[%c0_77, %c0_78, %c0_79] : memref<1x1x8xf32, #tpu.memory_space<vmem>>, vector<1x1x8xf32>
    tpu.vector_store %arg4[%c0_77, %c0_78, %c0_79], %68 {strides = array<i32>} : memref<1x1x8xf32, #tpu.memory_space<vmem>>, vector<1x1x8xf32>,
    %70 = arith.mulf %63, %63 : vector<64x8xf32>
    %cst_80 = arith.constant dense<0.000000e+00> : vector<8xf32>
    %71 = vector.multi_reduction <add>, %70, %cst_80 [0] : vector<64x8xf32> to vector<8xf32>
    %72 = vector.shape_cast %71 : vector<8xf32> to vector<1x8xf32>
    %73 = vector.shape_cast %72 : vector<1x8xf32> to vector<1x1x8xf32>
    %c0_81 = arith.constant 0 : index
    %c0_82 = arith.constant 0 : index
    %c0_83 = arith.constant 0 : index
    %74 = vector.load %arg5[%c0_81, %c0_82, %c0_83] : memref<1x1x8xf32, #tpu.memory_space<vmem>>, vector<1x1x8xf32>
    tpu.vector_store %arg5[%c0_81, %c0_82, %c0_83], %73 {strides = array<i32>} : memref<1x1x8xf32, #tpu.memory_space<vmem>>, vector<1x1x8xf32>,
    return
  }
  func.func @transform_0(%arg0: i32) -> (i32, i32, i32, i32, i32) {
    %c0_i32 = arith.constant 0 : i32
    %c0_i32_0 = arith.constant 0 : i32
    %c0_i32_1 = arith.constant 0 : i32
    %c0_i32_2 = arith.constant 0 : i32
    %c0_i32_3 = arith.constant 0 : i32
    return %arg0, %c0_i32, %c0_i32_0, %c0_i32_1, %c0_i32_2 : i32, i32, i32, i32, i32
  }
  func.func @transform_1(%arg0: i32) -> (i32, i32, i32) {
    %c0_i32 = arith.constant 0 : i32
    %c0_i32_0 = arith.constant 0 : i32
    %c0_i32_1 = arith.constant 0 : i32
    %c0_i32_2 = arith.constant 0 : i32
    return %c0_i32, %c0_i32_0, %c0_i32_1 : i32, i32, i32
  }
  func.func @transform_2(%arg0: i32) -> (i32, i32, i32, i32) {
    %c0_i32 = arith.constant 0 : i32
    %c0_i32_0 = arith.constant 0 : i32
    %c0_i32_1 = arith.constant 0 : i32
    %c0_i32_2 = arith.constant 0 : i32
    return %arg0, %c0_i32, %c0_i32_0, %c0_i32_1 : i32, i32, i32, i32
  }
  func.func @transform_3(%arg0: i32) -> (i32, i32, i32) {
    %c0_i32 = arith.constant 0 : i32
    %c0_i32_0 = arith.constant 0 : i32
    %c0_i32_1 = arith.constant 0 : i32
    return %arg0, %c0_i32, %c0_i32_0 : i32, i32, i32
  }
  func.func @transform_4(%arg0: i32) -> (i32, i32, i32) {
    %c0_i32 = arith.constant 0 : i32
    %c0_i32_0 = arith.constant 0 : i32
    %c0_i32_1 = arith.constant 0 : i32
    return %arg0, %c0_i32, %c0_i32_0 : i32, i32, i32
  }
}

module attributes {stable_mosaic.version = 11 : i64} {
  func.func @_bn_skip_relu_kernel(%arg0: i32, %arg1: memref<1x8x8x8xf32, #tpu.memory_space<vmem>>, %arg2: memref<1x1x8xf32, #tpu.memory_space<vmem>>, %arg3: memref<1x1x8xf32, #tpu.memory_space<vmem>>, %arg4: memref<1x8x8x4xf32, #tpu.memory_space<vmem>>, %arg5: memref<1x8x8x8xf32, #tpu.memory_space<vmem>>) attributes {dimension_semantics = [#tpu.dimension_semantics<parallel>], iteration_bounds = array<i64: 2>, scalar_prefetch = 0 : i64, scratch_operands = 0 : i64, tpu.core_type = #tpu.core_type<tc>, window_params = [{transform_indices = @transform_0, window_bounds = array<i64: 1, 8, 8, 8>}, {pipeline_mode = #tpu.pipeline_mode<synchronous>, transform_indices = @transform_1, window_bounds = array<i64: 1, 1, 8>}, {pipeline_mode = #tpu.pipeline_mode<synchronous>, transform_indices = @transform_2, window_bounds = array<i64: 1, 1, 8>}, {transform_indices = @transform_3, window_bounds = array<i64: 1, 8, 8, 4>}, {transform_indices = @transform_4, window_bounds = array<i64: 1, 8, 8, 8>}]} {
    %c0 = arith.constant 0 : index
    %c0_0 = arith.constant 0 : index
    %c0_1 = arith.constant 0 : index
    %c0_2 = arith.constant 0 : index
    %0 = vector.load %arg1[%c0, %c0_0, %c0_1, %c0_2] : memref<1x8x8x8xf32, #tpu.memory_space<vmem>>, vector<1x8x8x8xf32>
    %1 = vector.shape_cast %0 : vector<1x8x8x8xf32> to vector<8x8x8xf32>
    %c0_3 = arith.constant 0 : index
    %c0_4 = arith.constant 0 : index
    %c0_5 = arith.constant 0 : index
    %2 = vector.load %arg2[%c0_3, %c0_4, %c0_5] : memref<1x1x8xf32, #tpu.memory_space<vmem>>, vector<1x1x8xf32>
    %3 = vector.shape_cast %2 : vector<1x1x8xf32> to vector<1x8xf32>
    %4 = vector.shape_cast %3 : vector<1x8xf32> to vector<1x1x8xf32>
    %5 = vector.broadcast %4 : vector<1x1x8xf32> to vector<8x8x8xf32>
    %6 = arith.mulf %1, %5 : vector<8x8x8xf32>
    %c0_6 = arith.constant 0 : index
    %c0_7 = arith.constant 0 : index
    %c0_8 = arith.constant 0 : index
    %7 = vector.load %arg3[%c0_6, %c0_7, %c0_8] : memref<1x1x8xf32, #tpu.memory_space<vmem>>, vector<1x1x8xf32>
    %8 = vector.shape_cast %7 : vector<1x1x8xf32> to vector<1x8xf32>
    %9 = vector.shape_cast %8 : vector<1x8xf32> to vector<1x1x8xf32>
    %10 = vector.broadcast %9 : vector<1x1x8xf32> to vector<8x8x8xf32>
    %11 = arith.addf %6, %10 : vector<8x8x8xf32>
    %c0_9 = arith.constant 0 : index
    %c0_10 = arith.constant 0 : index
    %c0_11 = arith.constant 0 : index
    %c0_12 = arith.constant 0 : index
    %12 = vector.load %arg4[%c0_9, %c0_10, %c0_11, %c0_12] : memref<1x8x8x4xf32, #tpu.memory_space<vmem>>, vector<1x8x8x4xf32>
    %13 = vector.shape_cast %12 : vector<1x8x8x4xf32> to vector<8x8x4xf32>
    %cst = arith.constant 0.000000e+00 : f32
    %14 = vector.broadcast %cst : f32 to vector<8x8x4xf32>
    %15 = tpu.concatenate %13, %14 in 2 : vector<8x8x4xf32>, vector<8x8x4xf32> -> vector<8x8x8xf32>
    %16 = arith.addf %11, %15 : vector<8x8x8xf32>
    %cst_13 = arith.constant 0.000000e+00 : f32
    %17 = vector.broadcast %cst_13 : f32 to vector<8x8x8xf32>
    %18 = arith.maximumf %16, %17 : vector<8x8x8xf32>
    %c0_14 = arith.constant 0 : index
    %c0_15 = arith.constant 0 : index
    %c0_16 = arith.constant 0 : index
    %c0_17 = arith.constant 0 : index
    %19 = vector.load %arg5[%c0_14, %c0_15, %c0_16, %c0_17] : memref<1x8x8x8xf32, #tpu.memory_space<vmem>>, vector<1x8x8x8xf32>
    %20 = vector.shape_cast %19 : vector<1x8x8x8xf32> to vector<8x8x8xf32>
    %21 = vector.shape_cast %18 : vector<8x8x8xf32> to vector<1x8x8x8xf32>
    tpu.vector_store %arg5[%c0_14, %c0_15, %c0_16, %c0_17], %21 {strides = array<i32>} : memref<1x8x8x8xf32, #tpu.memory_space<vmem>>, vector<1x8x8x8xf32>,
    return
  }
  func.func @transform_0(%arg0: i32) -> (i32, i32, i32, i32) {
    %c0_i32 = arith.constant 0 : i32
    %c0_i32_0 = arith.constant 0 : i32
    %c0_i32_1 = arith.constant 0 : i32
    %c0_i32_2 = arith.constant 0 : i32
    return %arg0, %c0_i32, %c0_i32_0, %c0_i32_1 : i32, i32, i32, i32
  }
  func.func @transform_1(%arg0: i32) -> (i32, i32, i32) {
    %c0_i32 = arith.constant 0 : i32
    %c0_i32_0 = arith.constant 0 : i32
    %c0_i32_1 = arith.constant 0 : i32
    %c0_i32_2 = arith.constant 0 : i32
    return %c0_i32, %c0_i32_0, %c0_i32_1 : i32, i32, i32
  }
  func.func @transform_2(%arg0: i32) -> (i32, i32, i32) {
    %c0_i32 = arith.constant 0 : i32
    %c0_i32_0 = arith.constant 0 : i32
    %c0_i32_1 = arith.constant 0 : i32
    %c0_i32_2 = arith.constant 0 : i32
    return %c0_i32, %c0_i32_0, %c0_i32_1 : i32, i32, i32
  }
  func.func @transform_3(%arg0: i32) -> (i32, i32, i32, i32) {
    %c0_i32 = arith.constant 0 : i32
    %c0_i32_0 = arith.constant 0 : i32
    %c0_i32_1 = arith.constant 0 : i32
    %c0_i32_2 = arith.constant 0 : i32
    return %arg0, %c0_i32, %c0_i32_0, %c0_i32_1 : i32, i32, i32, i32
  }
  func.func @transform_4(%arg0: i32) -> (i32, i32, i32, i32) {
    %c0_i32 = arith.constant 0 : i32
    %c0_i32_0 = arith.constant 0 : i32
    %c0_i32_1 = arith.constant 0 : i32
    %c0_i32_2 = arith.constant 0 : i32
    return %arg0, %c0_i32, %c0_i32_0, %c0_i32_1 : i32, i32, i32, i32
  }
}

module attributes {stable_mosaic.version = 11 : i64} {
  func.func @_affine_pad_conv_stats_kernel(%arg0: i32, %arg1: memref<1x8x8x8xf32, #tpu.memory_space<vmem>>, %arg2: memref<1x1x8xf32, #tpu.memory_space<vmem>>, %arg3: memref<1x1x8xf32, #tpu.memory_space<vmem>>, %arg4: memref<9x8x8xbf16, #tpu.memory_space<vmem>>, %arg5: memref<1x8x8x8xf32, #tpu.memory_space<vmem>>, %arg6: memref<1x1x8xf32, #tpu.memory_space<vmem>>, %arg7: memref<1x1x8xf32, #tpu.memory_space<vmem>>, %arg8: memref<10x10x8xbf16, #tpu.memory_space<vmem>>) attributes {dimension_semantics = [#tpu.dimension_semantics<parallel>], iteration_bounds = array<i64: 2>, scalar_prefetch = 0 : i64, scratch_operands = 1 : i64, tpu.core_type = #tpu.core_type<tc>, window_params = [{transform_indices = @transform_0, window_bounds = array<i64: 1, 8, 8, 8>}, {pipeline_mode = #tpu.pipeline_mode<synchronous>, transform_indices = @transform_1, window_bounds = array<i64: 1, 1, 8>}, {pipeline_mode = #tpu.pipeline_mode<synchronous>, transform_indices = @transform_2, window_bounds = array<i64: 1, 1, 8>}, {pipeline_mode = #tpu.pipeline_mode<synchronous>, transform_indices = @transform_3, window_bounds = array<i64: 9, 8, 8>}, {transform_indices = @transform_4, window_bounds = array<i64: 1, 8, 8, 8>}, {transform_indices = @transform_5, window_bounds = array<i64: 1, 1, 8>}, {transform_indices = @transform_6, window_bounds = array<i64: 1, 1, 8>}]} {
    %c0 = arith.constant 0 : index
    %c0_0 = arith.constant 0 : index
    %c0_1 = arith.constant 0 : index
    %c0_2 = arith.constant 0 : index
    %0 = vector.load %arg1[%c0, %c0_0, %c0_1, %c0_2] : memref<1x8x8x8xf32, #tpu.memory_space<vmem>>, vector<1x8x8x8xf32>
    %1 = vector.shape_cast %0 : vector<1x8x8x8xf32> to vector<8x8x8xf32>
    %c0_3 = arith.constant 0 : index
    %c0_4 = arith.constant 0 : index
    %c0_5 = arith.constant 0 : index
    %2 = vector.load %arg2[%c0_3, %c0_4, %c0_5] : memref<1x1x8xf32, #tpu.memory_space<vmem>>, vector<1x1x8xf32>
    %3 = vector.shape_cast %2 : vector<1x1x8xf32> to vector<1x8xf32>
    %4 = vector.shape_cast %3 : vector<1x8xf32> to vector<1x1x8xf32>
    %5 = vector.broadcast %4 : vector<1x1x8xf32> to vector<8x8x8xf32>
    %6 = arith.mulf %1, %5 : vector<8x8x8xf32>
    %c0_6 = arith.constant 0 : index
    %c0_7 = arith.constant 0 : index
    %c0_8 = arith.constant 0 : index
    %7 = vector.load %arg3[%c0_6, %c0_7, %c0_8] : memref<1x1x8xf32, #tpu.memory_space<vmem>>, vector<1x1x8xf32>
    %8 = vector.shape_cast %7 : vector<1x1x8xf32> to vector<1x8xf32>
    %9 = vector.shape_cast %8 : vector<1x8xf32> to vector<1x1x8xf32>
    %10 = vector.broadcast %9 : vector<1x1x8xf32> to vector<8x8x8xf32>
    %11 = arith.addf %6, %10 : vector<8x8x8xf32>
    %cst = arith.constant 0.000000e+00 : bf16
    %12 = vector.broadcast %cst : bf16 to vector<10x10x8xbf16>
    %c0_9 = arith.constant 0 : index
    %c0_10 = arith.constant 0 : index
    %c0_11 = arith.constant 0 : index
    %13 = vector.load %arg8[%c0_9, %c0_10, %c0_11] : memref<10x10x8xbf16, #tpu.memory_space<vmem>>, vector<10x10x8xbf16>
    tpu.vector_store %arg8[%c0_9, %c0_10, %c0_11], %12 {strides = array<i32>} : memref<10x10x8xbf16, #tpu.memory_space<vmem>>, vector<10x10x8xbf16>,
    %14 = arith.truncf %11 : vector<8x8x8xf32> to vector<8x8x8xbf16>
    %c1 = arith.constant 1 : index
    %c1_12 = arith.constant 1 : index
    %c0_13 = arith.constant 0 : index
    %15 = vector.load %arg8[%c1, %c1_12, %c0_13] : memref<10x10x8xbf16, #tpu.memory_space<vmem>>, vector<8x8x8xbf16>
    tpu.vector_store %arg8[%c1, %c1_12, %c0_13], %14 {strides = array<i32>} : memref<10x10x8xbf16, #tpu.memory_space<vmem>>, vector<8x8x8xbf16>,
    %cst_14 = arith.constant 0.000000e+00 : f32
    %16 = vector.broadcast %cst_14 : f32 to vector<64x8xf32>
    %c0_15 = arith.constant 0 : index
    %c0_16 = arith.constant 0 : index
    %c0_17 = arith.constant 0 : index
    %17 = vector.load %arg8[%c0_15, %c0_16, %c0_17] : memref<10x10x8xbf16, #tpu.memory_space<vmem>>, vector<8x8x8xbf16>
    %18 = vector.shape_cast %17 : vector<8x8x8xbf16> to vector<64x8xbf16>
    %c0_18 = arith.constant 0 : index
    %c0_19 = arith.constant 0 : index
    %c0_20 = arith.constant 0 : index
    %19 = vector.load %arg4[%c0_18, %c0_19, %c0_20] : memref<9x8x8xbf16, #tpu.memory_space<vmem>>, vector<1x8x8xbf16>
    %20 = vector.shape_cast %19 : vector<1x8x8xbf16> to vector<8x8xbf16>
    %cst_21 = arith.constant dense<0.000000e+00> : vector<64x8xf32>
    %21 = tpu.matmul %18, %20, %cst_21 {dimension_numbers = #tpu.dot_dimension_numbers<[1], [0], [0], [1], [0, 0, 1, 1], [], []>} : vector<64x8xbf16>, vector<8x8xbf16>, vector<64x8xf32> -> vector<64x8xf32>
    %22 = arith.addf %16, %21 : vector<64x8xf32>
    %c0_22 = arith.constant 0 : index
    %c1_23 = arith.constant 1 : index
    %c0_24 = arith.constant 0 : index
    %23 = vector.load %arg8[%c0_22, %c1_23, %c0_24] : memref<10x10x8xbf16, #tpu.memory_space<vmem>>, vector<8x8x8xbf16>
    %24 = vector.shape_cast %23 : vector<8x8x8xbf16> to vector<64x8xbf16>
    %c1_25 = arith.constant 1 : index
    %c0_26 = arith.constant 0 : index
    %c0_27 = arith.constant 0 : index
    %25 = vector.load %arg4[%c1_25, %c0_26, %c0_27] : memref<9x8x8xbf16, #tpu.memory_space<vmem>>, vector<1x8x8xbf16>
    %26 = vector.shape_cast %25 : vector<1x8x8xbf16> to vector<8x8xbf16>
    %cst_28 = arith.constant dense<0.000000e+00> : vector<64x8xf32>
    %27 = tpu.matmul %24, %26, %cst_28 {dimension_numbers = #tpu.dot_dimension_numbers<[1], [0], [0], [1], [0, 0, 1, 1], [], []>} : vector<64x8xbf16>, vector<8x8xbf16>, vector<64x8xf32> -> vector<64x8xf32>
    %28 = arith.addf %22, %27 : vector<64x8xf32>
    %c0_29 = arith.constant 0 : index
    %c2 = arith.constant 2 : index
    %c0_30 = arith.constant 0 : index
    %29 = vector.load %arg8[%c0_29, %c2, %c0_30] : memref<10x10x8xbf16, #tpu.memory_space<vmem>>, vector<8x8x8xbf16>
    %30 = vector.shape_cast %29 : vector<8x8x8xbf16> to vector<64x8xbf16>
    %c2_31 = arith.constant 2 : index
    %c0_32 = arith.constant 0 : index
    %c0_33 = arith.constant 0 : index
    %31 = vector.load %arg4[%c2_31, %c0_32, %c0_33] : memref<9x8x8xbf16, #tpu.memory_space<vmem>>, vector<1x8x8xbf16>
    %32 = vector.shape_cast %31 : vector<1x8x8xbf16> to vector<8x8xbf16>
    %cst_34 = arith.constant dense<0.000000e+00> : vector<64x8xf32>
    %33 = tpu.matmul %30, %32, %cst_34 {dimension_numbers = #tpu.dot_dimension_numbers<[1], [0], [0], [1], [0, 0, 1, 1], [], []>} : vector<64x8xbf16>, vector<8x8xbf16>, vector<64x8xf32> -> vector<64x8xf32>
    %34 = arith.addf %28, %33 : vector<64x8xf32>
    %c1_35 = arith.constant 1 : index
    %c0_36 = arith.constant 0 : index
    %c0_37 = arith.constant 0 : index
    %35 = vector.load %arg8[%c1_35, %c0_36, %c0_37] : memref<10x10x8xbf16, #tpu.memory_space<vmem>>, vector<8x8x8xbf16>
    %36 = vector.shape_cast %35 : vector<8x8x8xbf16> to vector<64x8xbf16>
    %c3 = arith.constant 3 : index
    %c0_38 = arith.constant 0 : index
    %c0_39 = arith.constant 0 : index
    %37 = vector.load %arg4[%c3, %c0_38, %c0_39] : memref<9x8x8xbf16, #tpu.memory_space<vmem>>, vector<1x8x8xbf16>
    %38 = vector.shape_cast %37 : vector<1x8x8xbf16> to vector<8x8xbf16>
    %cst_40 = arith.constant dense<0.000000e+00> : vector<64x8xf32>
    %39 = tpu.matmul %36, %38, %cst_40 {dimension_numbers = #tpu.dot_dimension_numbers<[1], [0], [0], [1], [0, 0, 1, 1], [], []>} : vector<64x8xbf16>, vector<8x8xbf16>, vector<64x8xf32> -> vector<64x8xf32>
    %40 = arith.addf %34, %39 : vector<64x8xf32>
    %c1_41 = arith.constant 1 : index
    %c1_42 = arith.constant 1 : index
    %c0_43 = arith.constant 0 : index
    %41 = vector.load %arg8[%c1_41, %c1_42, %c0_43] : memref<10x10x8xbf16, #tpu.memory_space<vmem>>, vector<8x8x8xbf16>
    %42 = vector.shape_cast %41 : vector<8x8x8xbf16> to vector<64x8xbf16>
    %c4 = arith.constant 4 : index
    %c0_44 = arith.constant 0 : index
    %c0_45 = arith.constant 0 : index
    %43 = vector.load %arg4[%c4, %c0_44, %c0_45] : memref<9x8x8xbf16, #tpu.memory_space<vmem>>, vector<1x8x8xbf16>
    %44 = vector.shape_cast %43 : vector<1x8x8xbf16> to vector<8x8xbf16>
    %cst_46 = arith.constant dense<0.000000e+00> : vector<64x8xf32>
    %45 = tpu.matmul %42, %44, %cst_46 {dimension_numbers = #tpu.dot_dimension_numbers<[1], [0], [0], [1], [0, 0, 1, 1], [], []>} : vector<64x8xbf16>, vector<8x8xbf16>, vector<64x8xf32> -> vector<64x8xf32>
    %46 = arith.addf %40, %45 : vector<64x8xf32>
    %c1_47 = arith.constant 1 : index
    %c2_48 = arith.constant 2 : index
    %c0_49 = arith.constant 0 : index
    %47 = vector.load %arg8[%c1_47, %c2_48, %c0_49] : memref<10x10x8xbf16, #tpu.memory_space<vmem>>, vector<8x8x8xbf16>
    %48 = vector.shape_cast %47 : vector<8x8x8xbf16> to vector<64x8xbf16>
    %c5 = arith.constant 5 : index
    %c0_50 = arith.constant 0 : index
    %c0_51 = arith.constant 0 : index
    %49 = vector.load %arg4[%c5, %c0_50, %c0_51] : memref<9x8x8xbf16, #tpu.memory_space<vmem>>, vector<1x8x8xbf16>
    %50 = vector.shape_cast %49 : vector<1x8x8xbf16> to vector<8x8xbf16>
    %cst_52 = arith.constant dense<0.000000e+00> : vector<64x8xf32>
    %51 = tpu.matmul %48, %50, %cst_52 {dimension_numbers = #tpu.dot_dimension_numbers<[1], [0], [0], [1], [0, 0, 1, 1], [], []>} : vector<64x8xbf16>, vector<8x8xbf16>, vector<64x8xf32> -> vector<64x8xf32>
    %52 = arith.addf %46, %51 : vector<64x8xf32>
    %c2_53 = arith.constant 2 : index
    %c0_54 = arith.constant 0 : index
    %c0_55 = arith.constant 0 : index
    %53 = vector.load %arg8[%c2_53, %c0_54, %c0_55] : memref<10x10x8xbf16, #tpu.memory_space<vmem>>, vector<8x8x8xbf16>
    %54 = vector.shape_cast %53 : vector<8x8x8xbf16> to vector<64x8xbf16>
    %c6 = arith.constant 6 : index
    %c0_56 = arith.constant 0 : index
    %c0_57 = arith.constant 0 : index
    %55 = vector.load %arg4[%c6, %c0_56, %c0_57] : memref<9x8x8xbf16, #tpu.memory_space<vmem>>, vector<1x8x8xbf16>
    %56 = vector.shape_cast %55 : vector<1x8x8xbf16> to vector<8x8xbf16>
    %cst_58 = arith.constant dense<0.000000e+00> : vector<64x8xf32>
    %57 = tpu.matmul %54, %56, %cst_58 {dimension_numbers = #tpu.dot_dimension_numbers<[1], [0], [0], [1], [0, 0, 1, 1], [], []>} : vector<64x8xbf16>, vector<8x8xbf16>, vector<64x8xf32> -> vector<64x8xf32>
    %58 = arith.addf %52, %57 : vector<64x8xf32>
    %c2_59 = arith.constant 2 : index
    %c1_60 = arith.constant 1 : index
    %c0_61 = arith.constant 0 : index
    %59 = vector.load %arg8[%c2_59, %c1_60, %c0_61] : memref<10x10x8xbf16, #tpu.memory_space<vmem>>, vector<8x8x8xbf16>
    %60 = vector.shape_cast %59 : vector<8x8x8xbf16> to vector<64x8xbf16>
    %c7 = arith.constant 7 : index
    %c0_62 = arith.constant 0 : index
    %c0_63 = arith.constant 0 : index
    %61 = vector.load %arg4[%c7, %c0_62, %c0_63] : memref<9x8x8xbf16, #tpu.memory_space<vmem>>, vector<1x8x8xbf16>
    %62 = vector.shape_cast %61 : vector<1x8x8xbf16> to vector<8x8xbf16>
    %cst_64 = arith.constant dense<0.000000e+00> : vector<64x8xf32>
    %63 = tpu.matmul %60, %62, %cst_64 {dimension_numbers = #tpu.dot_dimension_numbers<[1], [0], [0], [1], [0, 0, 1, 1], [], []>} : vector<64x8xbf16>, vector<8x8xbf16>, vector<64x8xf32> -> vector<64x8xf32>
    %64 = arith.addf %58, %63 : vector<64x8xf32>
    %c2_65 = arith.constant 2 : index
    %c2_66 = arith.constant 2 : index
    %c0_67 = arith.constant 0 : index
    %65 = vector.load %arg8[%c2_65, %c2_66, %c0_67] : memref<10x10x8xbf16, #tpu.memory_space<vmem>>, vector<8x8x8xbf16>
    %66 = vector.shape_cast %65 : vector<8x8x8xbf16> to vector<64x8xbf16>
    %c8 = arith.constant 8 : index
    %c0_68 = arith.constant 0 : index
    %c0_69 = arith.constant 0 : index
    %67 = vector.load %arg4[%c8, %c0_68, %c0_69] : memref<9x8x8xbf16, #tpu.memory_space<vmem>>, vector<1x8x8xbf16>
    %68 = vector.shape_cast %67 : vector<1x8x8xbf16> to vector<8x8xbf16>
    %cst_70 = arith.constant dense<0.000000e+00> : vector<64x8xf32>
    %69 = tpu.matmul %66, %68, %cst_70 {dimension_numbers = #tpu.dot_dimension_numbers<[1], [0], [0], [1], [0, 0, 1, 1], [], []>} : vector<64x8xbf16>, vector<8x8xbf16>, vector<64x8xf32> -> vector<64x8xf32>
    %70 = arith.addf %64, %69 : vector<64x8xf32>
    %71 = vector.shape_cast %70 : vector<64x8xf32> to vector<1x8x8x8xf32>
    %c0_71 = arith.constant 0 : index
    %c0_72 = arith.constant 0 : index
    %c0_73 = arith.constant 0 : index
    %c0_74 = arith.constant 0 : index
    %72 = vector.load %arg5[%c0_71, %c0_72, %c0_73, %c0_74] : memref<1x8x8x8xf32, #tpu.memory_space<vmem>>, vector<1x8x8x8xf32>
    tpu.vector_store %arg5[%c0_71, %c0_72, %c0_73, %c0_74], %71 {strides = array<i32>} : memref<1x8x8x8xf32, #tpu.memory_space<vmem>>, vector<1x8x8x8xf32>,
    %cst_75 = arith.constant dense<0.000000e+00> : vector<8xf32>
    %73 = vector.multi_reduction <add>, %70, %cst_75 [0] : vector<64x8xf32> to vector<8xf32>
    %74 = vector.shape_cast %73 : vector<8xf32> to vector<1x8xf32>
    %75 = vector.shape_cast %74 : vector<1x8xf32> to vector<1x1x8xf32>
    %c0_76 = arith.constant 0 : index
    %c0_77 = arith.constant 0 : index
    %c0_78 = arith.constant 0 : index
    %76 = vector.load %arg6[%c0_76, %c0_77, %c0_78] : memref<1x1x8xf32, #tpu.memory_space<vmem>>, vector<1x1x8xf32>
    tpu.vector_store %arg6[%c0_76, %c0_77, %c0_78], %75 {strides = array<i32>} : memref<1x1x8xf32, #tpu.memory_space<vmem>>, vector<1x1x8xf32>,
    %77 = arith.mulf %70, %70 : vector<64x8xf32>
    %cst_79 = arith.constant dense<0.000000e+00> : vector<8xf32>
    %78 = vector.multi_reduction <add>, %77, %cst_79 [0] : vector<64x8xf32> to vector<8xf32>
    %79 = vector.shape_cast %78 : vector<8xf32> to vector<1x8xf32>
    %80 = vector.shape_cast %79 : vector<1x8xf32> to vector<1x1x8xf32>
    %c0_80 = arith.constant 0 : index
    %c0_81 = arith.constant 0 : index
    %c0_82 = arith.constant 0 : index
    %81 = vector.load %arg7[%c0_80, %c0_81, %c0_82] : memref<1x1x8xf32, #tpu.memory_space<vmem>>, vector<1x1x8xf32>
    tpu.vector_store %arg7[%c0_80, %c0_81, %c0_82], %80 {strides = array<i32>} : memref<1x1x8xf32, #tpu.memory_space<vmem>>, vector<1x1x8xf32>,
    return
  }
  func.func @transform_0(%arg0: i32) -> (i32, i32, i32, i32) {
    %c0_i32 = arith.constant 0 : i32
    %c0_i32_0 = arith.constant 0 : i32
    %c0_i32_1 = arith.constant 0 : i32
    %c0_i32_2 = arith.constant 0 : i32
    return %arg0, %c0_i32, %c0_i32_0, %c0_i32_1 : i32, i32, i32, i32
  }
  func.func @transform_1(%arg0: i32) -> (i32, i32, i32) {
    %c0_i32 = arith.constant 0 : i32
    %c0_i32_0 = arith.constant 0 : i32
    %c0_i32_1 = arith.constant 0 : i32
    %c0_i32_2 = arith.constant 0 : i32
    return %c0_i32, %c0_i32_0, %c0_i32_1 : i32, i32, i32
  }
  func.func @transform_2(%arg0: i32) -> (i32, i32, i32) {
    %c0_i32 = arith.constant 0 : i32
    %c0_i32_0 = arith.constant 0 : i32
    %c0_i32_1 = arith.constant 0 : i32
    %c0_i32_2 = arith.constant 0 : i32
    return %c0_i32, %c0_i32_0, %c0_i32_1 : i32, i32, i32
  }
  func.func @transform_3(%arg0: i32) -> (i32, i32, i32) {
    %c0_i32 = arith.constant 0 : i32
    %c0_i32_0 = arith.constant 0 : i32
    %c0_i32_1 = arith.constant 0 : i32
    %c0_i32_2 = arith.constant 0 : i32
    return %c0_i32, %c0_i32_0, %c0_i32_1 : i32, i32, i32
  }
  func.func @transform_4(%arg0: i32) -> (i32, i32, i32, i32) {
    %c0_i32 = arith.constant 0 : i32
    %c0_i32_0 = arith.constant 0 : i32
    %c0_i32_1 = arith.constant 0 : i32
    %c0_i32_2 = arith.constant 0 : i32
    return %arg0, %c0_i32, %c0_i32_0, %c0_i32_1 : i32, i32, i32, i32
  }
  func.func @transform_5(%arg0: i32) -> (i32, i32, i32) {
    %c0_i32 = arith.constant 0 : i32
    %c0_i32_0 = arith.constant 0 : i32
    %c0_i32_1 = arith.constant 0 : i32
    return %arg0, %c0_i32, %c0_i32_0 : i32, i32, i32
  }
  func.func @transform_6(%arg0: i32) -> (i32, i32, i32) {
    %c0_i32 = arith.constant 0 : i32
    %c0_i32_0 = arith.constant 0 : i32
    %c0_i32_1 = arith.constant 0 : i32
    return %arg0, %c0_i32, %c0_i32_0 : i32, i32, i32
  }
}

</mosaic_0001>

<llo_original>
// kernel: block_forward.5
$region0: #{block_forward.5}
  #allocation0 [shape = 'u32[]', space=smem, size = 0x4, offset = 0x4, fixed_abs, tag = 'smem constant byte address 0x4 - core index']
  #allocation1 [shape = 'u32[144,128]{1,0:T(1,128)}', space=vmem, size = 0x12000, scoped, tag = 'internal scratch']
  %s0 = inlined_call_operand.vmem [shape: f32[2,8,8,8], index: 0, kind: input, shape index: {}]
  %s1 = inlined_call_operand.vmem [shape: f32[1,1,8], index: 1, kind: input, shape index: {}]
  %s2 = inlined_call_operand.vmem [shape: f32[1,1,8], index: 2, kind: input, shape index: {}]
  %s3 = inlined_call_operand.vmem [shape: f32[2,8,8,4], index: 3, kind: input, shape index: {}]
  %s4 = inlined_call_operand.vmem [shape: f32[2,8,8,8], index: 4, kind: output, shape index: {}]
  %s5 = sld [smem:[#allocation0]]
  $region49: #{block_forward.5} parent=0
    _
  %s7 = ssub.s32 1, %s5
  %s8 = scalar_select 0, %s7, %s5
  loop: start=0, step=1, limit=4
  $region2: #{block_forward.5} parent=0 // loop_pre_header
    _
  $region3: #{block_forward.5} parent=0 // loop_header
    %s10 = sphi 0, %s14
    %p11 = scmp.ge.s32.totalorder %s10, 4
    %s20 = sphi 0, %s22
    %s23 = sphi 0, %s20
    %s24 = sphi 0, %s23
    %s40 = sphi 0, %s24
    %s44 = sphi 0, %s44
    %s46 = sphi 0, %s44
    %s47 = sphi 0, %s46
    %s61 = sphi 0, %s47
    %s65 = sphi 0, %s65
    %s67 = sphi 0, %s65
    %s68 = sphi 0, %s67
    %s82 = sphi 0, %s68
    %s88 = sphi 0, %s90
    %s91 = sphi 0, %s88
    %s92 = sphi 0, %s91
    %s108 = sphi 0, %s92
    %s114 = sphi 0, %s116
    %s117 = sphi 0, %s114
    %s118 = sphi 0, %s117
    %s134 = sphi 0, %s118
  $region4: #{block_forward.5} parent=0 // loop_header_branch
    %13 = sbr.rel (%p11) target = $region8
  $region5: #{block_forward.5} parent=0 // loop_body
    %s15 = ssub.s32 %s10, 1
    %s16 = ssub.s32 %s10, 2
    %s17 = sadd.s32 %s10, 1
    %s18 = ssub.s32 %s10, %s17
    %p19 = scmp.eq.s32.totalorder %s18, 0
    %s21 = sadd.s32 %s20, 1
    %s22 = scalar_select %p19, %s20, %s21
    %p25 = pneg %p19
    %p26 = scmp.eq.s32.totalorder %s10, 1
    %p27 = por %p25, %p26
    %p28 = scmp.ne.s32.totalorder %s20, %s23
    %p29 = scmp.eq.s32.totalorder %s10, 0
    %p30 = por %p28, %p29
    %p31 = scmp.ne.s32.totalorder %s20, %s23
    %p32 = scmp.eq.s32.totalorder %s15, 1
    %p33 = por %p31, %p32
    %p34 = scmp.ne.s32.totalorder %s23, %s24
    %p35 = scmp.eq.s32.totalorder %s15, 0
    %p36 = por %p34, %p35
    %p37 = scmp.ne.s32.totalorder %s23, %s24
    %p38 = scmp.eq.s32.totalorder %s16, 1
    %p39 = por %p37, %p38
    %p41 = scmp.ne.s32.totalorder %s24, %s40
    %p42 = scmp.eq.s32.totalorder %s16, 0
    %p43 = por %p41, %p42
    %s45 = sadd.s32 %s44, 1
    %p48 = scmp.eq.s32.totalorder %s10, 1
    %p49 = scmp.ne.s32.totalorder %s44, %s46
    %p50 = scmp.eq.s32.totalorder %s10, 0
    %p51 = por %p49, %p50
    %p52 = scmp.ne.s32.totalorder %s44, %s46
    %p53 = scmp.eq.s32.totalorder %s15, 1
    %p54 = por %p52, %p53
    %p55 = scmp.ne.s32.totalorder %s46, %s47
    %p56 = scmp.eq.s32.totalorder %s15, 0
    %p57 = por %p55, %p56
    %p58 = scmp.ne.s32.totalorder %s46, %s47
    %p59 = scmp.eq.s32.totalorder %s16, 1
    %p60 = por %p58, %p59
    %p62 = scmp.ne.s32.totalorder %s47, %s61
    %p63 = scmp.eq.s32.totalorder %s16, 0
    %p64 = por %p62, %p63
    %s66 = sadd.s32 %s65, 1
    %p69 = scmp.eq.s32.totalorder %s10, 1
    %p70 = scmp.ne.s32.totalorder %s65, %s67
    %p71 = scmp.eq.s32.totalorder %s10, 0
    %p72 = por %p70, %p71
    %p73 = scmp.ne.s32.totalorder %s65, %s67
    %p74 = scmp.eq.s32.totalorder %s15, 1
    %p75 = por %p73, %p74
    %p76 = scmp.ne.s32.totalorder %s67, %s68
    %p77 = scmp.eq.s32.totalorder %s15, 0
    %p78 = por %p76, %p77
    %p79 = scmp.ne.s32.totalorder %s67, %s68
    %p80 = scmp.eq.s32.totalorder %s16, 1
    %p81 = por %p79, %p80
    %p83 = scmp.ne.s32.totalorder %s68, %s82
    %p84 = scmp.eq.s32.totalorder %s16, 0
    %p85 = por %p83, %p84
    %s86 = ssub.s32 %s10, %s17
    %p87 = scmp.eq.s32.totalorder %s86, 0
    %s89 = sadd.s32 %s88, 1
    %s90 = scalar_select %p87, %s88, %s89
    %p93 = pneg %p87
    %p94 = scmp.eq.s32.totalorder %s10, 1
    %p95 = por %p93, %p94
    %p96 = scmp.ne.s32.totalorder %s88, %s91
    %p97 = scmp.eq.s32.totalorder %s10, 0
    %p98 = por %p96, %p97
    %p99 = scmp.ne.s32.totalorder %s88, %s91
    %p100 = scmp.eq.s32.totalorder %s15, 1
    %p101 = por %p99, %p100
    %p102 = scmp.ne.s32.totalorder %s91, %s92
    %p103 = scmp.eq.s32.totalorder %s15, 0
    %p104 = por %p102, %p103
    %p105 = scmp.ne.s32.totalorder %s91, %s92
    %p106 = scmp.eq.s32.totalorder %s16, 1
    %p107 = por %p105, %p106
    %p109 = scmp.ne.s32.totalorder %s92, %s108
    %p110 = scmp.eq.s32.totalorder %s16, 0
    %p111 = por %p109, %p110
    %s112 = ssub.s32 %s10, %s17
    %p113 = scmp.eq.s32.totalorder %s112, 0
    %s115 = sadd.s32 %s114, 1
    %s116 = scalar_select %p113, %s114, %s115
    %p119 = pneg %p113
    %p120 = scmp.eq.s32.totalorder %s10, 1
    %p121 = por %p119, %p120
    %p122 = scmp.ne.s32.totalorder %s114, %s117
    %p123 = scmp.eq.s32.totalorder %s10, 0
    %p124 = por %p122, %p123
    %p125 = scmp.ne.s32.totalorder %s114, %s117
    %p126 = scmp.eq.s32.totalorder %s15, 1
    %p127 = por %p125, %p126
    %p128 = scmp.ne.s32.totalorder %s117, %s118
    %p129 = scmp.eq.s32.totalorder %s15, 0
    %p130 = por %p128, %p129
    %p131 = scmp.ne.s32.totalorder %s117, %s118
    %p132 = scmp.eq.s32.totalorder %s16, 1
    %p133 = por %p131, %p132
    %p135 = scmp.ne.s32.totalorder %s118, %s134
    %p136 = scmp.eq.s32.totalorder %s16, 0
    %p137 = por %p135, %p136
    %p138 = scmp.le.s32.totalorder 1, %s10
    %p139 = scmp.lt.s32.totalorder %s10, 3
    %p140 = pnand %p138, %p139
    %p141 = pneg %p140
    // Predicated region
    $region9: #{block_forward.5} parent=5 // pred_check
      _
    $region10: #{block_forward.5} parent=5 // pred_check_branch
      %143 = sbr.rel (%p140) target = $region12
    $region11: #{block_forward.5} parent=5 // pred_region
      %s144 = ssub.s32 %s10, 1
      // Predicated region
      $region13: #{block_forward.5} parent=11 // pred_check
        %p145 = pneg %p57
      $region14: #{block_forward.5} parent=11 // pred_check_branch
        %147 = sbr.rel (%p145) target = $region16
      $region15: #{block_forward.5} parent=11 // pred_region
        _
      $region16: #{block_forward.5} parent=11 // pred_fallthru
        _
      // Predicated region
      $region17: #{block_forward.5} parent=11 // pred_check
        %p148 = pneg %p78
      $region18: #{block_forward.5} parent=11 // pred_check_branch
        %150 = sbr.rel (%p148) target = $region20
      $region19: #{block_forward.5} parent=11 // pred_region
        _
      $region20: #{block_forward.5} parent=11 // pred_fallthru
        _
    $region12: #{block_forward.5} parent=5 // pred_fallthru
      _
    %p151 = scmp.lt.s32.totalorder %s10, 2
    // Predicated region
    $region21: #{block_forward.5} parent=5 // pred_check
      %p152 = pneg %p151
    $region22: #{block_forward.5} parent=5 // pred_check_branch
      %154 = sbr.rel (%p152) target = $region24
    $region23: #{block_forward.5} parent=5 // pred_region
      // Predicated region
      $region25: #{block_forward.5} parent=23 // pred_check
        %p155 = pneg %p30
      $region26: #{block_forward.5} parent=23 // pred_check_branch
        %157 = sbr.rel (%p155) target = $region28
      $region27: #{block_forward.5} parent=23 // pred_region
        %p158 = scmp.lt.s32.totalorder %s10, 1
        %s159 = scalar_select %p158, %s10, 1
        %s160 = smul.addr %s159, 8
        %s161 = smul.addr %s160, 8
        %s162 = scalar_lea.vmem %s0, %s161
      $region28: #{block_forward.5} parent=23 // pred_fallthru
        _
      // Predicated region
      $region29: #{block_forward.5} parent=23 // pred_check
        %p163 = pneg %p98
      $region30: #{block_forward.5} parent=23 // pred_check_branch
        %165 = sbr.rel (%p163) target = $region32
      $region31: #{block_forward.5} parent=23 // pred_region
        %p166 = scmp.lt.s32.totalorder %s10, 1
        %s167 = scalar_select %p166, %s10, 1
        %s168 = smul.addr %s167, 8
        %s169 = smul.addr %s168, 8
        %s170 = scalar_lea.vmem %s3, %s169
      $region32: #{block_forward.5} parent=23 // pred_fallthru
        _
    $region24: #{block_forward.5} parent=5 // pred_fallthru
      _
    %p171 = scmp.le.s32.totalorder 1, %s10
    %p172 = scmp.lt.s32.totalorder %s10, 3
    %p173 = pnand %p171, %p172
    %p174 = pneg %p173
    // Predicated region
    $region33: #{block_forward.5} parent=5 // pred_check
      _
    $region34: #{block_forward.5} parent=5 // pred_check_branch
      %176 = sbr.rel (%p173) target = $region36
    $region35: #{block_forward.5} parent=5 // pred_region
      %s177 = ssub.s32 %s10, 1
      %p178 = scmp.lt.s32.totalorder %s15, 1
      %s179 = scalar_select %p178, %s15, 1
      %s180 = smul.addr %s179, 8
      %s181 = smul.addr %s180, 8
      %s182 = scalar_lea.vmem %s0, %s181
      %p183 = pneg %p36
      %p184 = pneg %p33
      %p185 = pneg %p57
      %p186 = pneg %p54
      %p187 = pneg %p78
      %p188 = pneg %p75
      %p189 = scmp.lt.s32.totalorder %s15, 1
      %s190 = scalar_select %p189, %s15, 1
      %s191 = smul.addr %s190, 8
      %s192 = smul.addr %s191, 8
      %s193 = scalar_lea.vmem %s3, %s192
      %p194 = pneg %p104
      %p195 = pneg %p101
      %p196 = pneg %p130
      %p197 = pneg %p127
      %p198 = scmp.lt.s32.totalorder %s15, 1
      %s199 = scalar_select %p198, %s15, 1
      %s200 = smul.addr %s199, 8
      %s201 = smul.addr %s200, 8
      %s202 = scalar_lea.vmem %s4, %s201
      %p203 = scmp.lt.s32.totalorder %s15, 1
      %s204 = scalar_select %p203, %s15, 1
      %s205 = smul.addr %s204, 8
      %s206 = smul.addr %s205, 8
      %s207 = scalar_lea.vmem %s0, %s206
      %p208 = scmp.lt.s32.totalorder %s15, 1
      %s209 = scalar_select %p208, %s15, 1
      %s210 = smul.addr %s209, 8
      %s211 = smul.addr %s210, 8
      %s212 = scalar_lea.vmem %s3, %s211
      %p213 = scmp.lt.s32.totalorder %s15, 1
      %s214 = scalar_select %p213, %s15, 1
      %s215 = smul.addr %s214, 8
      %s216 = smul.addr %s215, 8
      %s217 = scalar_lea.vmem %s4, %s216
      %v218 = vld [vmem:[%s207] sm:$0xff]
      %v219 = vld [vmem:[%s207 + $0x8] sm:$0xff]
      %v220 = vld [vmem:[%s207 + $0x10] sm:$0xff]
      %v221 = vld [vmem:[%s207 + $0x18] sm:$0xff]
      %v222 = vld [vmem:[%s207 + $0x20] sm:$0xff]
      %v223 = vld [vmem:[%s207 + $0x28] sm:$0xff]
      %v224 = vld [vmem:[%s207 + $0x30] sm:$0xff]
      %v225 = vld [vmem:[%s207 + $0x38] sm:$0xff]
      %v226 = vld [vmem:[%s1] sm:$0x1]
      %v228 = vlaneseq
      %v229 = vshrl.u32 %v228, 7
      %v230 = vsub.s32 0, %v229
      %v231 = vrot.slane %v226, %v230
      %v233 = vmul.f32 %v218, %v231
      %v234 = vmul.f32 %v219, %v231
      %v235 = vmul.f32 %v220, %v231
      %v236 = vmul.f32 %v221, %v231
      %v237 = vmul.f32 %v222, %v231
      %v238 = vmul.f32 %v223, %v231
      %v239 = vmul.f32 %v224, %v231
      %v240 = vmul.f32 %v225, %v231
      %v241 = vld [vmem:[%s2] sm:$0x1]
      %v243 = vlaneseq
      %v244 = vshrl.u32 %v243, 7
      %v245 = vsub.s32 0, %v244
      %v246 = vrot.slane %v241, %v245
      %v248 = vadd.f32 %v233, %v246
      %v249 = vadd.f32 %v234, %v246
      %v250 = vadd.f32 %v235, %v246
      %v251 = vadd.f32 %v236, %v246
      %v252 = vadd.f32 %v237, %v246
      %v253 = vadd.f32 %v238, %v246
      %v254 = vadd.f32 %v239, %v246
      %v255 = vadd.f32 %v240, %v246
      %v256 = vld [vmem:[%s212] sm:$0xff]
      %v257 = vld [vmem:[%s212 + $0x8] sm:$0xff]
      %v258 = vld [vmem:[%s212 + $0x10] sm:$0xff]
      %v259 = vld [vmem:[%s212 + $0x18] sm:$0xff]
      %v260 = vld [vmem:[%s212 + $0x20] sm:$0xff]
      %v261 = vld [vmem:[%s212 + $0x28] sm:$0xff]
      %v262 = vld [vmem:[%s212 + $0x30] sm:$0xff]
      %v263 = vld [vmem:[%s212 + $0x38] sm:$0xff]
      %vm264 = vcmask 31744
      %v265 = vsel %vm264, %v256, 0.0
      %v266 = vsel %vm264, %v257, 0.0
      %v267 = vsel %vm264, %v258, 0.0
      %v268 = vsel %vm264, %v259, 0.0
      %v269 = vsel %vm264, %v260, 0.0
      %v270 = vsel %vm264, %v261, 0.0
      %v271 = vsel %vm264, %v262, 0.0
      %v272 = vsel %vm264, %v263, 0.0
      %v273 = vadd.f32 %v248, %v265
      %v274 = vadd.f32 %v249, %v266
      %v275 = vadd.f32 %v250, %v267
      %v276 = vadd.f32 %v251, %v268
      %v277 = vadd.f32 %v252, %v269
      %v278 = vadd.f32 %v253, %v270
      %v279 = vadd.f32 %v254, %v271
      %v280 = vadd.f32 %v255, %v272
      %v281 = vmax.f32 %v273, 0.0
      %v282 = vmax.f32 %v274, 0.0
      %v283 = vmax.f32 %v275, 0.0
      %v284 = vmax.f32 %v276, 0.0
      %v285 = vmax.f32 %v277, 0.0
      %v286 = vmax.f32 %v278, 0.0
      %v287 = vmax.f32 %v279, 0.0
      %v288 = vmax.f32 %v280, 0.0
      %vm289 = vcmask 64512
      %290 = vst.msk [vmem:[%s217] sm:$0xff] %vm289, %v281
      %291 = vst.msk [vmem:[%s217 + $0x8] sm:$0xff] %vm289, %v282
      %292 = vst.msk [vmem:[%s217 + $0x10] sm:$0xff] %vm289, %v283
      %293 = vst.msk [vmem:[%s217 + $0x18] sm:$0xff] %vm289, %v284
      %294 = vst.msk [vmem:[%s217 + $0x20] sm:$0xff] %vm289, %v285
      %295 = vst.msk [vmem:[%s217 + $0x28] sm:$0xff] %vm289, %v286
      %296 = vst.msk [vmem:[%s217 + $0x30] sm:$0xff] %vm289, %v287
      %297 = vst.msk [vmem:[%s217 + $0x38] sm:$0xff] %vm289, %v288
      %p298 = scmp.lt.s32.totalorder %s15, 1
      %s299 = scalar_select %p298, %s15, 1
      %s300 = smul.addr %s299, 8
      %s301 = smul.addr %s300, 8
      %s302 = scalar_lea.vmem %s4, %s301
      // Predicated region
      $region37: #{block_forward.5} parent=35 // pred_check
        %p303 = pneg %p127
      $region38: #{block_forward.5} parent=35 // pred_check_branch
        %305 = sbr.rel (%p303) target = $region40
      $region39: #{block_forward.5} parent=35 // pred_region
        _
      $region40: #{block_forward.5} parent=35 // pred_fallthru
        _
    $region36: #{block_forward.5} parent=5 // pred_fallthru
      _
    %p306 = scmp.le.s32.totalorder 2, %s10
    // Predicated region
    $region41: #{block_forward.5} parent=5 // pred_check
      %p307 = pneg %p306
    $region42: #{block_forward.5} parent=5 // pred_check_branch
      %309 = sbr.rel (%p307) target = $region44
    $region43: #{block_forward.5} parent=5 // pred_region
      %s310 = ssub.s32 %s10, 2
      // Predicated region
      $region45: #{block_forward.5} parent=43 // pred_check
        %p311 = pneg %p133
      $region46: #{block_forward.5} parent=43 // pred_check_branch
        %313 = sbr.rel (%p311) target = $region48
      $region47: #{block_forward.5} parent=43 // pred_region
        %p314 = scmp.lt.s32.totalorder %s16, 1
        %s315 = scalar_select %p314, %s16, 1
        %s316 = smul.addr %s315, 8
        %s317 = smul.addr %s316, 8
        %s318 = scalar_lea.vmem %s4, %s317
      $region48: #{block_forward.5} parent=43 // pred_fallthru
        _
    $region44: #{block_forward.5} parent=5 // pred_fallthru
      _
  $region6: #{block_forward.5} parent=0 // loop_footer
    %s14 = sadd.s32 1, %s10
  $region7: #{block_forward.5} parent=0 // loop_footer_branch
    %9 = sbr.rel target = $region3
  $region8: #{block_forward.5} parent=0 // loop_exit
    _

// kernel: block_forward.3
$region0: #{block_forward.3}
  #allocation0 [shape = 'u32[]', space=smem, size = 0x4, offset = 0x4, fixed_abs, tag = 'smem constant byte address 0x4 - core index']
  #allocation1 [shape = 'u32[144,128]{1,0:T(1,128)}', space=vmem, size = 0x12000, scoped, tag = 'internal scratch']
  %s0 = inlined_call_operand.vmem [shape: bf16[2,4,9,9,4], index: 0, kind: input, shape index: {}]
  %s1 = inlined_call_operand.vmem [shape: bf16[9,4,8], index: 1, kind: input, shape index: {}]
  %s2 = inlined_call_operand.vmem [shape: f32[2,8,8,8], index: 2, kind: output, shape index: {0}]
  %s3 = inlined_call_operand.vmem [shape: f32[2,1,8], index: 3, kind: output, shape index: {1}]
  %s4 = inlined_call_operand.vmem [shape: f32[2,1,8], index: 4, kind: output, shape index: {2}]
  %5 = xla_tuple %s2, %s3, %s4
  %s6 = sld [smem:[#allocation0]]
  $region57: #{block_forward.3} parent=0
    _
  %s8 = ssub.s32 1, %s6
  %s9 = scalar_select 0, %s8, %s6
  loop: start=0, step=1, limit=4
  $region2: #{block_forward.3} parent=0 // loop_pre_header
    _
  $region3: #{block_forward.3} parent=0 // loop_header
    %s11 = sphi 0, %s15
    %p12 = scmp.ge.s32.totalorder %s11, 4
    %s21 = sphi 0, %s23
    %s24 = sphi 0, %s21
    %s25 = sphi 0, %s24
    %s41 = sphi 0, %s25
    %s45 = sphi 0, %s45
    %s47 = sphi 0, %s45
    %s48 = sphi 0, %s47
    %s62 = sphi 0, %s48
    %s68 = sphi 0, %s70
    %s71 = sphi 0, %s68
    %s72 = sphi 0, %s71
    %s88 = sphi 0, %s72
    %s94 = sphi 0, %s96
    %s97 = sphi 0, %s94
    %s98 = sphi 0, %s97
    %s114 = sphi 0, %s98
    %s120 = sphi 0, %s122
    %s123 = sphi 0, %s120
    %s124 = sphi 0, %s123
    %s140 = sphi 0, %s124
  $region4: #{block_forward.3} parent=0 // loop_header_branch
    %14 = sbr.rel (%p12) target = $region8
  $region5: #{block_forward.3} parent=0 // loop_body
    %s16 = ssub.s32 %s11, 1
    %s17 = ssub.s32 %s11, 2
    %s18 = sadd.s32 %s11, 1
    %s19 = ssub.s32 %s11, %s18
    %p20 = scmp.eq.s32.totalorder %s19, 0
    %s22 = sadd.s32 %s21, 1
    %s23 = scalar_select %p20, %s21, %s22
    %p26 = pneg %p20
    %p27 = scmp.eq.s32.totalorder %s11, 1
    %p28 = por %p26, %p27
    %p29 = scmp.ne.s32.totalorder %s21, %s24
    %p30 = scmp.eq.s32.totalorder %s11, 0
    %p31 = por %p29, %p30
    %p32 = scmp.ne.s32.totalorder %s21, %s24
    %p33 = scmp.eq.s32.totalorder %s16, 1
    %p34 = por %p32, %p33
    %p35 = scmp.ne.s32.totalorder %s24, %s25
    %p36 = scmp.eq.s32.totalorder %s16, 0
    %p37 = por %p35, %p36
    %p38 = scmp.ne.s32.totalorder %s24, %s25
    %p39 = scmp.eq.s32.totalorder %s17, 1
    %p40 = por %p38, %p39
    %p42 = scmp.ne.s32.totalorder %s25, %s41
    %p43 = scmp.eq.s32.totalorder %s17, 0
    %p44 = por %p42, %p43
    %s46 = sadd.s32 %s45, 1
    %p49 = scmp.eq.s32.totalorder %s11, 1
    %p50 = scmp.ne.s32.totalorder %s45, %s47
    %p51 = scmp.eq.s32.totalorder %s11, 0
    %p52 = por %p50, %p51
    %p53 = scmp.ne.s32.totalorder %s45, %s47
    %p54 = scmp.eq.s32.totalorder %s16, 1
    %p55 = por %p53, %p54
    %p56 = scmp.ne.s32.totalorder %s47, %s48
    %p57 = scmp.eq.s32.totalorder %s16, 0
    %p58 = por %p56, %p57
    %p59 = scmp.ne.s32.totalorder %s47, %s48
    %p60 = scmp.eq.s32.totalorder %s17, 1
    %p61 = por %p59, %p60
    %p63 = scmp.ne.s32.totalorder %s48, %s62
    %p64 = scmp.eq.s32.totalorder %s17, 0
    %p65 = por %p63, %p64
    %s66 = ssub.s32 %s11, %s18
    %p67 = scmp.eq.s32.totalorder %s66, 0
    %s69 = sadd.s32 %s68, 1
    %s70 = scalar_select %p67, %s68, %s69
    %p73 = pneg %p67
    %p74 = scmp.eq.s32.totalorder %s11, 1
    %p75 = por %p73, %p74
    %p76 = scmp.ne.s32.totalorder %s68, %s71
    %p77 = scmp.eq.s32.totalorder %s11, 0
    %p78 = por %p76, %p77
    %p79 = scmp.ne.s32.totalorder %s68, %s71
    %p80 = scmp.eq.s32.totalorder %s16, 1
    %p81 = por %p79, %p80
    %p82 = scmp.ne.s32.totalorder %s71, %s72
    %p83 = scmp.eq.s32.totalorder %s16, 0
    %p84 = por %p82, %p83
    %p85 = scmp.ne.s32.totalorder %s71, %s72
    %p86 = scmp.eq.s32.totalorder %s17, 1
    %p87 = por %p85, %p86
    %p89 = scmp.ne.s32.totalorder %s72, %s88
    %p90 = scmp.eq.s32.totalorder %s17, 0
    %p91 = por %p89, %p90
    %s92 = ssub.s32 %s11, %s18
    %p93 = scmp.eq.s32.totalorder %s92, 0
    %s95 = sadd.s32 %s94, 1
    %s96 = scalar_select %p93, %s94, %s95
    %p99 = pneg %p93
    %p100 = scmp.eq.s32.totalorder %s11, 1
    %p101 = por %p99, %p100
    %p102 = scmp.ne.s32.totalorder %s94, %s97
    %p103 = scmp.eq.s32.totalorder %s11, 0
    %p104 = por %p102, %p103
    %p105 = scmp.ne.s32.totalorder %s94, %s97
    %p106 = scmp.eq.s32.totalorder %s16, 1
    %p107 = por %p105, %p106
    %p108 = scmp.ne.s32.totalorder %s97, %s98
    %p109 = scmp.eq.s32.totalorder %s16, 0
    %p110 = por %p108, %p109
    %p111 = scmp.ne.s32.totalorder %s97, %s98
    %p112 = scmp.eq.s32.totalorder %s17, 1
    %p113 = por %p111, %p112
    %p115 = scmp.ne.s32.totalorder %s98, %s114
    %p116 = scmp.eq.s32.totalorder %s17, 0
    %p117 = por %p115, %p116
    %s118 = ssub.s32 %s11, %s18
    %p119 = scmp.eq.s32.totalorder %s118, 0
    %s121 = sadd.s32 %s120, 1
    %s122 = scalar_select %p119, %s120, %s121
    %p125 = pneg %p119
    %p126 = scmp.eq.s32.totalorder %s11, 1
    %p127 = por %p125, %p126
    %p128 = scmp.ne.s32.totalorder %s120, %s123
    %p129 = scmp.eq.s32.totalorder %s11, 0
    %p130 = por %p128, %p129
    %p131 = scmp.ne.s32.totalorder %s120, %s123
    %p132 = scmp.eq.s32.totalorder %s16, 1
    %p133 = por %p131, %p132
    %p134 = scmp.ne.s32.totalorder %s123, %s124
    %p135 = scmp.eq.s32.totalorder %s16, 0
    %p136 = por %p134, %p135
    %p137 = scmp.ne.s32.totalorder %s123, %s124
    %p138 = scmp.eq.s32.totalorder %s17, 1
    %p139 = por %p137, %p138
    %p141 = scmp.ne.s32.totalorder %s124, %s140
    %p142 = scmp.eq.s32.totalorder %s17, 0
    %p143 = por %p141, %p142
    %p144 = scmp.le.s32.totalorder 1, %s11
    %p145 = scmp.lt.s32.totalorder %s11, 3
    %p146 = pnand %p144, %p145
    %p147 = pneg %p146
    // Predicated region
    $region9: #{block_forward.3} parent=5 // pred_check
      _
    $region10: #{block_forward.3} parent=5 // pred_check_branch
      %149 = sbr.rel (%p146) target = $region12
    $region11: #{block_forward.3} parent=5 // pred_region
      %s150 = ssub.s32 %s11, 1
      // Predicated region
      $region13: #{block_forward.3} parent=11 // pred_check
        %p151 = pneg %p58
      $region14: #{block_forward.3} parent=11 // pred_check_branch
        %153 = sbr.rel (%p151) target = $region16
      $region15: #{block_forward.3} parent=11 // pred_region
        _
      $region16: #{block_forward.3} parent=11 // pred_fallthru
        _
    $region12: #{block_forward.3} parent=5 // pred_fallthru
      _
    %p154 = scmp.lt.s32.totalorder %s11, 2
    // Predicated region
    $region17: #{block_forward.3} parent=5 // pred_check
      %p155 = pneg %p154
    $region18: #{block_forward.3} parent=5 // pred_check_branch
      %157 = sbr.rel (%p155) target = $region20
    $region19: #{block_forward.3} parent=5 // pred_region
      // Predicated region
      $region21: #{block_forward.3} parent=19 // pred_check
        %p158 = pneg %p31
      $region22: #{block_forward.3} parent=19 // pred_check_branch
        %160 = sbr.rel (%p158) target = $region24
      $region23: #{block_forward.3} parent=19 // pred_region
        %p161 = scmp.lt.s32.totalorder %s11, 1
        %s162 = scalar_select %p161, %s11, 1
        %s163 = smul.addr %s162, 72
        %s164 = smul.addr %s163, 4
        %s165 = scalar_lea.vmem %s0, %s164
      $region24: #{block_forward.3} parent=19 // pred_fallthru
        _
    $region20: #{block_forward.3} parent=5 // pred_fallthru
      _
    %p166 = scmp.le.s32.totalorder 1, %s11
    %p167 = scmp.lt.s32.totalorder %s11, 3
    %p168 = pnand %p166, %p167
    %p169 = pneg %p168
    // Predicated region
    $region25: #{block_forward.3} parent=5 // pred_check
      _
    $region26: #{block_forward.3} parent=5 // pred_check_branch
      %171 = sbr.rel (%p168) target = $region28
    $region27: #{block_forward.3} parent=5 // pred_region
      %s172 = ssub.s32 %s11, 1
      %p173 = scmp.lt.s32.totalorder %s16, 1
      %s174 = scalar_select %p173, %s16, 1
      %s175 = smul.addr %s174, 72
      %s176 = smul.addr %s175, 4
      %s177 = scalar_lea.vmem %s0, %s176
      %p178 = pneg %p37
      %p179 = pneg %p34
      %p180 = pneg %p58
      %p181 = pneg %p55
      %p182 = pneg %p84
      %p183 = pneg %p81
      %p184 = scmp.lt.s32.totalorder %s16, 1
      %s185 = scalar_select %p184, %s16, 1
      %s186 = smul.addr %s185, 8
      %s187 = smul.addr %s186, 8
      %s188 = scalar_lea.vmem %s2, %s187
      %p189 = pneg %p110
      %p190 = pneg %p107
      %p191 = scmp.lt.s32.totalorder %s16, 1
      %s192 = scalar_select %p191, %s16, 1
      %s193 = scalar_lea.vmem %s3, %s192
      %p194 = pneg %p136
      %p195 = pneg %p133
      %p196 = scmp.lt.s32.totalorder %s16, 1
      %s197 = scalar_select %p196, %s16, 1
      %s198 = scalar_lea.vmem %s4, %s197
      %p199 = scmp.lt.s32.totalorder %s16, 1
      %s200 = scalar_select %p199, %s16, 1
      %s201 = smul.addr %s200, 72
      %s202 = smul.addr %s201, 4
      %s203 = scalar_lea.vmem %s0, %s202
      %p204 = scmp.lt.s32.totalorder %s16, 1
      %s205 = scalar_select %p204, %s16, 1
      %s206 = smul.addr %s205, 8
      %s207 = smul.addr %s206, 8
      %s208 = scalar_lea.vmem %s2, %s207
      %p209 = scmp.lt.s32.totalorder %s16, 1
      %s210 = scalar_select %p209, %s16, 1
      %s211 = scalar_lea.vmem %s3, %s210
      %p212 = scmp.lt.s32.totalorder %s16, 1
      %s213 = scalar_select %p212, %s16, 1
      %s214 = scalar_lea.vmem %s4, %s213
      %v216 = vld [vmem:[%s203] sm:$0xf]
      %v217 = vld [vmem:[%s203 + $0x8] sm:$0xf]
      %v218 = vld [vmem:[%s203 + $0x10] sm:$0xf]
      %v219 = vld [vmem:[%s203 + $0x18] sm:$0xf]
      %v220 = vld [vmem:[%s203 + $0x20] sm:$0xf]
      %v221 = vld [vmem:[%s203 + $0x28] sm:$0xf]
      %v222 = vld [vmem:[%s203 + $0x30] sm:$0xf]
      %v223 = vld [vmem:[%s203 + $0x38] sm:$0xf]
      %v224 = vld [vmem:[%s1] sm:$0x3]
      %s225 = scalar_lea.vmem %s203, 72
      %v226 = vld [vmem:[%s225] sm:$0xf]
      %v227 = vld [vmem:[%s225 + $0x8] sm:$0xf]
      %v228 = vld [vmem:[%s225 + $0x10] sm:$0xf]
      %v229 = vld [vmem:[%s225 + $0x18] sm:$0xf]
      %v230 = vld [vmem:[%s225 + $0x20] sm:$0xf]
      %v231 = vld [vmem:[%s225 + $0x28] sm:$0xf]
      %v232 = vld [vmem:[%s225 + $0x30] sm:$0xf]
      %v233 = vld [vmem:[%s225 + $0x38] sm:$0xf]
      %s234 = scalar_lea.vmem %s1, 2
      %v235 = vld [vmem:[%s234] sm:$0x3]
      %v244 = vunpack.c.l.b16 %v226
      %v245 = vunpack.c.l.b16 %v227
      %v246 = vunpack.c.l.b16 %v228
      %v247 = vunpack.c.l.b16 %v229
      %v248 = vunpack.c.l.b16 %v230
      %v249 = vunpack.c.l.b16 %v231
      %v250 = vunpack.c.l.b16 %v232
      %v251 = vunpack.c.l.b16 %v233
      %v252 = vpack.c.b16 %v245, %v244
      %v253 = vpack.c.b16 %v247, %v246
      %v254 = vpack.c.b16 %v249, %v248
      %v255 = vpack.c.b16 %v251, %v250
      %vm256 = vcmask 31744
      %v258 = vsel %vm256, %v252, 0
      %v261 = vsel %vm256, %v253, 0
      %v264 = vsel %vm256, %v254, 0
      %v267 = vsel %vm256, %v255, 0
      %vm269 = vcmask 1041408
      %v271 = vsel %vm269, %v235, 0
      %273 = vmatprep.subr.bf16.mxu0 0
      %274 = vmatpush1.bf16.msra.mxu0 0
      %275 = vmatprep.subr.bf16.mxu0 0
      %276 = vmatpush1.bf16.msra.mxu0 0
      %277 = vmatprep.subr.bf16.mxu0 0
      %278 = vmatpush1.bf16.msra.mxu0 0
      %279 = vmatprep.subr.bf16.mxu0 0
      %280 = vmatpush1.bf16.msra.mxu0 0
      %281 = vmatprep.subr.bf16.mxu0 0
      %282 = vmatpush1.bf16.msra.mxu0 0
      %283 = vmatprep.subr.bf16.mxu0 0
      %284 = vmatpush1.bf16.msra.mxu0 0
      %285 = vmatprep.subr.bf16.mxu0 0
      %286 = vmatpush1.bf16.msra.mxu0 0
      %287 = vmatprep.subr.bf16.mxu0 0
      %288 = vmatpush1.bf16.msra.mxu0 %v271
      %289 = vmatprep.subr.bf16.mxu0 0
      %290 = vmatpush2.bf16.msra.mxu0 0
      %291 = vmatprep.subr.bf16.mxu0 0
      %292 = vmatpush2.bf16.msra.mxu0 0
      %293 = vmatprep.subr.bf16.mxu0 0
      %294 = vmatpush2.bf16.msra.mxu0 0
      %295 = vmatprep.subr.bf16.mxu0 0
      %296 = vmatpush2.bf16.msra.mxu0 0
      %297 = vmatprep.subr.bf16.mxu0 0
      %298 = vmatpush2.bf16.msra.mxu0 0
      %299 = vmatprep.subr.bf16.mxu0 0
      %300 = vmatpush2.bf16.msra.mxu0 0
      %301 = vmatprep.subr.bf16.mxu0 0
      %302 = vmatpush2.bf16.msra.mxu0 0
      %303 = vmatprep.subr.bf16.mxu0 0
      %304 = vmatpush2.bf16.msra.mxu0 0
      %305 = vmatprep.mubr.bf16.mxu0 0
      %306 = vmatmul.mubr.bf16.gmra.mxu0 %v258
      %v307 = vpop.f32.mrf.mxu0
      %v308 = vadd.f32 0.0, %v307
      %v309 = vpop.f32.mrf.mxu0
      %v310 = vpop.f32.mrf.mxu0
      %v311 = vadd.f32 0.0, %v310
      %v312 = vpop.f32.mrf.mxu0
      %313 = vmatprep.mubr.bf16.mxu0 0
      %314 = vmatmul.mubr.bf16.gmra.mxu0 %v261
      %v315 = vpop.f32.mrf.mxu0
      %v316 = vadd.f32 0.0, %v315
      %v317 = vpop.f32.mrf.mxu0
      %v318 = vpop.f32.mrf.mxu0
      %v319 = vadd.f32 0.0, %v318
      %v320 = vpop.f32.mrf.mxu0
      %321 = vmatprep.mubr.bf16.mxu0 0
      %322 = vmatmul.mubr.bf16.gmra.mxu0 %v264
      %v323 = vpop.f32.mrf.mxu0
      %v324 = vadd.f32 0.0, %v323
      %v325 = vpop.f32.mrf.mxu0
      %v326 = vpop.f32.mrf.mxu0
      %v327 = vadd.f32 0.0, %v326
      %v328 = vpop.f32.mrf.mxu0
      %329 = vmatprep.mubr.bf16.mxu0 0
      %330 = vmatmul.mubr.bf16.gmra.mxu0 %v267
      %v331 = vpop.f32.mrf.mxu0
      %v332 = vadd.f32 0.0, %v331
      %v333 = vpop.f32.mrf.mxu0
      %v334 = vpop.f32.mrf.mxu0
      %v335 = vadd.f32 0.0, %v334
      %v336 = vpop.f32.mrf.mxu0
      %337 = vdwg.mxu0
      %v346 = vunpack.c.l.b16 %v216
      %v347 = vunpack.c.l.b16 %v217
      %v348 = vunpack.c.l.b16 %v218
      %v349 = vunpack.c.l.b16 %v219
      %v350 = vunpack.c.l.b16 %v220
      %v351 = vunpack.c.l.b16 %v221
      %v352 = vunpack.c.l.b16 %v222
      %v353 = vunpack.c.l.b16 %v223
      %v354 = vpack.c.b16 %v347, %v346
      %v355 = vpack.c.b16 %v349, %v348
      %v356 = vpack.c.b16 %v351, %v350
      %v357 = vpack.c.b16 %v353, %v352
      %v359 = vsel %vm256, %v354, 0
      %v362 = vsel %vm256, %v355, 0
      %v365 = vsel %vm256, %v356, 0
      %v368 = vsel %vm256, %v357, 0
      %v371 = vsel %vm269, %v224, 0
      %373 = vmatprep.subr.bf16.mxu0 0
      %374 = vmatpush1.bf16.msra.mxu0 0
      %375 = vmatprep.subr.bf16.mxu0 0
      %376 = vmatpush1.bf16.msra.mxu0 0
      %377 = vmatprep.subr.bf16.mxu0 0
      %378 = vmatpush1.bf16.msra.mxu0 0
      %379 = vmatprep.subr.bf16.mxu0 0
      %380 = vmatpush1.bf16.msra.mxu0 0
      %381 = vmatprep.subr.bf16.mxu0 0
      %382 = vmatpush1.bf16.msra.mxu0 0
      %383 = vmatprep.subr.bf16.mxu0 0
      %384 = vmatpush1.bf16.msra.mxu0 0
      %385 = vmatprep.subr.bf16.mxu0 0
      %386 = vmatpush1.bf16.msra.mxu0 0
      %387 = vmatprep.subr.bf16.mxu0 0
      %388 = vmatpush1.bf16.msra.mxu0 %v371
      %389 = vmatprep.subr.bf16.mxu0 0
      %390 = vmatpush2.bf16.msra.mxu0 0
      %391 = vmatprep.subr.bf16.mxu0 0
      %392 = vmatpush2.bf16.msra.mxu0 0
      %393 = vmatprep.subr.bf16.mxu0 0
      %394 = vmatpush2.bf16.msra.mxu0 0
      %395 = vmatprep.subr.bf16.mxu0 0
      %396 = vmatpush2.bf16.msra.mxu0 0
      %397 = vmatprep.subr.bf16.mxu0 0
      %398 = vmatpush2.bf16.msra.mxu0 0
      %399 = vmatprep.subr.bf16.mxu0 0
      %400 = vmatpush2.bf16.msra.mxu0 0
      %401 = vmatprep.subr.bf16.mxu0 0
      %402 = vmatpush2.bf16.msra.mxu0 0
      %403 = vmatprep.subr.bf16.mxu0 0
      %404 = vmatpush2.bf16.msra.mxu0 0
      %405 = vmatprep.mubr.bf16.mxu0 0
      %406 = vmatmul.mubr.bf16.gmra.mxu0 %v359
      %v407 = vpop.f32.mrf.mxu0
      %v408 = vadd.f32 %v308, %v407
      %v409 = vpop.f32.mrf.mxu0
      %v410 = vpop.f32.mrf.mxu0
      %v411 = vadd.f32 %v311, %v410
      %v412 = vpop.f32.mrf.mxu0
      %413 = vmatprep.mubr.bf16.mxu0 0
      %414 = vmatmul.mubr.bf16.gmra.mxu0 %v362
      %v415 = vpop.f32.mrf.mxu0
      %v416 = vadd.f32 %v316, %v415
      %v417 = vpop.f32.mrf.mxu0
      %v418 = vpop.f32.mrf.mxu0
      %v419 = vadd.f32 %v319, %v418
      %v420 = vpop.f32.mrf.mxu0
      %421 = vmatprep.mubr.bf16.mxu0 0
      %422 = vmatmul.mubr.bf16.gmra.mxu0 %v365
      %v423 = vpop.f32.mrf.mxu0
      %v424 = vadd.f32 %v324, %v423
      %v425 = vpop.f32.mrf.mxu0
      %v426 = vpop.f32.mrf.mxu0
      %v427 = vadd.f32 %v327, %v426
      %v428 = vpop.f32.mrf.mxu0
      %429 = vmatprep.mubr.bf16.mxu0 0
      %430 = vmatmul.mubr.bf16.gmra.mxu0 %v368
      %v431 = vpop.f32.mrf.mxu0
      %v432 = vadd.f32 %v332, %v431
      %v433 = vpop.f32.mrf.mxu0
      %v434 = vpop.f32.mrf.mxu0
      %v435 = vadd.f32 %v335, %v434
      %v436 = vpop.f32.mrf.mxu0
      %437 = vdwg.mxu0
      %v438 = vld [vmem:[%s203] sm:$0xf]
      %v439 = vld [vmem:[%s203 + $0x4] sm:$0x1]
      %v440 = vld [vmem:[%s203 + $0x8] sm:$0xf]
      %v441 = vld [vmem:[%s203 + $0xc] sm:$0x1]
      %v442 = vld [vmem:[%s203 + $0x10] sm:$0xf]
      %v443 = vld [vmem:[%s203 + $0x14] sm:$0x1]
      %v444 = vld [vmem:[%s203 + $0x18] sm:$0xf]
      %v445 = vld [vmem:[%s203 + $0x1c] sm:$0x1]
      %v446 = vld [vmem:[%s203 + $0x20] sm:$0xf]
      %v447 = vld [vmem:[%s203 + $0x24] sm:$0x1]
      %v448 = vld [vmem:[%s203 + $0x28] sm:$0xf]
      %v449 = vld [vmem:[%s203 + $0x2c] sm:$0x1]
      %v450 = vld [vmem:[%s203 + $0x30] sm:$0xf]
      %v451 = vld [vmem:[%s203 + $0x34] sm:$0x1]
      %v452 = vld [vmem:[%s203 + $0x38] sm:$0xf]
      %v453 = vld [vmem:[%s203 + $0x3c] sm:$0x1]
      %vm454 = vsmask.f32 3328
      %vm455 = vsmask.f32 7440
      %vm456 = vmor %vm454, %vm455
      %v458 = vshrl.u32 %v438, 16
      %v460 = vrot.slane %v458, 4
      %v461 = vshll.u32 %v438, 16
      %v463 = vrot.slane %v461, 5
      %v464 = vor.u32 %v460, %v463
      %v465 = vrot.slane %v464, 4
      %v467 = vshll.u32 %v439, 16
      %v469 = vrot.slane %v467, 5
      %v470 = vsel %vm456, %v465, %v469
      %v472 = vshrl.u32 %v440, 16
      %v474 = vrot.slane %v472, 4
      %v475 = vshll.u32 %v440, 16
      %v477 = vrot.slane %v475, 5
      %v478 = vor.u32 %v474, %v477
      %v479 = vrot.slane %v478, 4
      %v481 = vshll.u32 %v441, 16
      %v483 = vrot.slane %v481, 5
      %v484 = vsel %vm456, %v479, %v483
      %v486 = vshrl.u32 %v442, 16
      %v488 = vrot.slane %v486, 4
      %v489 = vshll.u32 %v442, 16
      %v491 = vrot.slane %v489, 5
      %v492 = vor.u32 %v488, %v491
      %v493 = vrot.slane %v492, 4
      %v495 = vshll.u32 %v443, 16
      %v497 = vrot.slane %v495, 5
      %v498 = vsel %vm456, %v493, %v497
      %v500 = vshrl.u32 %v444, 16
      %v502 = vrot.slane %v500, 4
      %v503 = vshll.u32 %v444, 16
      %v505 = vrot.slane %v503, 5
      %v506 = vor.u32 %v502, %v505
      %v507 = vrot.slane %v506, 4
      %v509 = vshll.u32 %v445, 16
      %v511 = vrot.slane %v509, 5
      %v512 = vsel %vm456, %v507, %v511
      %v514 = vshrl.u32 %v446, 16
      %v516 = vrot.slane %v514, 4
      %v517 = vshll.u32 %v446, 16
      %v519 = vrot.slane %v517, 5
      %v520 = vor.u32 %v516, %v519
      %v521 = vrot.slane %v520, 4
      %v523 = vshll.u32 %v447, 16
      %v525 = vrot.slane %v523, 5
      %v526 = vsel %vm456, %v521, %v525
      %v528 = vshrl.u32 %v448, 16
      %v530 = vrot.slane %v528, 4
      %v531 = vshll.u32 %v448, 16
      %v533 = vrot.slane %v531, 5
      %v534 = vor.u32 %v530, %v533
      %v535 = vrot.slane %v534, 4
      %v537 = vshll.u32 %v449, 16
      %v539 = vrot.slane %v537, 5
      %v540 = vsel %vm456, %v535, %v539
      %v542 = vshrl.u32 %v450, 16
      %v544 = vrot.slane %v542, 4
      %v545 = vshll.u32 %v450, 16
      %v547 = vrot.slane %v545, 5
      %v548 = vor.u32 %v544, %v547
      %v549 = vrot.slane %v548, 4
      %v551 = vshll.u32 %v451, 16
      %v553 = vrot.slane %v551, 5
      %v554 = vsel %vm456, %v549, %v553
      %v556 = vshrl.u32 %v452, 16
      %v558 = vrot.slane %v556, 4
      %v559 = vshll.u32 %v452, 16
      %v561 = vrot.slane %v559, 5
      %v562 = vor.u32 %v558, %v561
      %v563 = vrot.slane %v562, 4
      %v565 = vshll.u32 %v453, 16
      %v567 = vrot.slane %v565, 5
      %v568 = vsel %vm456, %v563, %v567
      %s569 = scalar_lea.vmem %s1, 4
      %v570 = vld [vmem:[%s569] sm:$0x3]
      %v571 = vunpack.c.l.b16 %v470
      %v572 = vunpack.c.l.b16 %v484
      %v573 = vunpack.c.l.b16 %v498
      %v574 = vunpack.c.l.b16 %v512
      %v575 = vunpack.c.l.b16 %v526
      %v576 = vunpack.c.l.b16 %v540
      %v577 = vunpack.c.l.b16 %v554
      %v578 = vunpack.c.l.b16 %v568
      %v579 = vpack.c.b16 %v572, %v571
      %v580 = vpack.c.b16 %v574, %v573
      %v581 = vpack.c.b16 %v576, %v575
      %v582 = vpack.c.b16 %v578, %v577
      %v584 = vsel %vm256, %v579, 0
      %v587 = vsel %vm256, %v580, 0
      %v590 = vsel %vm256, %v581, 0
      %v593 = vsel %vm256, %v582, 0
      %v596 = vsel %vm269, %v570, 0
      %598 = vmatprep.subr.bf16.mxu0 0
      %599 = vmatpush1.bf16.msra.mxu0 0
      %600 = vmatprep.subr.bf16.mxu0 0
      %601 = vmatpush1.bf16.msra.mxu0 0
      %602 = vmatprep.subr.bf16.mxu0 0
      %603 = vmatpush1.bf16.msra.mxu0 0
      %604 = vmatprep.subr.bf16.mxu0 0
      %605 = vmatpush1.bf16.msra.mxu0 0
      %606 = vmatprep.subr.bf16.mxu0 0
      %607 = vmatpush1.bf16.msra.mxu0 0
      %608 = vmatprep.subr.bf16.mxu0 0
      %609 = vmatpush1.bf16.msra.mxu0 0
      %610 = vmatprep.subr.bf16.mxu0 0
      %611 = vmatpush1.bf16.msra.mxu0 0
      %612 = vmatprep.subr.bf16.mxu0 0
      %613 = vmatpush1.bf16.msra.mxu0 %v596
      %614 = vmatprep.subr.bf16.mxu0 0
      %615 = vmatpush2.bf16.msra.mxu0 0
      %616 = vmatprep.subr.bf16.mxu0 0
      %617 = vmatpush2.bf16.msra.mxu0 0
      %618 = vmatprep.subr.bf16.mxu0 0
      %619 = vmatpush2.bf16.msra.mxu0 0
      %620 = vmatprep.subr.bf16.mxu0 0
      %621 = vmatpush2.bf16.msra.mxu0 0
      %622 = vmatprep.subr.bf16.mxu0 0
      %623 = vmatpush2.bf16.msra.mxu0 0
      %624 = vmatprep.subr.bf16.mxu0 0
      %625 = vmatpush2.bf16.msra.mxu0 0
      %626 = vmatprep.subr.bf16.mxu0 0
      %627 = vmatpush2.bf16.msra.mxu0 0
      %628 = vmatprep.subr.bf16.mxu0 0
      %629 = vmatpush2.bf16.msra.mxu0 0
      %630 = vmatprep.mubr.bf16.mxu0 0
      %631 = vmatmul.mubr.bf16.gmra.mxu0 %v584
      %v632 = vpop.f32.mrf.mxu0
      %v633 = vadd.f32 0.0, %v632
      %v634 = vpop.f32.mrf.mxu0
      %v635 = vpop.f32.mrf.mxu0
      %v636 = vadd.f32 0.0, %v635
      %v637 = vpop.f32.mrf.mxu0
      %638 = vmatprep.mubr.bf16.mxu0 0
      %639 = vmatmul.mubr.bf16.gmra.mxu0 %v587
      %v640 = vpop.f32.mrf.mxu0
      %v641 = vadd.f32 0.0, %v640
      %v642 = vpop.f32.mrf.mxu0
      %v643 = vpop.f32.mrf.mxu0
      %v644 = vadd.f32 0.0, %v643
      %v645 = vpop.f32.mrf.mxu0
      %646 = vmatprep.mubr.bf16.mxu0 0
      %647 = vmatmul.mubr.bf16.gmra.mxu0 %v590
      %v648 = vpop.f32.mrf.mxu0
      %v649 = vadd.f32 0.0, %v648
      %v650 = vpop.f32.mrf.mxu0
      %v651 = vpop.f32.mrf.mxu0
      %v652 = vadd.f32 0.0, %v651
      %v653 = vpop.f32.mrf.mxu0
      %654 = vmatprep.mubr.bf16.mxu0 0
      %655 = vmatmul.mubr.bf16.gmra.mxu0 %v593
      %v656 = vpop.f32.mrf.mxu0
      %v657 = vadd.f32 0.0, %v656
      %v658 = vpop.f32.mrf.mxu0
      %v659 = vpop.f32.mrf.mxu0
      %v660 = vadd.f32 0.0, %v659
      %v661 = vpop.f32.mrf.mxu0
      %662 = vdwg.mxu0
      %v663 = vadd.f32 %v408, %v633
      %v664 = vadd.f32 %v411, %v636
      %v665 = vadd.f32 %v416, %v641
      %v666 = vadd.f32 %v419, %v644
      %v667 = vadd.f32 %v424, %v649
      %v668 = vadd.f32 %v427, %v652
      %v669 = vadd.f32 %v432, %v657
      %v670 = vadd.f32 %v435, %v660
      %s671 = scalar_lea.vmem %s203, 144
      %v672 = vld [vmem:[%s671] sm:$0xf]
      %v673 = vld [vmem:[%s671 + $0x8] sm:$0xf]
      %v674 = vld [vmem:[%s671 + $0x10] sm:$0xf]
      %v675 = vld [vmem:[%s671 + $0x18] sm:$0xf]
      %v676 = vld [vmem:[%s671 + $0x20] sm:$0xf]
      %v677 = vld [vmem:[%s671 + $0x28] sm:$0xf]
      %v678 = vld [vmem:[%s671 + $0x30] sm:$0xf]
      %v679 = vld [vmem:[%s671 + $0x38] sm:$0xf]
      %s680 = scalar_lea.vmem %s1, 6
      %v681 = vld [vmem:[%s680] sm:$0x3]
      %v690 = vunpack.c.l.b16 %v672
      %v691 = vunpack.c.l.b16 %v673
      %v692 = vunpack.c.l.b16 %v674
      %v693 = vunpack.c.l.b16 %v675
      %v694 = vunpack.c.l.b16 %v676
      %v695 = vunpack.c.l.b16 %v677
      %v696 = vunpack.c.l.b16 %v678
      %v697 = vunpack.c.l.b16 %v679
      %v698 = vpack.c.b16 %v691, %v690
      %v699 = vpack.c.b16 %v693, %v692
      %v700 = vpack.c.b16 %v695, %v694
      %v701 = vpack.c.b16 %v697, %v696
      %v703 = vsel %vm256, %v698, 0
      %v706 = vsel %vm256, %v699, 0
      %v709 = vsel %vm256, %v700, 0
      %v712 = vsel %vm256, %v701, 0
      %v715 = vsel %vm269, %v681, 0
      %717 = vmatprep.subr.bf16.mxu0 0
      %718 = vmatpush1.bf16.msra.mxu0 0
      %719 = vmatprep.subr.bf16.mxu0 0
      %720 = vmatpush1.bf16.msra.mxu0 0
      %721 = vmatprep.subr.bf16.mxu0 0
      %722 = vmatpush1.bf16.msra.mxu0 0
      %723 = vmatprep.subr.bf16.mxu0 0
      %724 = vmatpush1.bf16.msra.mxu0 0
      %725 = vmatprep.subr.bf16.mxu0 0
      %726 = vmatpush1.bf16.msra.mxu0 0
      %727 = vmatprep.subr.bf16.mxu0 0
      %728 = vmatpush1.bf16.msra.mxu0 0
      %729 = vmatprep.subr.bf16.mxu0 0
      %730 = vmatpush1.bf16.msra.mxu0 0
      %731 = vmatprep.subr.bf16.mxu0 0
      %732 = vmatpush1.bf16.msra.mxu0 %v715
      %733 = vmatprep.subr.bf16.mxu0 0
      %734 = vmatpush2.bf16.msra.mxu0 0
      %735 = vmatprep.subr.bf16.mxu0 0
      %736 = vmatpush2.bf16.msra.mxu0 0
      %737 = vmatprep.subr.bf16.mxu0 0
      %738 = vmatpush2.bf16.msra.mxu0 0
      %739 = vmatprep.subr.bf16.mxu0 0
      %740 = vmatpush2.bf16.msra.mxu0 0
      %741 = vmatprep.subr.bf16.mxu0 0
      %742 = vmatpush2.bf16.msra.mxu0 0
      %743 = vmatprep.subr.bf16.mxu0 0
      %744 = vmatpush2.bf16.msra.mxu0 0
      %745 = vmatprep.subr.bf16.mxu0 0
      %746 = vmatpush2.bf16.msra.mxu0 0
      %747 = vmatprep.subr.bf16.mxu0 0
      %748 = vmatpush2.bf16.msra.mxu0 0
      %749 = vmatprep.mubr.bf16.mxu0 0
      %750 = vmatmul.mubr.bf16.gmra.mxu0 %v703
      %v751 = vpop.f32.mrf.mxu0
      %v752 = vadd.f32 0.0, %v751
      %v753 = vpop.f32.mrf.mxu0
      %v754 = vpop.f32.mrf.mxu0
      %v755 = vadd.f32 0.0, %v754
      %v756 = vpop.f32.mrf.mxu0
      %757 = vmatprep.mubr.bf16.mxu0 0
      %758 = vmatmul.mubr.bf16.gmra.mxu0 %v706
      %v759 = vpop.f32.mrf.mxu0
      %v760 = vadd.f32 0.0, %v759
      %v761 = vpop.f32.mrf.mxu0
      %v762 = vpop.f32.mrf.mxu0
      %v763 = vadd.f32 0.0, %v762
      %v764 = vpop.f32.mrf.mxu0
      %765 = vmatprep.mubr.bf16.mxu0 0
      %766 = vmatmul.mubr.bf16.gmra.mxu0 %v709
      %v767 = vpop.f32.mrf.mxu0
      %v768 = vadd.f32 0.0, %v767
      %v769 = vpop.f32.mrf.mxu0
      %v770 = vpop.f32.mrf.mxu0
      %v771 = vadd.f32 0.0, %v770
      %v772 = vpop.f32.mrf.mxu0
      %773 = vmatprep.mubr.bf16.mxu0 0
      %774 = vmatmul.mubr.bf16.gmra.mxu0 %v712
      %v775 = vpop.f32.mrf.mxu0
      %v776 = vadd.f32 0.0, %v775
      %v777 = vpop.f32.mrf.mxu0
      %v778 = vpop.f32.mrf.mxu0
      %v779 = vadd.f32 0.0, %v778
      %v780 = vpop.f32.mrf.mxu0
      %781 = vdwg.mxu0
      %v782 = vadd.f32 %v663, %v752
      %v783 = vadd.f32 %v664, %v755
      %v784 = vadd.f32 %v665, %v760
      %v785 = vadd.f32 %v666, %v763
      %v786 = vadd.f32 %v667, %v768
      %v787 = vadd.f32 %v668, %v771
      %v788 = vadd.f32 %v669, %v776
      %v789 = vadd.f32 %v670, %v779
      %s790 = scalar_lea.vmem %s203, 216
      %v791 = vld [vmem:[%s790] sm:$0xf]
      %v792 = vld [vmem:[%s790 + $0x8] sm:$0xf]
      %v793 = vld [vmem:[%s790 + $0x10] sm:$0xf]
      %v794 = vld [vmem:[%s790 + $0x18] sm:$0xf]
      %v795 = vld [vmem:[%s790 + $0x20] sm:$0xf]
      %v796 = vld [vmem:[%s790 + $0x28] sm:$0xf]
      %v797 = vld [vmem:[%s790 + $0x30] sm:$0xf]
      %v798 = vld [vmem:[%s790 + $0x38] sm:$0xf]
      %s799 = scalar_lea.vmem %s1, 8
      %v800 = vld [vmem:[%s799] sm:$0x3]
      %v809 = vunpack.c.l.b16 %v791
      %v810 = vunpack.c.l.b16 %v792
      %v811 = vunpack.c.l.b16 %v793
      %v812 = vunpack.c.l.b16 %v794
      %v813 = vunpack.c.l.b16 %v795
      %v814 = vunpack.c.l.b16 %v796
      %v815 = vunpack.c.l.b16 %v797
      %v816 = vunpack.c.l.b16 %v798
      %v817 = vpack.c.b16 %v810, %v809
      %v818 = vpack.c.b16 %v812, %v811
      %v819 = vpack.c.b16 %v814, %v813
      %v820 = vpack.c.b16 %v816, %v815
      %v822 = vsel %vm256, %v817, 0
      %v825 = vsel %vm256, %v818, 0
      %v828 = vsel %vm256, %v819, 0
      %v831 = vsel %vm256, %v820, 0
      %v834 = vsel %vm269, %v800, 0
      %836 = vmatprep.subr.bf16.mxu0 0
      %837 = vmatpush1.bf16.msra.mxu0 0
      %838 = vmatprep.subr.bf16.mxu0 0
      %839 = vmatpush1.bf16.msra.mxu0 0
      %840 = vmatprep.subr.bf16.mxu0 0
      %841 = vmatpush1.bf16.msra.mxu0 0
      %842 = vmatprep.subr.bf16.mxu0 0
      %843 = vmatpush1.bf16.msra.mxu0 0
      %844 = vmatprep.subr.bf16.mxu0 0
      %845 = vmatpush1.bf16.msra.mxu0 0
      %846 = vmatprep.subr.bf16.mxu0 0
      %847 = vmatpush1.bf16.msra.mxu0 0
      %848 = vmatprep.subr.bf16.mxu0 0
      %849 = vmatpush1.bf16.msra.mxu0 0
      %850 = vmatprep.subr.bf16.mxu0 0
      %851 = vmatpush1.bf16.msra.mxu0 %v834
      %852 = vmatprep.subr.bf16.mxu0 0
      %853 = vmatpush2.bf16.msra.mxu0 0
      %854 = vmatprep.subr.bf16.mxu0 0
      %855 = vmatpush2.bf16.msra.mxu0 0
      %856 = vmatprep.subr.bf16.mxu0 0
      %857 = vmatpush2.bf16.msra.mxu0 0
      %858 = vmatprep.subr.bf16.mxu0 0
      %859 = vmatpush2.bf16.msra.mxu0 0
      %860 = vmatprep.subr.bf16.mxu0 0
      %861 = vmatpush2.bf16.msra.mxu0 0
      %862 = vmatprep.subr.bf16.mxu0 0
      %863 = vmatpush2.bf16.msra.mxu0 0
      %864 = vmatprep.subr.bf16.mxu0 0
      %865 = vmatpush2.bf16.msra.mxu0 0
      %866 = vmatprep.subr.bf16.mxu0 0
      %867 = vmatpush2.bf16.msra.mxu0 0
      %868 = vmatprep.mubr.bf16.mxu0 0
      %869 = vmatmul.mubr.bf16.gmra.mxu0 %v822
      %v870 = vpop.f32.mrf.mxu0
      %v871 = vadd.f32 0.0, %v870
      %v872 = vpop.f32.mrf.mxu0
      %v873 = vpop.f32.mrf.mxu0
      %v874 = vadd.f32 0.0, %v873
      %v875 = vpop.f32.mrf.mxu0
      %876 = vmatprep.mubr.bf16.mxu0 0
      %877 = vmatmul.mubr.bf16.gmra.mxu0 %v825
      %v878 = vpop.f32.mrf.mxu0
      %v879 = vadd.f32 0.0, %v878
      %v880 = vpop.f32.mrf.mxu0
      %v881 = vpop.f32.mrf.mxu0
      %v882 = vadd.f32 0.0, %v881
      %v883 = vpop.f32.mrf.mxu0
      %884 = vmatprep.mubr.bf16.mxu0 0
      %885 = vmatmul.mubr.bf16.gmra.mxu0 %v828
      %v886 = vpop.f32.mrf.mxu0
      %v887 = vadd.f32 0.0, %v886
      %v888 = vpop.f32.mrf.mxu0
      %v889 = vpop.f32.mrf.mxu0
      %v890 = vadd.f32 0.0, %v889
      %v891 = vpop.f32.mrf.mxu0
      %892 = vmatprep.mubr.bf16.mxu0 0
      %893 = vmatmul.mubr.bf16.gmra.mxu0 %v831
      %v894 = vpop.f32.mrf.mxu0
      %v895 = vadd.f32 0.0, %v894
      %v896 = vpop.f32.mrf.mxu0
      %v897 = vpop.f32.mrf.mxu0
      %v898 = vadd.f32 0.0, %v897
      %v899 = vpop.f32.mrf.mxu0
      %900 = vdwg.mxu0
      %v901 = vadd.f32 %v782, %v871
      %v902 = vadd.f32 %v783, %v874
      %v903 = vadd.f32 %v784, %v879
      %v904 = vadd.f32 %v785, %v882
      %v905 = vadd.f32 %v786, %v887
      %v906 = vadd.f32 %v787, %v890
      %v907 = vadd.f32 %v788, %v895
      %v908 = vadd.f32 %v789, %v898
      %v909 = vld [vmem:[%s671] sm:$0xf]
      %v910 = vld [vmem:[%s671 + $0x4] sm:$0x1]
      %v911 = vld [vmem:[%s671 + $0x8] sm:$0xf]
      %v912 = vld [vmem:[%s671 + $0xc] sm:$0x1]
      %v913 = vld [vmem:[%s671 + $0x10] sm:$0xf]
      %v914 = vld [vmem:[%s671 + $0x14] sm:$0x1]
      %v915 = vld [vmem:[%s671 + $0x18] sm:$0xf]
      %v916 = vld [vmem:[%s671 + $0x1c] sm:$0x1]
      %v917 = vld [vmem:[%s671 + $0x20] sm:$0xf]
      %v918 = vld [vmem:[%s671 + $0x24] sm:$0x1]
      %v919 = vld [vmem:[%s671 + $0x28] sm:$0xf]
      %v920 = vld [vmem:[%s671 + $0x2c] sm:$0x1]
      %v921 = vld [vmem:[%s671 + $0x30] sm:$0xf]
      %v922 = vld [vmem:[%s671 + $0x34] sm:$0x1]
      %v923 = vld [vmem:[%s671 + $0x38] sm:$0xf]
      %v924 = vld [vmem:[%s671 + $0x3c] sm:$0x1]
      %v926 = vshrl.u32 %v909, 16
      %v928 = vrot.slane %v926, 4
      %v929 = vshll.u32 %v909, 16
      %v931 = vrot.slane %v929, 5
      %v932 = vor.u32 %v928, %v931
      %v933 = vrot.slane %v932, 4
      %v935 = vshll.u32 %v910, 16
      %v937 = vrot.slane %v935, 5
      %v938 = vsel %vm456, %v933, %v937
      %v940 = vshrl.u32 %v911, 16
      %v942 = vrot.slane %v940, 4
      %v943 = vshll.u32 %v911, 16
      %v945 = vrot.slane %v943, 5
      %v946 = vor.u32 %v942, %v945
      %v947 = vrot.slane %v946, 4
      %v949 = vshll.u32 %v912, 16
      %v951 = vrot.slane %v949, 5
      %v952 = vsel %vm456, %v947, %v951
      %v954 = vshrl.u32 %v913, 16
      %v956 = vrot.slane %v954, 4
      %v957 = vshll.u32 %v913, 16
      %v959 = vrot.slane %v957, 5
      %v960 = vor.u32 %v956, %v959
      %v961 = vrot.slane %v960, 4
      %v963 = vshll.u32 %v914, 16
      %v965 = vrot.slane %v963, 5
      %v966 = vsel %vm456, %v961, %v965
      %v968 = vshrl.u32 %v915, 16
      %v970 = vrot.slane %v968, 4
      %v971 = vshll.u32 %v915, 16
      %v973 = vrot.slane %v971, 5
      %v974 = vor.u32 %v970, %v973
      %v975 = vrot.slane %v974, 4
      %v977 = vshll.u32 %v916, 16
      %v979 = vrot.slane %v977, 5
      %v980 = vsel %vm456, %v975, %v979
      %v982 = vshrl.u32 %v917, 16
      %v984 = vrot.slane %v982, 4
      %v985 = vshll.u32 %v917, 16
      %v987 = vrot.slane %v985, 5
      %v988 = vor.u32 %v984, %v987
      %v989 = vrot.slane %v988, 4
      %v991 = vshll.u32 %v918, 16
      %v993 = vrot.slane %v991, 5
      %v994 = vsel %vm456, %v989, %v993
      %v996 = vshrl.u32 %v919, 16
      %v998 = vrot.slane %v996, 4
      %v999 = vshll.u32 %v919, 16
      %v1001 = vrot.slane %v999, 5
      %v1002 = vor.u32 %v998, %v1001
      %v1003 = vrot.slane %v1002, 4
      %v1005 = vshll.u32 %v920, 16
      %v1007 = vrot.slane %v1005, 5
      %v1008 = vsel %vm456, %v1003, %v1007
      %v1010 = vshrl.u32 %v921, 16
      %v1012 = vrot.slane %v1010, 4
      %v1013 = vshll.u32 %v921, 16
      %v1015 = vrot.slane %v1013, 5
      %v1016 = vor.u32 %v1012, %v1015
      %v1017 = vrot.slane %v1016, 4
      %v1019 = vshll.u32 %v922, 16
      %v1021 = vrot.slane %v1019, 5
      %v1022 = vsel %vm456, %v1017, %v1021
      %v1024 = vshrl.u32 %v923, 16
      %v1026 = vrot.slane %v1024, 4
      %v1027 = vshll.u32 %v923, 16
      %v1029 = vrot.slane %v1027, 5
      %v1030 = vor.u32 %v1026, %v1029
      %v1031 = vrot.slane %v1030, 4
      %v1033 = vshll.u32 %v924, 16
      %v1035 = vrot.slane %v1033, 5
      %v1036 = vsel %vm456, %v1031, %v1035
      %s1037 = scalar_lea.vmem %s1, 10
      %v1038 = vld [vmem:[%s1037] sm:$0x3]
      %v1039 = vunpack.c.l.b16 %v938
      %v1040 = vunpack.c.l.b16 %v952
      %v1041 = vunpack.c.l.b16 %v966
      %v1042 = vunpack.c.l.b16 %v980
      %v1043 = vunpack.c.l.b16 %v994
      %v1044 = vunpack.c.l.b16 %v1008
      %v1045 = vunpack.c.l.b16 %v1022
      %v1046 = vunpack.c.l.b16 %v1036
      %v1047 = vpack.c.b16 %v1040, %v1039
      %v1048 = vpack.c.b16 %v1042, %v1041
      %v1049 = vpack.c.b16 %v1044, %v1043
      %v1050 = vpack.c.b16 %v1046, %v1045
      %v1052 = vsel %vm256, %v1047, 0
      %v1055 = vsel %vm256, %v1048, 0
      %v1058 = vsel %vm256, %v1049, 0
      %v1061 = vsel %vm256, %v1050, 0
      %v1064 = vsel %vm269, %v1038, 0
      %1066 = vmatprep.subr.bf16.mxu0 0
      %1067 = vmatpush1.bf16.msra.mxu0 0
      %1068 = vmatprep.subr.bf16.mxu0 0
      %1069 = vmatpush1.bf16.msra.mxu0 0
      %1070 = vmatprep.subr.bf16.mxu0 0
      %1071 = vmatpush1.bf16.msra.mxu0 0
      %1072 = vmatprep.subr.bf16.mxu0 0
      %1073 = vmatpush1.bf16.msra.mxu0 0
      %1074 = vmatprep.subr.bf16.mxu0 0
      %1075 = vmatpush1.bf16.msra.mxu0 0
      %1076 = vmatprep.subr.bf16.mxu0 0
      %1077 = vmatpush1.bf16.msra.mxu0 0
      %1078 = vmatprep.subr.bf16.mxu0 0
      %1079 = vmatpush1.bf16.msra.mxu0 0
      %1080 = vmatprep.subr.bf16.mxu0 0
      %1081 = vmatpush1.bf16.msra.mxu0 %v1064
      %1082 = vmatprep.subr.bf16.mxu0 0
      %1083 = vmatpush2.bf16.msra.mxu0 0
      %1084 = vmatprep.subr.bf16.mxu0 0
      %1085 = vmatpush2.bf16.msra.mxu0 0
      %1086 = vmatprep.subr.bf16.mxu0 0
      %1087 = vmatpush2.bf16.msra.mxu0 0
      %1088 = vmatprep.subr.bf16.mxu0 0
      %1089 = vmatpush2.bf16.msra.mxu0 0
      %1090 = vmatprep.subr.bf16.mxu0 0
      %1091 = vmatpush2.bf16.msra.mxu0 0
      %1092 = vmatprep.subr.bf16.mxu0 0
      %1093 = vmatpush2.bf16.msra.mxu0 0
      %1094 = vmatprep.subr.bf16.mxu0 0
      %1095 = vmatpush2.bf16.msra.mxu0 0
      %1096 = vmatprep.subr.bf16.mxu0 0
      %1097 = vmatpush2.bf16.msra.mxu0 0
      %1098 = vmatprep.mubr.bf16.mxu0 0
      %1099 = vmatmul.mubr.bf16.gmra.mxu0 %v1052
      %v1100 = vpop.f32.mrf.mxu0
      %v1101 = vadd.f32 0.0, %v1100
      %v1102 = vpop.f32.mrf.mxu0
      %v1103 = vpop.f32.mrf.mxu0
      %v1104 = vadd.f32 0.0, %v1103
      %v1105 = vpop.f32.mrf.mxu0
      %1106 = vmatprep.mubr.bf16.mxu0 0
      %1107 = vmatmul.mubr.bf16.gmra.mxu0 %v1055
      %v1108 = vpop.f32.mrf.mxu0
      %v1109 = vadd.f32 0.0, %v1108
      %v1110 = vpop.f32.mrf.mxu0
      %v1111 = vpop.f32.mrf.mxu0
      %v1112 = vadd.f32 0.0, %v1111
      %v1113 = vpop.f32.mrf.mxu0
      %1114 = vmatprep.mubr.bf16.mxu0 0
      %1115 = vmatmul.mubr.bf16.gmra.mxu0 %v1058
      %v1116 = vpop.f32.mrf.mxu0
      %v1117 = vadd.f32 0.0, %v1116
      %v1118 = vpop.f32.mrf.mxu0
      %v1119 = vpop.f32.mrf.mxu0
      %v1120 = vadd.f32 0.0, %v1119
      %v1121 = vpop.f32.mrf.mxu0
      %1122 = vmatprep.mubr.bf16.mxu0 0
      %1123 = vmatmul.mubr.bf16.gmra.mxu0 %v1061
      %v1124 = vpop.f32.mrf.mxu0
      %v1125 = vadd.f32 0.0, %v1124
      %v1126 = vpop.f32.mrf.mxu0
      %v1127 = vpop.f32.mrf.mxu0
      %v1128 = vadd.f32 0.0, %v1127
      %v1129 = vpop.f32.mrf.mxu0
      %1130 = vdwg.mxu0
      %v1131 = vadd.f32 %v901, %v1101
      %v1132 = vadd.f32 %v902, %v1104
      %v1133 = vadd.f32 %v903, %v1109
      %v1134 = vadd.f32 %v904, %v1112
      %v1135 = vadd.f32 %v905, %v1117
      %v1136 = vadd.f32 %v906, %v1120
      %v1137 = vadd.f32 %v907, %v1125
      %v1138 = vadd.f32 %v908, %v1128
      %s1139 = scalar_lea.vmem %s203, 8
      %v1140 = vld [vmem:[%s1139] sm:$0xf]
      %v1141 = vld [vmem:[%s1139 + $0x8] sm:$0xf]
      %v1142 = vld [vmem:[%s1139 + $0x10] sm:$0xf]
      %v1143 = vld [vmem:[%s1139 + $0x18] sm:$0xf]
      %v1144 = vld [vmem:[%s1139 + $0x20] sm:$0xf]
      %v1145 = vld [vmem:[%s1139 + $0x28] sm:$0xf]
      %v1146 = vld [vmem:[%s1139 + $0x30] sm:$0xf]
      %v1147 = vld [vmem:[%s1139 + $0x38] sm:$0xf]
      %s1148 = scalar_lea.vmem %s1, 12
      %v1149 = vld [vmem:[%s1148] sm:$0x3]
      %v1158 = vunpack.c.l.b16 %v1140
      %v1159 = vunpack.c.l.b16 %v1141
      %v1160 = vunpack.c.l.b16 %v1142
      %v1161 = vunpack.c.l.b16 %v1143
      %v1162 = vunpack.c.l.b16 %v1144
      %v1163 = vunpack.c.l.b16 %v1145
      %v1164 = vunpack.c.l.b16 %v1146
      %v1165 = vunpack.c.l.b16 %v1147
      %v1166 = vpack.c.b16 %v1159, %v1158
      %v1167 = vpack.c.b16 %v1161, %v1160
      %v1168 = vpack.c.b16 %v1163, %v1162
      %v1169 = vpack.c.b16 %v1165, %v1164
      %v1171 = vsel %vm256, %v1166, 0
      %v1174 = vsel %vm256, %v1167, 0
      %v1177 = vsel %vm256, %v1168, 0
      %v1180 = vsel %vm256, %v1169, 0
      %v1183 = vsel %vm269, %v1149, 0
      %1185 = vmatprep.subr.bf16.mxu0 0
      %1186 = vmatpush1.bf16.msra.mxu0 0
      %1187 = vmatprep.subr.bf16.mxu0 0
      %1188 = vmatpush1.bf16.msra.mxu0 0
      %1189 = vmatprep.subr.bf16.mxu0 0
      %1190 = vmatpush1.bf16.msra.mxu0 0
      %1191 = vmatprep.subr.bf16.mxu0 0
      %1192 = vmatpush1.bf16.msra.mxu0 0
      %1193 = vmatprep.subr.bf16.mxu0 0
      %1194 = vmatpush1.bf16.msra.mxu0 0
      %1195 = vmatprep.subr.bf16.mxu0 0
      %1196 = vmatpush1.bf16.msra.mxu0 0
      %1197 = vmatprep.subr.bf16.mxu0 0
      %1198 = vmatpush1.bf16.msra.mxu0 0
      %1199 = vmatprep.subr.bf16.mxu0 0
      %1200 = vmatpush1.bf16.msra.mxu0 %v1183
      %1201 = vmatprep.subr.bf16.mxu0 0
      %1202 = vmatpush2.bf16.msra.mxu0 0
      %1203 = vmatprep.subr.bf16.mxu0 0
      %1204 = vmatpush2.bf16.msra.mxu0 0
      %1205 = vmatprep.subr.bf16.mxu0 0
      %1206 = vmatpush2.bf16.msra.mxu0 0
      %1207 = vmatprep.subr.bf16.mxu0 0
      %1208 = vmatpush2.bf16.msra.mxu0 0
      %1209 = vmatprep.subr.bf16.mxu0 0
      %1210 = vmatpush2.bf16.msra.mxu0 0
      %1211 = vmatprep.subr.bf16.mxu0 0
      %1212 = vmatpush2.bf16.msra.mxu0 0
      %1213 = vmatprep.subr.bf16.mxu0 0
      %1214 = vmatpush2.bf16.msra.mxu0 0
      %1215 = vmatprep.subr.bf16.mxu0 0
      %1216 = vmatpush2.bf16.msra.mxu0 0
      %1217 = vmatprep.mubr.bf16.mxu0 0
      %1218 = vmatmul.mubr.bf16.gmra.mxu0 %v1171
      %v1219 = vpop.f32.mrf.mxu0
      %v1220 = vadd.f32 0.0, %v1219
      %v1221 = vpop.f32.mrf.mxu0
      %v1222 = vpop.f32.mrf.mxu0
      %v1223 = vadd.f32 0.0, %v1222
      %v1224 = vpop.f32.mrf.mxu0
      %1225 = vmatprep.mubr.bf16.mxu0 0
      %1226 = vmatmul.mubr.bf16.gmra.mxu0 %v1174
      %v1227 = vpop.f32.mrf.mxu0
      %v1228 = vadd.f32 0.0, %v1227
      %v1229 = vpop.f32.mrf.mxu0
      %v1230 = vpop.f32.mrf.mxu0
      %v1231 = vadd.f32 0.0, %v1230
      %v1232 = vpop.f32.mrf.mxu0
      %1233 = vmatprep.mubr.bf16.mxu0 0
      %1234 = vmatmul.mubr.bf16.gmra.mxu0 %v1177
      %v1235 = vpop.f32.mrf.mxu0
      %v1236 = vadd.f32 0.0, %v1235
      %v1237 = vpop.f32.mrf.mxu0
      %v1238 = vpop.f32.mrf.mxu0
      %v1239 = vadd.f32 0.0, %v1238
      %v1240 = vpop.f32.mrf.mxu0
      %1241 = vmatprep.mubr.bf16.mxu0 0
      %1242 = vmatmul.mubr.bf16.gmra.mxu0 %v1180
      %v1243 = vpop.f32.mrf.mxu0
      %v1244 = vadd.f32 0.0, %v1243
      %v1245 = vpop.f32.mrf.mxu0
      %v1246 = vpop.f32.mrf.mxu0
      %v1247 = vadd.f32 0.0, %v1246
      %v1248 = vpop.f32.mrf.mxu0
      %1249 = vdwg.mxu0
      %v1250 = vadd.f32 %v1131, %v1220
      %v1251 = vadd.f32 %v1132, %v1223
      %v1252 = vadd.f32 %v1133, %v1228
      %v1253 = vadd.f32 %v1134, %v1231
      %v1254 = vadd.f32 %v1135, %v1236
      %v1255 = vadd.f32 %v1136, %v1239
      %v1256 = vadd.f32 %v1137, %v1244
      %v1257 = vadd.f32 %v1138, %v1247
      %s1258 = scalar_lea.vmem %s203, 80
      %v1259 = vld [vmem:[%s1258] sm:$0xf]
      %v1260 = vld [vmem:[%s1258 + $0x8] sm:$0xf]
      %v1261 = vld [vmem:[%s1258 + $0x10] sm:$0xf]
      %v1262 = vld [vmem:[%s1258 + $0x18] sm:$0xf]
      %v1263 = vld [vmem:[%s1258 + $0x20] sm:$0xf]
      %v1264 = vld [vmem:[%s1258 + $0x28] sm:$0xf]
      %v1265 = vld [vmem:[%s1258 + $0x30] sm:$0xf]
      %v1266 = vld [vmem:[%s1258 + $0x38] sm:$0xf]
      %s1267 = scalar_lea.vmem %s1, 14
      %v1268 = vld [vmem:[%s1267] sm:$0x3]
      %v1277 = vunpack.c.l.b16 %v1259
      %v1278 = vunpack.c.l.b16 %v1260
      %v1279 = vunpack.c.l.b16 %v1261
      %v1280 = vunpack.c.l.b16 %v1262
      %v1281 = vunpack.c.l.b16 %v1263
      %v1282 = vunpack.c.l.b16 %v1264
      %v1283 = vunpack.c.l.b16 %v1265
      %v1284 = vunpack.c.l.b16 %v1266
      %v1285 = vpack.c.b16 %v1278, %v1277
      %v1286 = vpack.c.b16 %v1280, %v1279
      %v1287 = vpack.c.b16 %v1282, %v1281
      %v1288 = vpack.c.b16 %v1284, %v1283
      %v1290 = vsel %vm256, %v1285, 0
      %v1293 = vsel %vm256, %v1286, 0
      %v1296 = vsel %vm256, %v1287, 0
      %v1299 = vsel %vm256, %v1288, 0
      %v1302 = vsel %vm269, %v1268, 0
      %1304 = vmatprep.subr.bf16.mxu0 0
      %1305 = vmatpush1.bf16.msra.mxu0 0
      %1306 = vmatprep.subr.bf16.mxu0 0
      %1307 = vmatpush1.bf16.msra.mxu0 0
      %1308 = vmatprep.subr.bf16.mxu0 0
      %1309 = vmatpush1.bf16.msra.mxu0 0
      %1310 = vmatprep.subr.bf16.mxu0 0
      %1311 = vmatpush1.bf16.msra.mxu0 0
      %1312 = vmatprep.subr.bf16.mxu0 0
      %1313 = vmatpush1.bf16.msra.mxu0 0
      %1314 = vmatprep.subr.bf16.mxu0 0
      %1315 = vmatpush1.bf16.msra.mxu0 0
      %1316 = vmatprep.subr.bf16.mxu0 0
      %1317 = vmatpush1.bf16.msra.mxu0 0
      %1318 = vmatprep.subr.bf16.mxu0 0
      %1319 = vmatpush1.bf16.msra.mxu0 %v1302
      %1320 = vmatprep.subr.bf16.mxu0 0
      %1321 = vmatpush2.bf16.msra.mxu0 0
      %1322 = vmatprep.subr.bf16.mxu0 0
      %1323 = vmatpush2.bf16.msra.mxu0 0
      %1324 = vmatprep.subr.bf16.mxu0 0
      %1325 = vmatpush2.bf16.msra.mxu0 0
      %1326 = vmatprep.subr.bf16.mxu0 0
      %1327 = vmatpush2.bf16.msra.mxu0 0
      %1328 = vmatprep.subr.bf16.mxu0 0
      %1329 = vmatpush2.bf16.msra.mxu0 0
      %1330 = vmatprep.subr.bf16.mxu0 0
      %1331 = vmatpush2.bf16.msra.mxu0 0
      %1332 = vmatprep.subr.bf16.mxu0 0
      %1333 = vmatpush2.bf16.msra.mxu0 0
      %1334 = vmatprep.subr.bf16.mxu0 0
      %1335 = vmatpush2.bf16.msra.mxu0 0
      %1336 = vmatprep.mubr.bf16.mxu0 0
      %1337 = vmatmul.mubr.bf16.gmra.mxu0 %v1290
      %v1338 = vpop.f32.mrf.mxu0
      %v1339 = vadd.f32 0.0, %v1338
      %v1340 = vpop.f32.mrf.mxu0
      %v1341 = vpop.f32.mrf.mxu0
      %v1342 = vadd.f32 0.0, %v1341
      %v1343 = vpop.f32.mrf.mxu0
      %1344 = vmatprep.mubr.bf16.mxu0 0
      %1345 = vmatmul.mubr.bf16.gmra.mxu0 %v1293
      %v1346 = vpop.f32.mrf.mxu0
      %v1347 = vadd.f32 0.0, %v1346
      %v1348 = vpop.f32.mrf.mxu0
      %v1349 = vpop.f32.mrf.mxu0
      %v1350 = vadd.f32 0.0, %v1349
      %v1351 = vpop.f32.mrf.mxu0
      %1352 = vmatprep.mubr.bf16.mxu0 0
      %1353 = vmatmul.mubr.bf16.gmra.mxu0 %v1296
      %v1354 = vpop.f32.mrf.mxu0
      %v1355 = vadd.f32 0.0, %v1354
      %v1356 = vpop.f32.mrf.mxu0
      %v1357 = vpop.f32.mrf.mxu0
      %v1358 = vadd.f32 0.0, %v1357
      %v1359 = vpop.f32.mrf.mxu0
      %1360 = vmatprep.mubr.bf16.mxu0 0
      %1361 = vmatmul.mubr.bf16.gmra.mxu0 %v1299
      %v1362 = vpop.f32.mrf.mxu0
      %v1363 = vadd.f32 0.0, %v1362
      %v1364 = vpop.f32.mrf.mxu0
      %v1365 = vpop.f32.mrf.mxu0
      %v1366 = vadd.f32 0.0, %v1365
      %v1367 = vpop.f32.mrf.mxu0
      %1368 = vdwg.mxu0
      %v1369 = vadd.f32 %v1250, %v1339
      %v1370 = vadd.f32 %v1251, %v1342
      %v1371 = vadd.f32 %v1252, %v1347
      %v1372 = vadd.f32 %v1253, %v1350
      %v1373 = vadd.f32 %v1254, %v1355
      %v1374 = vadd.f32 %v1255, %v1358
      %v1375 = vadd.f32 %v1256, %v1363
      %v1376 = vadd.f32 %v1257, %v1366
      %v1377 = vld [vmem:[%s1139] sm:$0xf]
      %v1378 = vld [vmem:[%s1139 + $0x4] sm:$0x1]
      %v1379 = vld [vmem:[%s1139 + $0x8] sm:$0xf]
      %v1380 = vld [vmem:[%s1139 + $0xc] sm:$0x1]
      %v1381 = vld [vmem:[%s1139 + $0x10] sm:$0xf]
      %v1382 = vld [vmem:[%s1139 + $0x14] sm:$0x1]
      %v1383 = vld [vmem:[%s1139 + $0x18] sm:$0xf]
      %v1384 = vld [vmem:[%s1139 + $0x1c] sm:$0x1]
      %v1385 = vld [vmem:[%s1139 + $0x20] sm:$0xf]
      %v1386 = vld [vmem:[%s1139 + $0x24] sm:$0x1]
      %v1387 = vld [vmem:[%s1139 + $0x28] sm:$0xf]
      %v1388 = vld [vmem:[%s1139 + $0x2c] sm:$0x1]
      %v1389 = vld [vmem:[%s1139 + $0x30] sm:$0xf]
      %v1390 = vld [vmem:[%s1139 + $0x34] sm:$0x1]
      %v1391 = vld [vmem:[%s1139 + $0x38] sm:$0xf]
      %v1392 = vld [vmem:[%s1139 + $0x3c] sm:$0x1]
      %v1394 = vshrl.u32 %v1377, 16
      %v1396 = vrot.slane %v1394, 4
      %v1397 = vshll.u32 %v1377, 16
      %v1399 = vrot.slane %v1397, 5
      %v1400 = vor.u32 %v1396, %v1399
      %v1401 = vrot.slane %v1400, 4
      %v1403 = vshll.u32 %v1378, 16
      %v1405 = vrot.slane %v1403, 5
      %v1406 = vsel %vm456, %v1401, %v1405
      %v1408 = vshrl.u32 %v1379, 16
      %v1410 = vrot.slane %v1408, 4
      %v1411 = vshll.u32 %v1379, 16
      %v1413 = vrot.slane %v1411, 5
      %v1414 = vor.u32 %v1410, %v1413
      %v1415 = vrot.slane %v1414, 4
      %v1417 = vshll.u32 %v1380, 16
      %v1419 = vrot.slane %v1417, 5
      %v1420 = vsel %vm456, %v1415, %v1419
      %v1422 = vshrl.u32 %v1381, 16
      %v1424 = vrot.slane %v1422, 4
      %v1425 = vshll.u32 %v1381, 16
      %v1427 = vrot.slane %v1425, 5
      %v1428 = vor.u32 %v1424, %v1427
      %v1429 = vrot.slane %v1428, 4
      %v1431 = vshll.u32 %v1382, 16
      %v1433 = vrot.slane %v1431, 5
      %v1434 = vsel %vm456, %v1429, %v1433
      %v1436 = vshrl.u32 %v1383, 16
      %v1438 = vrot.slane %v1436, 4
      %v1439 = vshll.u32 %v1383, 16
      %v1441 = vrot.slane %v1439, 5
      %v1442 = vor.u32 %v1438, %v1441
      %v1443 = vrot.slane %v1442, 4
      %v1445 = vshll.u32 %v1384, 16
      %v1447 = vrot.slane %v1445, 5
      %v1448 = vsel %vm456, %v1443, %v1447
      %v1450 = vshrl.u32 %v1385, 16
      %v1452 = vrot.slane %v1450, 4
      %v1453 = vshll.u32 %v1385, 16
      %v1455 = vrot.slane %v1453, 5
      %v1456 = vor.u32 %v1452, %v1455
      %v1457 = vrot.slane %v1456, 4
      %v1459 = vshll.u32 %v1386, 16
      %v1461 = vrot.slane %v1459, 5
      %v1462 = vsel %vm456, %v1457, %v1461
      %v1464 = vshrl.u32 %v1387, 16
      %v1466 = vrot.slane %v1464, 4
      %v1467 = vshll.u32 %v1387, 16
      %v1469 = vrot.slane %v1467, 5
      %v1470 = vor.u32 %v1466, %v1469
      %v1471 = vrot.slane %v1470, 4
      %v1473 = vshll.u32 %v1388, 16
      %v1475 = vrot.slane %v1473, 5
      %v1476 = vsel %vm456, %v1471, %v1475
      %v1478 = vshrl.u32 %v1389, 16
      %v1480 = vrot.slane %v1478, 4
      %v1481 = vshll.u32 %v1389, 16
      %v1483 = vrot.slane %v1481, 5
      %v1484 = vor.u32 %v1480, %v1483
      %v1485 = vrot.slane %v1484, 4
      %v1487 = vshll.u32 %v1390, 16
      %v1489 = vrot.slane %v1487, 5
      %v1490 = vsel %vm456, %v1485, %v1489
      %v1492 = vshrl.u32 %v1391, 16
      %v1494 = vrot.slane %v1492, 4
      %v1495 = vshll.u32 %v1391, 16
      %v1497 = vrot.slane %v1495, 5
      %v1498 = vor.u32 %v1494, %v1497
      %v1499 = vrot.slane %v1498, 4
      %v1501 = vshll.u32 %v1392, 16
      %v1503 = vrot.slane %v1501, 5
      %v1504 = vsel %vm456, %v1499, %v1503
      %s1505 = scalar_lea.vmem %s1, 16
      %v1506 = vld [vmem:[%s1505] sm:$0x3]
      %v1507 = vunpack.c.l.b16 %v1406
      %v1508 = vunpack.c.l.b16 %v1420
      %v1509 = vunpack.c.l.b16 %v1434
      %v1510 = vunpack.c.l.b16 %v1448
      %v1511 = vunpack.c.l.b16 %v1462
      %v1512 = vunpack.c.l.b16 %v1476
      %v1513 = vunpack.c.l.b16 %v1490
      %v1514 = vunpack.c.l.b16 %v1504
      %v1515 = vpack.c.b16 %v1508, %v1507
      %v1516 = vpack.c.b16 %v1510, %v1509
      %v1517 = vpack.c.b16 %v1512, %v1511
      %v1518 = vpack.c.b16 %v1514, %v1513
      %v1520 = vsel %vm256, %v1515, 0
      %v1523 = vsel %vm256, %v1516, 0
      %v1526 = vsel %vm256, %v1517, 0
      %v1529 = vsel %vm256, %v1518, 0
      %v1532 = vsel %vm269, %v1506, 0
      %1534 = vmatprep.subr.bf16.mxu0 0
      %1535 = vmatpush1.bf16.msra.mxu0 0
      %1536 = vmatprep.subr.bf16.mxu0 0
      %1537 = vmatpush1.bf16.msra.mxu0 0
      %1538 = vmatprep.subr.bf16.mxu0 0
      %1539 = vmatpush1.bf16.msra.mxu0 0
      %1540 = vmatprep.subr.bf16.mxu0 0
      %1541 = vmatpush1.bf16.msra.mxu0 0
      %1542 = vmatprep.subr.bf16.mxu0 0
      %1543 = vmatpush1.bf16.msra.mxu0 0
      %1544 = vmatprep.subr.bf16.mxu0 0
      %1545 = vmatpush1.bf16.msra.mxu0 0
      %1546 = vmatprep.subr.bf16.mxu0 0
      %1547 = vmatpush1.bf16.msra.mxu0 0
      %1548 = vmatprep.subr.bf16.mxu0 0
      %1549 = vmatpush1.bf16.msra.mxu0 %v1532
      %1550 = vmatprep.subr.bf16.mxu0 0
      %1551 = vmatpush2.bf16.msra.mxu0 0
      %1552 = vmatprep.subr.bf16.mxu0 0
      %1553 = vmatpush2.bf16.msra.mxu0 0
      %1554 = vmatprep.subr.bf16.mxu0 0
      %1555 = vmatpush2.bf16.msra.mxu0 0
      %1556 = vmatprep.subr.bf16.mxu0 0
      %1557 = vmatpush2.bf16.msra.mxu0 0
      %1558 = vmatprep.subr.bf16.mxu0 0
      %1559 = vmatpush2.bf16.msra.mxu0 0
      %1560 = vmatprep.subr.bf16.mxu0 0
      %1561 = vmatpush2.bf16.msra.mxu0 0
      %1562 = vmatprep.subr.bf16.mxu0 0
      %1563 = vmatpush2.bf16.msra.mxu0 0
      %1564 = vmatprep.subr.bf16.mxu0 0
      %1565 = vmatpush2.bf16.msra.mxu0 0
      %1566 = vmatprep.mubr.bf16.mxu0 0
      %1567 = vmatmul.mubr.bf16.gmra.mxu0 %v1520
      %v1568 = vpop.f32.mrf.mxu0
      %v1569 = vadd.f32 0.0, %v1568
      %v1570 = vpop.f32.mrf.mxu0
      %v1571 = vpop.f32.mrf.mxu0
      %v1572 = vadd.f32 0.0, %v1571
      %v1573 = vpop.f32.mrf.mxu0
      %1574 = vmatprep.mubr.bf16.mxu0 0
      %1575 = vmatmul.mubr.bf16.gmra.mxu0 %v1523
      %v1576 = vpop.f32.mrf.mxu0
      %v1577 = vadd.f32 0.0, %v1576
      %v1578 = vpop.f32.mrf.mxu0
      %v1579 = vpop.f32.mrf.mxu0
      %v1580 = vadd.f32 0.0, %v1579
      %v1581 = vpop.f32.mrf.mxu0
      %1582 = vmatprep.mubr.bf16.mxu0 0
      %1583 = vmatmul.mubr.bf16.gmra.mxu0 %v1526
      %v1584 = vpop.f32.mrf.mxu0
      %v1585 = vadd.f32 0.0, %v1584
      %v1586 = vpop.f32.mrf.mxu0
      %v1587 = vpop.f32.mrf.mxu0
      %v1588 = vadd.f32 0.0, %v1587
      %v1589 = vpop.f32.mrf.mxu0
      %1590 = vmatprep.mubr.bf16.mxu0 0
      %1591 = vmatmul.mubr.bf16.gmra.mxu0 %v1529
      %v1592 = vpop.f32.mrf.mxu0
      %v1593 = vadd.f32 0.0, %v1592
      %v1594 = vpop.f32.mrf.mxu0
      %v1595 = vpop.f32.mrf.mxu0
      %v1596 = vadd.f32 0.0, %v1595
      %v1597 = vpop.f32.mrf.mxu0
      %1598 = vdwg.mxu0
      %v1599 = vadd.f32 %v1369, %v1569
      %v1600 = vadd.f32 %v1370, %v1572
      %v1601 = vadd.f32 %v1371, %v1577
      %v1602 = vadd.f32 %v1372, %v1580
      %v1603 = vadd.f32 %v1373, %v1585
      %v1604 = vadd.f32 %v1374, %v1588
      %v1605 = vadd.f32 %v1375, %v1593
      %v1606 = vadd.f32 %v1376, %v1596
      %vm1607 = vcmask 64512
      %1608 = vst.msk [vmem:[%s208] sm:$0xff] %vm1607, %v1599
      %1609 = vst.msk [vmem:[%s208 + $0x8] sm:$0xff] %vm1607, %v1600
      %1610 = vst.msk [vmem:[%s208 + $0x10] sm:$0xff] %vm1607, %v1601
      %1611 = vst.msk [vmem:[%s208 + $0x18] sm:$0xff] %vm1607, %v1602
      %1612 = vst.msk [vmem:[%s208 + $0x20] sm:$0xff] %vm1607, %v1603
      %1613 = vst.msk [vmem:[%s208 + $0x28] sm:$0xff] %vm1607, %v1604
      %1614 = vst.msk [vmem:[%s208 + $0x30] sm:$0xff] %vm1607, %v1605
      %1615 = vst.msk [vmem:[%s208 + $0x38] sm:$0xff] %vm1607, %v1606
      %v1616 = vsel %vm1607, %v1599, 0.0
      %v1617 = vsel %vm1607, %v1600, 0.0
      %v1618 = vadd.f32 %v1616, %v1617
      %v1619 = vsel %vm1607, %v1601, 0.0
      %v1620 = vadd.f32 %v1618, %v1619
      %v1621 = vsel %vm1607, %v1602, 0.0
      %v1622 = vadd.f32 %v1620, %v1621
      %v1623 = vsel %vm1607, %v1603, 0.0
      %v1624 = vadd.f32 %v1622, %v1623
      %v1625 = vsel %vm1607, %v1604, 0.0
      %v1626 = vadd.f32 %v1624, %v1625
      %v1627 = vsel %vm1607, %v1605, 0.0
      %v1628 = vadd.f32 %v1626, %v1627
      %v1629 = vsel %vm1607, %v1606, 0.0
      %v1630 = vadd.f32 %v1628, %v1629
      %v1631 = vrot.slane %v1630, 4
      %v1632 = vadd.f32 %v1630, %v1631
      %v1633 = vrot.slane %v1632, 2
      %v1634 = vadd.f32 %v1632, %v1633
      %v1635 = vrot.slane %v1634, 1
      %v1636 = vadd.f32 %v1634, %v1635
      %vm1637 = vcmask 57344
      %1638 = vst.msk [vmem:[%s211] sm:$0x1] %vm1637, %v1636
      %v1639 = vmul.f32 %v1599, %v1599
      %v1640 = vmul.f32 %v1600, %v1600
      %v1641 = vmul.f32 %v1601, %v1601
      %v1642 = vmul.f32 %v1602, %v1602
      %v1643 = vmul.f32 %v1603, %v1603
      %v1644 = vmul.f32 %v1604, %v1604
      %v1645 = vmul.f32 %v1605, %v1605
      %v1646 = vmul.f32 %v1606, %v1606
      %v1647 = vsel %vm1607, %v1639, 0.0
      %v1648 = vsel %vm1607, %v1640, 0.0
      %v1649 = vadd.f32 %v1647, %v1648
      %v1650 = vsel %vm1607, %v1641, 0.0
      %v1651 = vadd.f32 %v1649, %v1650
      %v1652 = vsel %vm1607, %v1642, 0.0
      %v1653 = vadd.f32 %v1651, %v1652
      %v1654 = vsel %vm1607, %v1643, 0.0
      %v1655 = vadd.f32 %v1653, %v1654
      %v1656 = vsel %vm1607, %v1644, 0.0
      %v1657 = vadd.f32 %v1655, %v1656
      %v1658 = vsel %vm1607, %v1645, 0.0
      %v1659 = vadd.f32 %v1657, %v1658
      %v1660 = vsel %vm1607, %v1646, 0.0
      %v1661 = vadd.f32 %v1659, %v1660
      %v1662 = vrot.slane %v1661, 4
      %v1663 = vadd.f32 %v1661, %v1662
      %v1664 = vrot.slane %v1663, 2
      %v1665 = vadd.f32 %v1663, %v1664
      %v1666 = vrot.slane %v1665, 1
      %v1667 = vadd.f32 %v1665, %v1666
      %1668 = vst.msk [vmem:[%s214] sm:$0x1] %vm1637, %v1667
      %p1669 = scmp.lt.s32.totalorder %s16, 1
      %s1670 = scalar_select %p1669, %s16, 1
      %s1671 = smul.addr %s1670, 8
      %s1672 = smul.addr %s1671, 8
      %s1673 = scalar_lea.vmem %s2, %s1672
      %p1674 = scmp.lt.s32.totalorder %s16, 1
      %s1675 = scalar_select %p1674, %s16, 1
      %s1676 = scalar_lea.vmem %s3, %s1675
      %p1677 = scmp.lt.s32.totalorder %s16, 1
      %s1678 = scalar_select %p1677, %s16, 1
      %s1679 = scalar_lea.vmem %s4, %s1678
      // Predicated region
      $region29: #{block_forward.3} parent=27 // pred_check
        %p1680 = pneg %p81
      $region30: #{block_forward.3} parent=27 // pred_check_branch
        %1682 = sbr.rel (%p1680) target = $region32
      $region31: #{block_forward.3} parent=27 // pred_region
        _
      $region32: #{block_forward.3} parent=27 // pred_fallthru
        _
      // Predicated region
      $region33: #{block_forward.3} parent=27 // pred_check
        %p1683 = pneg %p107
      $region34: #{block_forward.3} parent=27 // pred_check_branch
        %1685 = sbr.rel (%p1683) target = $region36
      $region35: #{block_forward.3} parent=27 // pred_region
        _
      $region36: #{block_forward.3} parent=27 // pred_fallthru
        _
      // Predicated region
      $region37: #{block_forward.3} parent=27 // pred_check
        %p1686 = pneg %p133
      $region38: #{block_forward.3} parent=27 // pred_check_branch
        %1688 = sbr.rel (%p1686) target = $region40
      $region39: #{block_forward.3} parent=27 // pred_region
        _
      $region40: #{block_forward.3} parent=27 // pred_fallthru
        _
    $region28: #{block_forward.3} parent=5 // pred_fallthru
      _
    %p1689 = scmp.le.s32.totalorder 2, %s11
    // Predicated region
    $region41: #{block_forward.3} parent=5 // pred_check
      %p1690 = pneg %p1689
    $region42: #{block_forward.3} parent=5 // pred_check_branch
      %1692 = sbr.rel (%p1690) target = $region44
    $region43: #{block_forward.3} parent=5 // pred_region
      %s1693 = ssub.s32 %s11, 2
      // Predicated region
      $region45: #{block_forward.3} parent=43 // pred_check
        %p1694 = pneg %p87
      $region46: #{block_forward.3} parent=43 // pred_check_branch
        %1696 = sbr.rel (%p1694) target = $region48
      $region47: #{block_forward.3} parent=43 // pred_region
        %p1697 = scmp.lt.s32.totalorder %s17, 1
        %s1698 = scalar_select %p1697, %s17, 1
        %s1699 = smul.addr %s1698, 8
        %s1700 = smul.addr %s1699, 8
        %s1701 = scalar_lea.vmem %s2, %s1700
      $region48: #{block_forward.3} parent=43 // pred_fallthru
        _
      // Predicated region
      $region49: #{block_forward.3} parent=43 // pred_check
        %p1702 = pneg %p113
      $region50: #{block_forward.3} parent=43 // pred_check_branch
        %1704 = sbr.rel (%p1702) target = $region52
      $region51: #{block_forward.3} parent=43 // pred_region
        %p1705 = scmp.lt.s32.totalorder %s17, 1
        %s1706 = scalar_select %p1705, %s17, 1
        %s1707 = scalar_lea.vmem %s3, %s1706
      $region52: #{block_forward.3} parent=43 // pred_fallthru
        _
      // Predicated region
      $region53: #{block_forward.3} parent=43 // pred_check
        %p1708 = pneg %p139
      $region54: #{block_forward.3} parent=43 // pred_check_branch
        %1710 = sbr.rel (%p1708) target = $region56
      $region55: #{block_forward.3} parent=43 // pred_region
        %p1711 = scmp.lt.s32.totalorder %s17, 1
        %s1712 = scalar_select %p1711, %s17, 1
        %s1713 = scalar_lea.vmem %s4, %s1712
      $region56: #{block_forward.3} parent=43 // pred_fallthru
        _
    $region44: #{block_forward.3} parent=5 // pred_fallthru
      _
  $region6: #{block_forward.3} parent=0 // loop_footer
    %s15 = sadd.s32 1, %s11
  $region7: #{block_forward.3} parent=0 // loop_footer_branch
    %10 = sbr.rel target = $region3
  $region8: #{block_forward.3} parent=0 // loop_exit
    _

// kernel: block_forward.4
$region0: #{block_forward.4}
  #allocation0 [shape = 'u32[]', space=smem, size = 0x4, offset = 0x4, fixed_abs, tag = 'smem constant byte address 0x4 - core index']
  #allocation1 [shape = 'u32[144,128]{1,0:T(1,128)}', space=vmem, size = 0x12000, scoped, tag = 'internal scratch']
  #allocation2 [shape = 'bf16[10,10,8]{2,1,0:T(8,128)(2,1)}', space=vmem, size = 0xa000, scoped, tag = 'scratch operand']
  %s0 = inlined_call_operand.vmem [shape: f32[2,8,8,8], index: 0, kind: input, shape index: {}]
  %s1 = inlined_call_operand.vmem [shape: f32[1,1,8], index: 1, kind: input, shape index: {}]
  %s2 = inlined_call_operand.vmem [shape: f32[1,1,8], index: 2, kind: input, shape index: {}]
  %s3 = inlined_call_operand.vmem [shape: bf16[9,8,8], index: 3, kind: input, shape index: {}]
  %s4 = inlined_call_operand.vmem [shape: f32[2,8,8,8], index: 4, kind: output, shape index: {0}]
  %s5 = inlined_call_operand.vmem [shape: f32[2,1,8], index: 5, kind: output, shape index: {1}]
  %s6 = inlined_call_operand.vmem [shape: f32[2,1,8], index: 6, kind: output, shape index: {2}]
  %7 = xla_tuple %s4, %s5, %s6
  %s8 = sld [smem:[#allocation0]]
  $region65: #{block_forward.4} parent=0
    _
  %s10 = ssub.s32 1, %s8
  %s11 = scalar_select 0, %s10, %s8
  loop: start=0, step=1, limit=4
  $region2: #{block_forward.4} parent=0 // loop_pre_header
    _
  $region3: #{block_forward.4} parent=0 // loop_header
    %s13 = sphi 0, %s17
    %p14 = scmp.ge.s32.totalorder %s13, 4
    %s23 = sphi 0, %s25
    %s26 = sphi 0, %s23
    %s27 = sphi 0, %s26
    %s43 = sphi 0, %s27
    %s47 = sphi 0, %s47
    %s49 = sphi 0, %s47
    %s50 = sphi 0, %s49
    %s64 = sphi 0, %s50
    %s68 = sphi 0, %s68
    %s70 = sphi 0, %s68
    %s71 = sphi 0, %s70
    %s85 = sphi 0, %s71
    %s89 = sphi 0, %s89
    %s91 = sphi 0, %s89
    %s92 = sphi 0, %s91
    %s106 = sphi 0, %s92
    %s112 = sphi 0, %s114
    %s115 = sphi 0, %s112
    %s116 = sphi 0, %s115
    %s132 = sphi 0, %s116
    %s138 = sphi 0, %s140
    %s141 = sphi 0, %s138
    %s142 = sphi 0, %s141
    %s158 = sphi 0, %s142
    %s164 = sphi 0, %s166
    %s167 = sphi 0, %s164
    %s168 = sphi 0, %s167
    %s184 = sphi 0, %s168
  $region4: #{block_forward.4} parent=0 // loop_header_branch
    %16 = sbr.rel (%p14) target = $region8
  $region5: #{block_forward.4} parent=0 // loop_body
    %s18 = ssub.s32 %s13, 1
    %s19 = ssub.s32 %s13, 2
    %s20 = sadd.s32 %s13, 1
    %s21 = ssub.s32 %s13, %s20
    %p22 = scmp.eq.s32.totalorder %s21, 0
    %s24 = sadd.s32 %s23, 1
    %s25 = scalar_select %p22, %s23, %s24
    %p28 = pneg %p22
    %p29 = scmp.eq.s32.totalorder %s13, 1
    %p30 = por %p28, %p29
    %p31 = scmp.ne.s32.totalorder %s23, %s26
    %p32 = scmp.eq.s32.totalorder %s13, 0
    %p33 = por %p31, %p32
    %p34 = scmp.ne.s32.totalorder %s23, %s26
    %p35 = scmp.eq.s32.totalorder %s18, 1
    %p36 = por %p34, %p35
    %p37 = scmp.ne.s32.totalorder %s26, %s27
    %p38 = scmp.eq.s32.totalorder %s18, 0
    %p39 = por %p37, %p38
    %p40 = scmp.ne.s32.totalorder %s26, %s27
    %p41 = scmp.eq.s32.totalorder %s19, 1
    %p42 = por %p40, %p41
    %p44 = scmp.ne.s32.totalorder %s27, %s43
    %p45 = scmp.eq.s32.totalorder %s19, 0
    %p46 = por %p44, %p45
    %s48 = sadd.s32 %s47, 1
    %p51 = scmp.eq.s32.totalorder %s13, 1
    %p52 = scmp.ne.s32.totalorder %s47, %s49
    %p53 = scmp.eq.s32.totalorder %s13, 0
    %p54 = por %p52, %p53
    %p55 = scmp.ne.s32.totalorder %s47, %s49
    %p56 = scmp.eq.s32.totalorder %s18, 1
    %p57 = por %p55, %p56
    %p58 = scmp.ne.s32.totalorder %s49, %s50
    %p59 = scmp.eq.s32.totalorder %s18, 0
    %p60 = por %p58, %p59
    %p61 = scmp.ne.s32.totalorder %s49, %s50
    %p62 = scmp.eq.s32.totalorder %s19, 1
    %p63 = por %p61, %p62
    %p65 = scmp.ne.s32.totalorder %s50, %s64
    %p66 = scmp.eq.s32.totalorder %s19, 0
    %p67 = por %p65, %p66
    %s69 = sadd.s32 %s68, 1
    %p72 = scmp.eq.s32.totalorder %s13, 1
    %p73 = scmp.ne.s32.totalorder %s68, %s70
    %p74 = scmp.eq.s32.totalorder %s13, 0
    %p75 = por %p73, %p74
    %p76 = scmp.ne.s32.totalorder %s68, %s70
    %p77 = scmp.eq.s32.totalorder %s18, 1
    %p78 = por %p76, %p77
    %p79 = scmp.ne.s32.totalorder %s70, %s71
    %p80 = scmp.eq.s32.totalorder %s18, 0
    %p81 = por %p79, %p80
    %p82 = scmp.ne.s32.totalorder %s70, %s71
    %p83 = scmp.eq.s32.totalorder %s19, 1
    %p84 = por %p82, %p83
    %p86 = scmp.ne.s32.totalorder %s71, %s85
    %p87 = scmp.eq.s32.totalorder %s19, 0
    %p88 = por %p86, %p87
    %s90 = sadd.s32 %s89, 1
    %p93 = scmp.eq.s32.totalorder %s13, 1
    %p94 = scmp.ne.s32.totalorder %s89, %s91
    %p95 = scmp.eq.s32.totalorder %s13, 0
    %p96 = por %p94, %p95
    %p97 = scmp.ne.s32.totalorder %s89, %s91
    %p98 = scmp.eq.s32.totalorder %s18, 1
    %p99 = por %p97, %p98
    %p100 = scmp.ne.s32.totalorder %s91, %s92
    %p101 = scmp.eq.s32.totalorder %s18, 0
    %p102 = por %p100, %p101
    %p103 = scmp.ne.s32.totalorder %s91, %s92
    %p104 = scmp.eq.s32.totalorder %s19, 1
    %p105 = por %p103, %p104
    %p107 = scmp.ne.s32.totalorder %s92, %s106
    %p108 = scmp.eq.s32.totalorder %s19, 0
    %p109 = por %p107, %p108
    %s110 = ssub.s32 %s13, %s20
    %p111 = scmp.eq.s32.totalorder %s110, 0
    %s113 = sadd.s32 %s112, 1
    %s114 = scalar_select %p111, %s112, %s113
    %p117 = pneg %p111
    %p118 = scmp.eq.s32.totalorder %s13, 1
    %p119 = por %p117, %p118
    %p120 = scmp.ne.s32.totalorder %s112, %s115
    %p121 = scmp.eq.s32.totalorder %s13, 0
    %p122 = por %p120, %p121
    %p123 = scmp.ne.s32.totalorder %s112, %s115
    %p124 = scmp.eq.s32.totalorder %s18, 1
    %p125 = por %p123, %p124
    %p126 = scmp.ne.s32.totalorder %s115, %s116
    %p127 = scmp.eq.s32.totalorder %s18, 0
    %p128 = por %p126, %p127
    %p129 = scmp.ne.s32.totalorder %s115, %s116
    %p130 = scmp.eq.s32.totalorder %s19, 1
    %p131 = por %p129, %p130
    %p133 = scmp.ne.s32.totalorder %s116, %s132
    %p134 = scmp.eq.s32.totalorder %s19, 0
    %p135 = por %p133, %p134
    %s136 = ssub.s32 %s13, %s20
    %p137 = scmp.eq.s32.totalorder %s136, 0
    %s139 = sadd.s32 %s138, 1
    %s140 = scalar_select %p137, %s138, %s139
    %p143 = pneg %p137
    %p144 = scmp.eq.s32.totalorder %s13, 1
    %p145 = por %p143, %p144
    %p146 = scmp.ne.s32.totalorder %s138, %s141
    %p147 = scmp.eq.s32.totalorder %s13, 0
    %p148 = por %p146, %p147
    %p149 = scmp.ne.s32.totalorder %s138, %s141
    %p150 = scmp.eq.s32.totalorder %s18, 1
    %p151 = por %p149, %p150
    %p152 = scmp.ne.s32.totalorder %s141, %s142
    %p153 = scmp.eq.s32.totalorder %s18, 0
    %p154 = por %p152, %p153
    %p155 = scmp.ne.s32.totalorder %s141, %s142
    %p156 = scmp.eq.s32.totalorder %s19, 1
    %p157 = por %p155, %p156
    %p159 = scmp.ne.s32.totalorder %s142, %s158
    %p160 = scmp.eq.s32.totalorder %s19, 0
    %p161 = por %p159, %p160
    %s162 = ssub.s32 %s13, %s20
    %p163 = scmp.eq.s32.totalorder %s162, 0
    %s165 = sadd.s32 %s164, 1
    %s166 = scalar_select %p163, %s164, %s165
    %p169 = pneg %p163
    %p170 = scmp.eq.s32.totalorder %s13, 1
    %p171 = por %p169, %p170
    %p172 = scmp.ne.s32.totalorder %s164, %s167
    %p173 = scmp.eq.s32.totalorder %s13, 0
    %p174 = por %p172, %p173
    %p175 = scmp.ne.s32.totalorder %s164, %s167
    %p176 = scmp.eq.s32.totalorder %s18, 1
    %p177 = por %p175, %p176
    %p178 = scmp.ne.s32.totalorder %s167, %s168
    %p179 = scmp.eq.s32.totalorder %s18, 0
    %p180 = por %p178, %p179
    %p181 = scmp.ne.s32.totalorder %s167, %s168
    %p182 = scmp.eq.s32.totalorder %s19, 1
    %p183 = por %p181, %p182
    %p185 = scmp.ne.s32.totalorder %s168, %s184
    %p186 = scmp.eq.s32.totalorder %s19, 0
    %p187 = por %p185, %p186
    %p188 = scmp.le.s32.totalorder 1, %s13
    %p189 = scmp.lt.s32.totalorder %s13, 3
    %p190 = pnand %p188, %p189
    %p191 = pneg %p190
    // Predicated region
    $region9: #{block_forward.4} parent=5 // pred_check
      _
    $region10: #{block_forward.4} parent=5 // pred_check_branch
      %193 = sbr.rel (%p190) target = $region12
    $region11: #{block_forward.4} parent=5 // pred_region
      %s194 = ssub.s32 %s13, 1
      // Predicated region
      $region13: #{block_forward.4} parent=11 // pred_check
        %p195 = pneg %p60
      $region14: #{block_forward.4} parent=11 // pred_check_branch
        %197 = sbr.rel (%p195) target = $region16
      $region15: #{block_forward.4} parent=11 // pred_region
        _
      $region16: #{block_forward.4} parent=11 // pred_fallthru
        _
      // Predicated region
      $region17: #{block_forward.4} parent=11 // pred_check
        %p198 = pneg %p81
      $region18: #{block_forward.4} parent=11 // pred_check_branch
        %200 = sbr.rel (%p198) target = $region20
      $region19: #{block_forward.4} parent=11 // pred_region
        _
      $region20: #{block_forward.4} parent=11 // pred_fallthru
        _
      // Predicated region
      $region21: #{block_forward.4} parent=11 // pred_check
        %p201 = pneg %p102
      $region22: #{block_forward.4} parent=11 // pred_check_branch
        %203 = sbr.rel (%p201) target = $region24
      $region23: #{block_forward.4} parent=11 // pred_region
        _
      $region24: #{block_forward.4} parent=11 // pred_fallthru
        _
    $region12: #{block_forward.4} parent=5 // pred_fallthru
      _
    %p204 = scmp.lt.s32.totalorder %s13, 2
    // Predicated region
    $region25: #{block_forward.4} parent=5 // pred_check
      %p205 = pneg %p204
    $region26: #{block_forward.4} parent=5 // pred_check_branch
      %207 = sbr.rel (%p205) target = $region28
    $region27: #{block_forward.4} parent=5 // pred_region
      // Predicated region
      $region29: #{block_forward.4} parent=27 // pred_check
        %p208 = pneg %p33
      $region30: #{block_forward.4} parent=27 // pred_check_branch
        %210 = sbr.rel (%p208) target = $region32
      $region31: #{block_forward.4} parent=27 // pred_region
        %p211 = scmp.lt.s32.totalorder %s13, 1
        %s212 = scalar_select %p211, %s13, 1
        %s213 = smul.addr %s212, 8
        %s214 = smul.addr %s213, 8
        %s215 = scalar_lea.vmem %s0, %s214
      $region32: #{block_forward.4} parent=27 // pred_fallthru
        _
    $region28: #{block_forward.4} parent=5 // pred_fallthru
      _
    %p216 = scmp.le.s32.totalorder 1, %s13
    %p217 = scmp.lt.s32.totalorder %s13, 3
    %p218 = pnand %p216, %p217
    %p219 = pneg %p218
    // Predicated region
    $region33: #{block_forward.4} parent=5 // pred_check
      _
    $region34: #{block_forward.4} parent=5 // pred_check_branch
      %221 = sbr.rel (%p218) target = $region36
    $region35: #{block_forward.4} parent=5 // pred_region
      %s222 = ssub.s32 %s13, 1
      %p223 = scmp.lt.s32.totalorder %s18, 1
      %s224 = scalar_select %p223, %s18, 1
      %s225 = smul.addr %s224, 8
      %s226 = smul.addr %s225, 8
      %s227 = scalar_lea.vmem %s0, %s226
      %p228 = pneg %p39
      %p229 = pneg %p36
      %p230 = pneg %p60
      %p231 = pneg %p57
      %p232 = pneg %p81
      %p233 = pneg %p78
      %p234 = pneg %p102
      %p235 = pneg %p99
      %p236 = pneg %p128
      %p237 = pneg %p125
      %p238 = scmp.lt.s32.totalorder %s18, 1
      %s239 = scalar_select %p238, %s18, 1
      %s240 = smul.addr %s239, 8
      %s241 = smul.addr %s240, 8
      %s242 = scalar_lea.vmem %s4, %s241
      %p243 = pneg %p154
      %p244 = pneg %p151
      %p245 = scmp.lt.s32.totalorder %s18, 1
      %s246 = scalar_select %p245, %s18, 1
      %s247 = scalar_lea.vmem %s5, %s246
      %p248 = pneg %p180
      %p249 = pneg %p177
      %p250 = scmp.lt.s32.totalorder %s18, 1
      %s251 = scalar_select %p250, %s18, 1
      %s252 = scalar_lea.vmem %s6, %s251
      %p253 = scmp.lt.s32.totalorder %s18, 1
      %s254 = scalar_select %p253, %s18, 1
      %s255 = smul.addr %s254, 8
      %s256 = smul.addr %s255, 8
      %s257 = scalar_lea.vmem %s0, %s256
      %p258 = scmp.lt.s32.totalorder %s18, 1
      %s259 = scalar_select %p258, %s18, 1
      %s260 = smul.addr %s259, 8
      %s261 = smul.addr %s260, 8
      %s262 = scalar_lea.vmem %s4, %s261
      %p263 = scmp.lt.s32.totalorder %s18, 1
      %s264 = scalar_select %p263, %s18, 1
      %s265 = scalar_lea.vmem %s5, %s264
      %p266 = scmp.lt.s32.totalorder %s18, 1
      %s267 = scalar_select %p266, %s18, 1
      %s268 = scalar_lea.vmem %s6, %s267
      %v270 = vld [vmem:[%s257] sm:$0xff]
      %v271 = vld [vmem:[%s257 + $0x8] sm:$0xff]
      %v272 = vld [vmem:[%s257 + $0x10] sm:$0xff]
      %v273 = vld [vmem:[%s257 + $0x18] sm:$0xff]
      %v274 = vld [vmem:[%s257 + $0x20] sm:$0xff]
      %v275 = vld [vmem:[%s257 + $0x28] sm:$0xff]
      %v276 = vld [vmem:[%s257 + $0x30] sm:$0xff]
      %v277 = vld [vmem:[%s257 + $0x38] sm:$0xff]
      %v278 = vld [vmem:[%s1] sm:$0x1]
      %v280 = vlaneseq
      %v281 = vshrl.u32 %v280, 7
      %v282 = vsub.s32 0, %v281
      %v283 = vrot.slane %v278, %v282
      %v285 = vmul.f32 %v270, %v283
      %v286 = vmul.f32 %v271, %v283
      %v287 = vmul.f32 %v272, %v283
      %v288 = vmul.f32 %v273, %v283
      %v289 = vmul.f32 %v274, %v283
      %v290 = vmul.f32 %v275, %v283
      %v291 = vmul.f32 %v276, %v283
      %v292 = vmul.f32 %v277, %v283
      %v293 = vld [vmem:[%s2] sm:$0x1]
      %v295 = vlaneseq
      %v296 = vshrl.u32 %v295, 7
      %v297 = vsub.s32 0, %v296
      %v298 = vrot.slane %v293, %v297
      %v300 = vadd.f32 %v285, %v298
      %v301 = vadd.f32 %v286, %v298
      %v302 = vadd.f32 %v287, %v298
      %v303 = vadd.f32 %v288, %v298
      %v304 = vadd.f32 %v289, %v298
      %v305 = vadd.f32 %v290, %v298
      %v306 = vadd.f32 %v291, %v298
      %v307 = vadd.f32 %v292, %v298
      %vm308 = vcmask 60416
      %309 = vst.msk [vmem:[#allocation2] sm:$0xf] %vm308, 0
      %vm310 = vcmask 57344
      %311 = vst.msk [vmem:[#allocation2 + $0x4] sm:$0x1] %vm310, 0
      %312 = vst.msk [vmem:[#allocation2 + $0x8] sm:$0xf] %vm308, 0
      %313 = vst.msk [vmem:[#allocation2 + $0xc] sm:$0x1] %vm310, 0
      %314 = vst.msk [vmem:[#allocation2 + $0x10] sm:$0xf] %vm308, 0
      %315 = vst.msk [vmem:[#allocation2 + $0x14] sm:$0x1] %vm310, 0
      %316 = vst.msk [vmem:[#allocation2 + $0x18] sm:$0xf] %vm308, 0
      %317 = vst.msk [vmem:[#allocation2 + $0x1c] sm:$0x1] %vm310, 0
      %318 = vst.msk [vmem:[#allocation2 + $0x20] sm:$0xf] %vm308, 0
      %319 = vst.msk [vmem:[#allocation2 + $0x24] sm:$0x1] %vm310, 0
      %320 = vst.msk [vmem:[#allocation2 + $0x28] sm:$0xf] %vm308, 0
      %321 = vst.msk [vmem:[#allocation2 + $0x2c] sm:$0x1] %vm310, 0
      %322 = vst.msk [vmem:[#allocation2 + $0x30] sm:$0xf] %vm308, 0
      %323 = vst.msk [vmem:[#allocation2 + $0x34] sm:$0x1] %vm310, 0
      %324 = vst.msk [vmem:[#allocation2 + $0x38] sm:$0xf] %vm308, 0
      %325 = vst.msk [vmem:[#allocation2 + $0x3c] sm:$0x1] %vm310, 0
      %326 = vst.msk [vmem:[#allocation2 + $0x40] sm:$0xf] %vm308, 0
      %327 = vst.msk [vmem:[#allocation2 + $0x44] sm:$0x1] %vm310, 0
      %328 = vst.msk [vmem:[#allocation2 + $0x48] sm:$0xf] %vm308, 0
      %329 = vst.msk [vmem:[#allocation2 + $0x4c] sm:$0x1] %vm310, 0
      %v330 = vpack.c.bf16 %v300, %v300
      %v331 = vpack.c.bf16 %v301, %v301
      %v332 = vpack.c.bf16 %v302, %v302
      %v333 = vpack.c.bf16 %v303, %v303
      %v334 = vpack.c.bf16 %v304, %v304
      %v335 = vpack.c.bf16 %v305, %v305
      %v336 = vpack.c.bf16 %v306, %v306
      %v337 = vpack.c.bf16 %v307, %v307
      %v346 = vunpack.c.l.b16 %v330
      %v347 = vunpack.c.l.b16 %v331
      %v348 = vunpack.c.l.b16 %v332
      %v349 = vunpack.c.l.b16 %v333
      %v350 = vunpack.c.l.b16 %v334
      %v351 = vunpack.c.l.b16 %v335
      %v352 = vunpack.c.l.b16 %v336
      %v353 = vunpack.c.l.b16 %v337
      %v354 = vpack.c.b16 %v346, %v346
      %v355 = vpack.c.b16 %v347, %v347
      %v356 = vpack.c.b16 %v348, %v348
      %v357 = vpack.c.b16 %v349, %v349
      %v358 = vpack.c.b16 %v350, %v350
      %v359 = vpack.c.b16 %v351, %v351
      %v360 = vpack.c.b16 %v352, %v352
      %v361 = vpack.c.b16 %v353, %v353
      %v363 = vshrl.u32 %v354, 16
      %v365 = vrot.slane %v363, 7
      %v366 = vshll.u32 %v354, 16
      %v368 = vor.u32 %v365, %v366
      %v369 = vrot.slane %v365, 4
      %v371 = vshrl.u32 %v355, 16
      %v373 = vrot.slane %v371, 7
      %v374 = vshll.u32 %v355, 16
      %v376 = vor.u32 %v373, %v374
      %v377 = vrot.slane %v373, 4
      %v379 = vshrl.u32 %v356, 16
      %v381 = vrot.slane %v379, 7
      %v382 = vshll.u32 %v356, 16
      %v384 = vor.u32 %v381, %v382
      %v385 = vrot.slane %v381, 4
      %v387 = vshrl.u32 %v357, 16
      %v389 = vrot.slane %v387, 7
      %v390 = vshll.u32 %v357, 16
      %v392 = vor.u32 %v389, %v390
      %v393 = vrot.slane %v389, 4
      %v395 = vshrl.u32 %v358, 16
      %v397 = vrot.slane %v395, 7
      %v398 = vshll.u32 %v358, 16
      %v400 = vor.u32 %v397, %v398
      %v401 = vrot.slane %v397, 4
      %v403 = vshrl.u32 %v359, 16
      %v405 = vrot.slane %v403, 7
      %v406 = vshll.u32 %v359, 16
      %v408 = vor.u32 %v405, %v406
      %v409 = vrot.slane %v405, 4
      %v411 = vshrl.u32 %v360, 16
      %v413 = vrot.slane %v411, 7
      %v414 = vshll.u32 %v360, 16
      %v416 = vor.u32 %v413, %v414
      %v417 = vrot.slane %v413, 4
      %v419 = vshrl.u32 %v361, 16
      %v421 = vrot.slane %v419, 7
      %v422 = vshll.u32 %v361, 16
      %v424 = vor.u32 %v421, %v422
      %v425 = vrot.slane %v421, 4
      %s442 = scalar_lea.vmem [#allocation2], 8
      %vm443 = vcmask 60416
      %vm444 = vsmask.f32 7938
      %vm445 = vmand %vm443, %vm444
      %v446 = vld [vmem:[%s442] sm:$0xf]
      %v447 = vsel %vm445, %v368, %v446
      %448 = vst [vmem:[%s442] sm:$0xf] %v447
      %vm449 = vcmask 57344
      %vm450 = vsmask.f32 256
      %vm451 = vmand %vm449, %vm450
      %v452 = vld [vmem:[%s442 + $0x4] sm:$0x1]
      %v453 = vsel %vm451, %v369, %v452
      %454 = vst [vmem:[%s442 + $0x4] sm:$0x1] %v453
      %v455 = vld [vmem:[%s442 + $0x8] sm:$0xf]
      %v456 = vsel %vm445, %v376, %v455
      %457 = vst [vmem:[%s442 + $0x8] sm:$0xf] %v456
      %v458 = vld [vmem:[%s442 + $0xc] sm:$0x1]
      %v459 = vsel %vm451, %v377, %v458
      %460 = vst [vmem:[%s442 + $0xc] sm:$0x1] %v459
      %v461 = vld [vmem:[%s442 + $0x10] sm:$0xf]
      %v462 = vsel %vm445, %v384, %v461
      %463 = vst [vmem:[%s442 + $0x10] sm:$0xf] %v462
      %v464 = vld [vmem:[%s442 + $0x14] sm:$0x1]
      %v465 = vsel %vm451, %v385, %v464
      %466 = vst [vmem:[%s442 + $0x14] sm:$0x1] %v465
      %v467 = vld [vmem:[%s442 + $0x18] sm:$0xf]
      %v468 = vsel %vm445, %v392, %v467
      %469 = vst [vmem:[%s442 + $0x18] sm:$0xf] %v468
      %v470 = vld [vmem:[%s442 + $0x1c] sm:$0x1]
      %v471 = vsel %vm451, %v393, %v470
      %472 = vst [vmem:[%s442 + $0x1c] sm:$0x1] %v471
      %v473 = vld [vmem:[%s442 + $0x20] sm:$0xf]
      %v474 = vsel %vm445, %v400, %v473
      %475 = vst [vmem:[%s442 + $0x20] sm:$0xf] %v474
      %v476 = vld [vmem:[%s442 + $0x24] sm:$0x1]
      %v477 = vsel %vm451, %v401, %v476
      %478 = vst [vmem:[%s442 + $0x24] sm:$0x1] %v477
      %v479 = vld [vmem:[%s442 + $0x28] sm:$0xf]
      %v480 = vsel %vm445, %v408, %v479
      %481 = vst [vmem:[%s442 + $0x28] sm:$0xf] %v480
      %v482 = vld [vmem:[%s442 + $0x2c] sm:$0x1]
      %v483 = vsel %vm451, %v409, %v482
      %484 = vst [vmem:[%s442 + $0x2c] sm:$0x1] %v483
      %v485 = vld [vmem:[%s442 + $0x30] sm:$0xf]
      %v486 = vsel %vm445, %v416, %v485
      %487 = vst [vmem:[%s442 + $0x30] sm:$0xf] %v486
      %v488 = vld [vmem:[%s442 + $0x34] sm:$0x1]
      %v489 = vsel %vm451, %v417, %v488
      %490 = vst [vmem:[%s442 + $0x34] sm:$0x1] %v489
      %v491 = vld [vmem:[%s442 + $0x38] sm:$0xf]
      %v492 = vsel %vm445, %v424, %v491
      %493 = vst [vmem:[%s442 + $0x38] sm:$0xf] %v492
      %v494 = vld [vmem:[%s442 + $0x3c] sm:$0x1]
      %v495 = vsel %vm451, %v425, %v494
      %496 = vst [vmem:[%s442 + $0x3c] sm:$0x1] %v495
      %v497 = vld [vmem:[#allocation2] sm:$0xf]
      %v498 = vld [vmem:[#allocation2 + $0x8] sm:$0xf]
      %v499 = vld [vmem:[#allocation2 + $0x10] sm:$0xf]
      %v500 = vld [vmem:[#allocation2 + $0x18] sm:$0xf]
      %v501 = vld [vmem:[#allocation2 + $0x20] sm:$0xf]
      %v502 = vld [vmem:[#allocation2 + $0x28] sm:$0xf]
      %v503 = vld [vmem:[#allocation2 + $0x30] sm:$0xf]
      %v504 = vld [vmem:[#allocation2 + $0x38] sm:$0xf]
      %v505 = vld [vmem:[%s3] sm:$0xf]
      %v506 = vld [vmem:[#allocation2 + $0x4] sm:$0x1]
      %v507 = vld [vmem:[#allocation2 + $0xc] sm:$0x1]
      %v508 = vld [vmem:[#allocation2 + $0x14] sm:$0x1]
      %v509 = vld [vmem:[#allocation2 + $0x1c] sm:$0x1]
      %v510 = vld [vmem:[#allocation2 + $0x24] sm:$0x1]
      %v511 = vld [vmem:[#allocation2 + $0x2c] sm:$0x1]
      %v512 = vld [vmem:[#allocation2 + $0x34] sm:$0x1]
      %v513 = vld [vmem:[#allocation2 + $0x3c] sm:$0x1]
      %vm514 = vsmask.f32 3328
      %vm515 = vsmask.f32 7440
      %vm516 = vmor %vm514, %vm515
      %v518 = vshrl.u32 %v497, 16
      %v520 = vrot.slane %v518, 4
      %v521 = vshll.u32 %v497, 16
      %v523 = vrot.slane %v521, 5
      %v524 = vor.u32 %v520, %v523
      %v525 = vrot.slane %v524, 4
      %v527 = vshll.u32 %v506, 16
      %v529 = vrot.slane %v527, 5
      %v530 = vsel %vm516, %v525, %v529
      %v532 = vshrl.u32 %v498, 16
      %v534 = vrot.slane %v532, 4
      %v535 = vshll.u32 %v498, 16
      %v537 = vrot.slane %v535, 5
      %v538 = vor.u32 %v534, %v537
      %v539 = vrot.slane %v538, 4
      %v541 = vshll.u32 %v507, 16
      %v543 = vrot.slane %v541, 5
      %v544 = vsel %vm516, %v539, %v543
      %v546 = vshrl.u32 %v499, 16
      %v548 = vrot.slane %v546, 4
      %v549 = vshll.u32 %v499, 16
      %v551 = vrot.slane %v549, 5
      %v552 = vor.u32 %v548, %v551
      %v553 = vrot.slane %v552, 4
      %v555 = vshll.u32 %v508, 16
      %v557 = vrot.slane %v555, 5
      %v558 = vsel %vm516, %v553, %v557
      %v560 = vshrl.u32 %v500, 16
      %v562 = vrot.slane %v560, 4
      %v563 = vshll.u32 %v500, 16
      %v565 = vrot.slane %v563, 5
      %v566 = vor.u32 %v562, %v565
      %v567 = vrot.slane %v566, 4
      %v569 = vshll.u32 %v509, 16
      %v571 = vrot.slane %v569, 5
      %v572 = vsel %vm516, %v567, %v571
      %v574 = vshrl.u32 %v501, 16
      %v576 = vrot.slane %v574, 4
      %v577 = vshll.u32 %v501, 16
      %v579 = vrot.slane %v577, 5
      %v580 = vor.u32 %v576, %v579
      %v581 = vrot.slane %v580, 4
      %v583 = vshll.u32 %v510, 16
      %v585 = vrot.slane %v583, 5
      %v586 = vsel %vm516, %v581, %v585
      %v588 = vshrl.u32 %v502, 16
      %v590 = vrot.slane %v588, 4
      %v591 = vshll.u32 %v502, 16
      %v593 = vrot.slane %v591, 5
      %v594 = vor.u32 %v590, %v593
      %v595 = vrot.slane %v594, 4
      %v597 = vshll.u32 %v511, 16
      %v599 = vrot.slane %v597, 5
      %v600 = vsel %vm516, %v595, %v599
      %v602 = vshrl.u32 %v503, 16
      %v604 = vrot.slane %v602, 4
      %v605 = vshll.u32 %v503, 16
      %v607 = vrot.slane %v605, 5
      %v608 = vor.u32 %v604, %v607
      %v609 = vrot.slane %v608, 4
      %v611 = vshll.u32 %v512, 16
      %v613 = vrot.slane %v611, 5
      %v614 = vsel %vm516, %v609, %v613
      %v616 = vshrl.u32 %v504, 16
      %v618 = vrot.slane %v616, 4
      %v619 = vshll.u32 %v504, 16
      %v621 = vrot.slane %v619, 5
      %v622 = vor.u32 %v618, %v621
      %v623 = vrot.slane %v622, 4
      %v625 = vshll.u32 %v513, 16
      %v627 = vrot.slane %v625, 5
      %v628 = vsel %vm516, %v623, %v627
      %s629 = scalar_lea.vmem %s3, 4
      %v630 = vld [vmem:[%s629] sm:$0xf]
      %v631 = vunpack.c.l.b16 %v530
      %v632 = vunpack.c.l.b16 %v544
      %v633 = vunpack.c.l.b16 %v558
      %v634 = vunpack.c.l.b16 %v572
      %v635 = vunpack.c.l.b16 %v586
      %v636 = vunpack.c.l.b16 %v600
      %v637 = vunpack.c.l.b16 %v614
      %v638 = vunpack.c.l.b16 %v628
      %v639 = vpack.c.b16 %v632, %v631
      %v640 = vpack.c.b16 %v634, %v633
      %v641 = vpack.c.b16 %v636, %v635
      %v642 = vpack.c.b16 %v638, %v637
      %vm643 = vcmask 64512
      %v645 = vsel %vm643, %v639, 0
      %v648 = vsel %vm643, %v640, 0
      %v651 = vsel %vm643, %v641, 0
      %v654 = vsel %vm643, %v642, 0
      %vm656 = vcmask 1043456
      %v658 = vsel %vm656, %v630, 0
      %660 = vmatprep.subr.bf16.mxu0 0
      %661 = vmatpush1.bf16.msra.mxu0 0
      %662 = vmatprep.subr.bf16.mxu0 0
      %663 = vmatpush1.bf16.msra.mxu0 0
      %664 = vmatprep.subr.bf16.mxu0 0
      %665 = vmatpush1.bf16.msra.mxu0 0
      %666 = vmatprep.subr.bf16.mxu0 0
      %667 = vmatpush1.bf16.msra.mxu0 0
      %668 = vmatprep.subr.bf16.mxu0 0
      %669 = vmatpush1.bf16.msra.mxu0 0
      %670 = vmatprep.subr.bf16.mxu0 0
      %671 = vmatpush1.bf16.msra.mxu0 0
      %672 = vmatprep.subr.bf16.mxu0 0
      %673 = vmatpush1.bf16.msra.mxu0 0
      %674 = vmatprep.subr.bf16.mxu0 0
      %675 = vmatpush1.bf16.msra.mxu0 %v658
      %676 = vmatprep.subr.bf16.mxu0 0
      %677 = vmatpush2.bf16.msra.mxu0 0
      %678 = vmatprep.subr.bf16.mxu0 0
      %679 = vmatpush2.bf16.msra.mxu0 0
      %680 = vmatprep.subr.bf16.mxu0 0
      %681 = vmatpush2.bf16.msra.mxu0 0
      %682 = vmatprep.subr.bf16.mxu0 0
      %683 = vmatpush2.bf16.msra.mxu0 0
      %684 = vmatprep.subr.bf16.mxu0 0
      %685 = vmatpush2.bf16.msra.mxu0 0
      %686 = vmatprep.subr.bf16.mxu0 0
      %687 = vmatpush2.bf16.msra.mxu0 0
      %688 = vmatprep.subr.bf16.mxu0 0
      %689 = vmatpush2.bf16.msra.mxu0 0
      %690 = vmatprep.subr.bf16.mxu0 0
      %691 = vmatpush2.bf16.msra.mxu0 0
      %692 = vmatprep.mubr.bf16.mxu0 0
      %693 = vmatmul.mubr.bf16.gmra.mxu0 %v645
      %v694 = vpop.f32.mrf.mxu0
      %v695 = vadd.f32 0.0, %v694
      %v696 = vpop.f32.mrf.mxu0
      %v697 = vpop.f32.mrf.mxu0
      %v698 = vadd.f32 0.0, %v697
      %v699 = vpop.f32.mrf.mxu0
      %700 = vmatprep.mubr.bf16.mxu0 0
      %701 = vmatmul.mubr.bf16.gmra.mxu0 %v648
      %v702 = vpop.f32.mrf.mxu0
      %v703 = vadd.f32 0.0, %v702
      %v704 = vpop.f32.mrf.mxu0
      %v705 = vpop.f32.mrf.mxu0
      %v706 = vadd.f32 0.0, %v705
      %v707 = vpop.f32.mrf.mxu0
      %708 = vmatprep.mubr.bf16.mxu0 0
      %709 = vmatmul.mubr.bf16.gmra.mxu0 %v651
      %v710 = vpop.f32.mrf.mxu0
      %v711 = vadd.f32 0.0, %v710
      %v712 = vpop.f32.mrf.mxu0
      %v713 = vpop.f32.mrf.mxu0
      %v714 = vadd.f32 0.0, %v713
      %v715 = vpop.f32.mrf.mxu0
      %716 = vmatprep.mubr.bf16.mxu0 0
      %717 = vmatmul.mubr.bf16.gmra.mxu0 %v654
      %v718 = vpop.f32.mrf.mxu0
      %v719 = vadd.f32 0.0, %v718
      %v720 = vpop.f32.mrf.mxu0
      %v721 = vpop.f32.mrf.mxu0
      %v722 = vadd.f32 0.0, %v721
      %v723 = vpop.f32.mrf.mxu0
      %724 = vdwg.mxu0
      %v733 = vunpack.c.l.b16 %v497
      %v734 = vunpack.c.l.b16 %v498
      %v735 = vunpack.c.l.b16 %v499
      %v736 = vunpack.c.l.b16 %v500
      %v737 = vunpack.c.l.b16 %v501
      %v738 = vunpack.c.l.b16 %v502
      %v739 = vunpack.c.l.b16 %v503
      %v740 = vunpack.c.l.b16 %v504
      %v741 = vpack.c.b16 %v734, %v733
      %v742 = vpack.c.b16 %v736, %v735
      %v743 = vpack.c.b16 %v738, %v737
      %v744 = vpack.c.b16 %v740, %v739
      %v746 = vsel %vm643, %v741, 0
      %v749 = vsel %vm643, %v742, 0
      %v752 = vsel %vm643, %v743, 0
      %v755 = vsel %vm643, %v744, 0
      %v758 = vsel %vm656, %v505, 0
      %760 = vmatprep.subr.bf16.mxu0 0
      %761 = vmatpush1.bf16.msra.mxu0 0
      %762 = vmatprep.subr.bf16.mxu0 0
      %763 = vmatpush1.bf16.msra.mxu0 0
      %764 = vmatprep.subr.bf16.mxu0 0
      %765 = vmatpush1.bf16.msra.mxu0 0
      %766 = vmatprep.subr.bf16.mxu0 0
      %767 = vmatpush1.bf16.msra.mxu0 0
      %768 = vmatprep.subr.bf16.mxu0 0
      %769 = vmatpush1.bf16.msra.mxu0 0
      %770 = vmatprep.subr.bf16.mxu0 0
      %771 = vmatpush1.bf16.msra.mxu0 0
      %772 = vmatprep.subr.bf16.mxu0 0
      %773 = vmatpush1.bf16.msra.mxu0 0
      %774 = vmatprep.subr.bf16.mxu0 0
      %775 = vmatpush1.bf16.msra.mxu0 %v758
      %776 = vmatprep.subr.bf16.mxu0 0
      %777 = vmatpush2.bf16.msra.mxu0 0
      %778 = vmatprep.subr.bf16.mxu0 0
      %779 = vmatpush2.bf16.msra.mxu0 0
      %780 = vmatprep.subr.bf16.mxu0 0
      %781 = vmatpush2.bf16.msra.mxu0 0
      %782 = vmatprep.subr.bf16.mxu0 0
      %783 = vmatpush2.bf16.msra.mxu0 0
      %784 = vmatprep.subr.bf16.mxu0 0
      %785 = vmatpush2.bf16.msra.mxu0 0
      %786 = vmatprep.subr.bf16.mxu0 0
      %787 = vmatpush2.bf16.msra.mxu0 0
      %788 = vmatprep.subr.bf16.mxu0 0
      %789 = vmatpush2.bf16.msra.mxu0 0
      %790 = vmatprep.subr.bf16.mxu0 0
      %791 = vmatpush2.bf16.msra.mxu0 0
      %792 = vmatprep.mubr.bf16.mxu0 0
      %793 = vmatmul.mubr.bf16.gmra.mxu0 %v746
      %v794 = vpop.f32.mrf.mxu0
      %v795 = vadd.f32 %v695, %v794
      %v796 = vpop.f32.mrf.mxu0
      %v797 = vpop.f32.mrf.mxu0
      %v798 = vadd.f32 %v698, %v797
      %v799 = vpop.f32.mrf.mxu0
      %800 = vmatprep.mubr.bf16.mxu0 0
      %801 = vmatmul.mubr.bf16.gmra.mxu0 %v749
      %v802 = vpop.f32.mrf.mxu0
      %v803 = vadd.f32 %v703, %v802
      %v804 = vpop.f32.mrf.mxu0
      %v805 = vpop.f32.mrf.mxu0
      %v806 = vadd.f32 %v706, %v805
      %v807 = vpop.f32.mrf.mxu0
      %808 = vmatprep.mubr.bf16.mxu0 0
      %809 = vmatmul.mubr.bf16.gmra.mxu0 %v752
      %v810 = vpop.f32.mrf.mxu0
      %v811 = vadd.f32 %v711, %v810
      %v812 = vpop.f32.mrf.mxu0
      %v813 = vpop.f32.mrf.mxu0
      %v814 = vadd.f32 %v714, %v813
      %v815 = vpop.f32.mrf.mxu0
      %816 = vmatprep.mubr.bf16.mxu0 0
      %817 = vmatmul.mubr.bf16.gmra.mxu0 %v755
      %v818 = vpop.f32.mrf.mxu0
      %v819 = vadd.f32 %v719, %v818
      %v820 = vpop.f32.mrf.mxu0
      %v821 = vpop.f32.mrf.mxu0
      %v822 = vadd.f32 %v722, %v821
      %v823 = vpop.f32.mrf.mxu0
      %824 = vdwg.mxu0
      %v825 = vld [vmem:[#allocation2] sm:$0xe]
      %v826 = vld [vmem:[#allocation2 + $0x8] sm:$0xe]
      %v827 = vld [vmem:[#allocation2 + $0x10] sm:$0xe]
      %v828 = vld [vmem:[#allocation2 + $0x18] sm:$0xe]
      %v829 = vld [vmem:[#allocation2 + $0x20] sm:$0xe]
      %v830 = vld [vmem:[#allocation2 + $0x28] sm:$0xe]
      %v831 = vld [vmem:[#allocation2 + $0x30] sm:$0xe]
      %v832 = vld [vmem:[#allocation2 + $0x38] sm:$0xe]
      %vm849 = vcmask 1042432
      %vm850 = vcmask 1046532
      %vm851 = vmor %vm849, %vm850
      %v852 = vrot.slane %v825, 5
      %v853 = vrot.slane %v852, 4
      %v854 = vrot.slane %v506, 5
      %v855 = vsel %vm851, %v853, %v854
      %v856 = vrot.slane %v826, 5
      %v857 = vrot.slane %v856, 4
      %v858 = vrot.slane %v507, 5
      %v859 = vsel %vm851, %v857, %v858
      %v860 = vrot.slane %v827, 5
      %v861 = vrot.slane %v860, 4
      %v862 = vrot.slane %v508, 5
      %v863 = vsel %vm851, %v861, %v862
      %v864 = vrot.slane %v828, 5
      %v865 = vrot.slane %v864, 4
      %v866 = vrot.slane %v509, 5
      %v867 = vsel %vm851, %v865, %v866
      %v868 = vrot.slane %v829, 5
      %v869 = vrot.slane %v868, 4
      %v870 = vrot.slane %v510, 5
      %v871 = vsel %vm851, %v869, %v870
      %v872 = vrot.slane %v830, 5
      %v873 = vrot.slane %v872, 4
      %v874 = vrot.slane %v511, 5
      %v875 = vsel %vm851, %v873, %v874
      %v876 = vrot.slane %v831, 5
      %v877 = vrot.slane %v876, 4
      %v878 = vrot.slane %v512, 5
      %v879 = vsel %vm851, %v877, %v878
      %v880 = vrot.slane %v832, 5
      %v881 = vrot.slane %v880, 4
      %v882 = vrot.slane %v513, 5
      %v883 = vsel %vm851, %v881, %v882
      %s884 = scalar_lea.vmem %s3, 8
      %v885 = vld [vmem:[%s884] sm:$0xf]
      %v886 = vunpack.c.l.b16 %v855
      %v887 = vunpack.c.l.b16 %v859
      %v888 = vunpack.c.l.b16 %v863
      %v889 = vunpack.c.l.b16 %v867
      %v890 = vunpack.c.l.b16 %v871
      %v891 = vunpack.c.l.b16 %v875
      %v892 = vunpack.c.l.b16 %v879
      %v893 = vunpack.c.l.b16 %v883
      %v894 = vpack.c.b16 %v887, %v886
      %v895 = vpack.c.b16 %v889, %v888
      %v896 = vpack.c.b16 %v891, %v890
      %v897 = vpack.c.b16 %v893, %v892
      %v899 = vsel %vm643, %v894, 0
      %v902 = vsel %vm643, %v895, 0
      %v905 = vsel %vm643, %v896, 0
      %v908 = vsel %vm643, %v897, 0
      %v911 = vsel %vm656, %v885, 0
      %913 = vmatprep.subr.bf16.mxu0 0
      %914 = vmatpush1.bf16.msra.mxu0 0
      %915 = vmatprep.subr.bf16.mxu0 0
      %916 = vmatpush1.bf16.msra.mxu0 0
      %917 = vmatprep.subr.bf16.mxu0 0
      %918 = vmatpush1.bf16.msra.mxu0 0
      %919 = vmatprep.subr.bf16.mxu0 0
      %920 = vmatpush1.bf16.msra.mxu0 0
      %921 = vmatprep.subr.bf16.mxu0 0
      %922 = vmatpush1.bf16.msra.mxu0 0
      %923 = vmatprep.subr.bf16.mxu0 0
      %924 = vmatpush1.bf16.msra.mxu0 0
      %925 = vmatprep.subr.bf16.mxu0 0
      %926 = vmatpush1.bf16.msra.mxu0 0
      %927 = vmatprep.subr.bf16.mxu0 0
      %928 = vmatpush1.bf16.msra.mxu0 %v911
      %929 = vmatprep.subr.bf16.mxu0 0
      %930 = vmatpush2.bf16.msra.mxu0 0
      %931 = vmatprep.subr.bf16.mxu0 0
      %932 = vmatpush2.bf16.msra.mxu0 0
      %933 = vmatprep.subr.bf16.mxu0 0
      %934 = vmatpush2.bf16.msra.mxu0 0
      %935 = vmatprep.subr.bf16.mxu0 0
      %936 = vmatpush2.bf16.msra.mxu0 0
      %937 = vmatprep.subr.bf16.mxu0 0
      %938 = vmatpush2.bf16.msra.mxu0 0
      %939 = vmatprep.subr.bf16.mxu0 0
      %940 = vmatpush2.bf16.msra.mxu0 0
      %941 = vmatprep.subr.bf16.mxu0 0
      %942 = vmatpush2.bf16.msra.mxu0 0
      %943 = vmatprep.subr.bf16.mxu0 0
      %944 = vmatpush2.bf16.msra.mxu0 0
      %945 = vmatprep.mubr.bf16.mxu0 0
      %946 = vmatmul.mubr.bf16.gmra.mxu0 %v899
      %v947 = vpop.f32.mrf.mxu0
      %v948 = vadd.f32 0.0, %v947
      %v949 = vpop.f32.mrf.mxu0
      %v950 = vpop.f32.mrf.mxu0
      %v951 = vadd.f32 0.0, %v950
      %v952 = vpop.f32.mrf.mxu0
      %953 = vmatprep.mubr.bf16.mxu0 0
      %954 = vmatmul.mubr.bf16.gmra.mxu0 %v902
      %v955 = vpop.f32.mrf.mxu0
      %v956 = vadd.f32 0.0, %v955
      %v957 = vpop.f32.mrf.mxu0
      %v958 = vpop.f32.mrf.mxu0
      %v959 = vadd.f32 0.0, %v958
      %v960 = vpop.f32.mrf.mxu0
      %961 = vmatprep.mubr.bf16.mxu0 0
      %962 = vmatmul.mubr.bf16.gmra.mxu0 %v905
      %v963 = vpop.f32.mrf.mxu0
      %v964 = vadd.f32 0.0, %v963
      %v965 = vpop.f32.mrf.mxu0
      %v966 = vpop.f32.mrf.mxu0
      %v967 = vadd.f32 0.0, %v966
      %v968 = vpop.f32.mrf.mxu0
      %969 = vmatprep.mubr.bf16.mxu0 0
      %970 = vmatmul.mubr.bf16.gmra.mxu0 %v908
      %v971 = vpop.f32.mrf.mxu0
      %v972 = vadd.f32 0.0, %v971
      %v973 = vpop.f32.mrf.mxu0
      %v974 = vpop.f32.mrf.mxu0
      %v975 = vadd.f32 0.0, %v974
      %v976 = vpop.f32.mrf.mxu0
      %977 = vdwg.mxu0
      %v978 = vadd.f32 %v795, %v948
      %v979 = vadd.f32 %v798, %v951
      %v980 = vadd.f32 %v803, %v956
      %v981 = vadd.f32 %v806, %v959
      %v982 = vadd.f32 %v811, %v964
      %v983 = vadd.f32 %v814, %v967
      %v984 = vadd.f32 %v819, %v972
      %v985 = vadd.f32 %v822, %v975
      %v986 = vld [vmem:[%s442] sm:$0xf]
      %v987 = vld [vmem:[%s442 + $0x8] sm:$0xf]
      %v988 = vld [vmem:[%s442 + $0x10] sm:$0xf]
      %v989 = vld [vmem:[%s442 + $0x18] sm:$0xf]
      %v990 = vld [vmem:[%s442 + $0x20] sm:$0xf]
      %v991 = vld [vmem:[%s442 + $0x28] sm:$0xf]
      %v992 = vld [vmem:[%s442 + $0x30] sm:$0xf]
      %v993 = vld [vmem:[%s442 + $0x38] sm:$0xf]
      %s994 = scalar_lea.vmem %s3, 12
      %v995 = vld [vmem:[%s994] sm:$0xf]
      %v1004 = vunpack.c.l.b16 %v986
      %v1005 = vunpack.c.l.b16 %v987
      %v1006 = vunpack.c.l.b16 %v988
      %v1007 = vunpack.c.l.b16 %v989
      %v1008 = vunpack.c.l.b16 %v990
      %v1009 = vunpack.c.l.b16 %v991
      %v1010 = vunpack.c.l.b16 %v992
      %v1011 = vunpack.c.l.b16 %v993
      %v1012 = vpack.c.b16 %v1005, %v1004
      %v1013 = vpack.c.b16 %v1007, %v1006
      %v1014 = vpack.c.b16 %v1009, %v1008
      %v1015 = vpack.c.b16 %v1011, %v1010
      %v1017 = vsel %vm643, %v1012, 0
      %v1020 = vsel %vm643, %v1013, 0
      %v1023 = vsel %vm643, %v1014, 0
      %v1026 = vsel %vm643, %v1015, 0
      %v1029 = vsel %vm656, %v995, 0
      %1031 = vmatprep.subr.bf16.mxu0 0
      %1032 = vmatpush1.bf16.msra.mxu0 0
      %1033 = vmatprep.subr.bf16.mxu0 0
      %1034 = vmatpush1.bf16.msra.mxu0 0
      %1035 = vmatprep.subr.bf16.mxu0 0
      %1036 = vmatpush1.bf16.msra.mxu0 0
      %1037 = vmatprep.subr.bf16.mxu0 0
      %1038 = vmatpush1.bf16.msra.mxu0 0
      %1039 = vmatprep.subr.bf16.mxu0 0
      %1040 = vmatpush1.bf16.msra.mxu0 0
      %1041 = vmatprep.subr.bf16.mxu0 0
      %1042 = vmatpush1.bf16.msra.mxu0 0
      %1043 = vmatprep.subr.bf16.mxu0 0
      %1044 = vmatpush1.bf16.msra.mxu0 0
      %1045 = vmatprep.subr.bf16.mxu0 0
      %1046 = vmatpush1.bf16.msra.mxu0 %v1029
      %1047 = vmatprep.subr.bf16.mxu0 0
      %1048 = vmatpush2.bf16.msra.mxu0 0
      %1049 = vmatprep.subr.bf16.mxu0 0
      %1050 = vmatpush2.bf16.msra.mxu0 0
      %1051 = vmatprep.subr.bf16.mxu0 0
      %1052 = vmatpush2.bf16.msra.mxu0 0
      %1053 = vmatprep.subr.bf16.mxu0 0
      %1054 = vmatpush2.bf16.msra.mxu0 0
      %1055 = vmatprep.subr.bf16.mxu0 0
      %1056 = vmatpush2.bf16.msra.mxu0 0
      %1057 = vmatprep.subr.bf16.mxu0 0
      %1058 = vmatpush2.bf16.msra.mxu0 0
      %1059 = vmatprep.subr.bf16.mxu0 0
      %1060 = vmatpush2.bf16.msra.mxu0 0
      %1061 = vmatprep.subr.bf16.mxu0 0
      %1062 = vmatpush2.bf16.msra.mxu0 0
      %1063 = vmatprep.mubr.bf16.mxu0 0
      %1064 = vmatmul.mubr.bf16.gmra.mxu0 %v1017
      %v1065 = vpop.f32.mrf.mxu0
      %v1066 = vadd.f32 0.0, %v1065
      %v1067 = vpop.f32.mrf.mxu0
      %v1068 = vpop.f32.mrf.mxu0
      %v1069 = vadd.f32 0.0, %v1068
      %v1070 = vpop.f32.mrf.mxu0
      %1071 = vmatprep.mubr.bf16.mxu0 0
      %1072 = vmatmul.mubr.bf16.gmra.mxu0 %v1020
      %v1073 = vpop.f32.mrf.mxu0
      %v1074 = vadd.f32 0.0, %v1073
      %v1075 = vpop.f32.mrf.mxu0
      %v1076 = vpop.f32.mrf.mxu0
      %v1077 = vadd.f32 0.0, %v1076
      %v1078 = vpop.f32.mrf.mxu0
      %1079 = vmatprep.mubr.bf16.mxu0 0
      %1080 = vmatmul.mubr.bf16.gmra.mxu0 %v1023
      %v1081 = vpop.f32.mrf.mxu0
      %v1082 = vadd.f32 0.0, %v1081
      %v1083 = vpop.f32.mrf.mxu0
      %v1084 = vpop.f32.mrf.mxu0
      %v1085 = vadd.f32 0.0, %v1084
      %v1086 = vpop.f32.mrf.mxu0
      %1087 = vmatprep.mubr.bf16.mxu0 0
      %1088 = vmatmul.mubr.bf16.gmra.mxu0 %v1026
      %v1089 = vpop.f32.mrf.mxu0
      %v1090 = vadd.f32 0.0, %v1089
      %v1091 = vpop.f32.mrf.mxu0
      %v1092 = vpop.f32.mrf.mxu0
      %v1093 = vadd.f32 0.0, %v1092
      %v1094 = vpop.f32.mrf.mxu0
      %1095 = vdwg.mxu0
      %v1096 = vadd.f32 %v978, %v1066
      %v1097 = vadd.f32 %v979, %v1069
      %v1098 = vadd.f32 %v980, %v1074
      %v1099 = vadd.f32 %v981, %v1077
      %v1100 = vadd.f32 %v982, %v1082
      %v1101 = vadd.f32 %v983, %v1085
      %v1102 = vadd.f32 %v984, %v1090
      %v1103 = vadd.f32 %v985, %v1093
      %v1104 = vld [vmem:[%s442] sm:$0xf]
      %v1105 = vld [vmem:[%s442 + $0x4] sm:$0x1]
      %v1106 = vld [vmem:[%s442 + $0x8] sm:$0xf]
      %v1107 = vld [vmem:[%s442 + $0xc] sm:$0x1]
      %v1108 = vld [vmem:[%s442 + $0x10] sm:$0xf]
      %v1109 = vld [vmem:[%s442 + $0x14] sm:$0x1]
      %v1110 = vld [vmem:[%s442 + $0x18] sm:$0xf]
      %v1111 = vld [vmem:[%s442 + $0x1c] sm:$0x1]
      %v1112 = vld [vmem:[%s442 + $0x20] sm:$0xf]
      %v1113 = vld [vmem:[%s442 + $0x24] sm:$0x1]
      %v1114 = vld [vmem:[%s442 + $0x28] sm:$0xf]
      %v1115 = vld [vmem:[%s442 + $0x2c] sm:$0x1]
      %v1116 = vld [vmem:[%s442 + $0x30] sm:$0xf]
      %v1117 = vld [vmem:[%s442 + $0x34] sm:$0x1]
      %v1118 = vld [vmem:[%s442 + $0x38] sm:$0xf]
      %v1119 = vld [vmem:[%s442 + $0x3c] sm:$0x1]
      %v1121 = vshrl.u32 %v1104, 16
      %v1123 = vrot.slane %v1121, 4
      %v1124 = vshll.u32 %v1104, 16
      %v1126 = vrot.slane %v1124, 5
      %v1127 = vor.u32 %v1123, %v1126
      %v1128 = vrot.slane %v1127, 4
      %v1130 = vshll.u32 %v1105, 16
      %v1132 = vrot.slane %v1130, 5
      %v1133 = vsel %vm516, %v1128, %v1132
      %v1135 = vshrl.u32 %v1106, 16
      %v1137 = vrot.slane %v1135, 4
      %v1138 = vshll.u32 %v1106, 16
      %v1140 = vrot.slane %v1138, 5
      %v1141 = vor.u32 %v1137, %v1140
      %v1142 = vrot.slane %v1141, 4
      %v1144 = vshll.u32 %v1107, 16
      %v1146 = vrot.slane %v1144, 5
      %v1147 = vsel %vm516, %v1142, %v1146
      %v1149 = vshrl.u32 %v1108, 16
      %v1151 = vrot.slane %v1149, 4
      %v1152 = vshll.u32 %v1108, 16
      %v1154 = vrot.slane %v1152, 5
      %v1155 = vor.u32 %v1151, %v1154
      %v1156 = vrot.slane %v1155, 4
      %v1158 = vshll.u32 %v1109, 16
      %v1160 = vrot.slane %v1158, 5
      %v1161 = vsel %vm516, %v1156, %v1160
      %v1163 = vshrl.u32 %v1110, 16
      %v1165 = vrot.slane %v1163, 4
      %v1166 = vshll.u32 %v1110, 16
      %v1168 = vrot.slane %v1166, 5
      %v1169 = vor.u32 %v1165, %v1168
      %v1170 = vrot.slane %v1169, 4
      %v1172 = vshll.u32 %v1111, 16
      %v1174 = vrot.slane %v1172, 5
      %v1175 = vsel %vm516, %v1170, %v1174
      %v1177 = vshrl.u32 %v1112, 16
      %v1179 = vrot.slane %v1177, 4
      %v1180 = vshll.u32 %v1112, 16
      %v1182 = vrot.slane %v1180, 5
      %v1183 = vor.u32 %v1179, %v1182
      %v1184 = vrot.slane %v1183, 4
      %v1186 = vshll.u32 %v1113, 16
      %v1188 = vrot.slane %v1186, 5
      %v1189 = vsel %vm516, %v1184, %v1188
      %v1191 = vshrl.u32 %v1114, 16
      %v1193 = vrot.slane %v1191, 4
      %v1194 = vshll.u32 %v1114, 16
      %v1196 = vrot.slane %v1194, 5
      %v1197 = vor.u32 %v1193, %v1196
      %v1198 = vrot.slane %v1197, 4
      %v1200 = vshll.u32 %v1115, 16
      %v1202 = vrot.slane %v1200, 5
      %v1203 = vsel %vm516, %v1198, %v1202
      %v1205 = vshrl.u32 %v1116, 16
      %v1207 = vrot.slane %v1205, 4
      %v1208 = vshll.u32 %v1116, 16
      %v1210 = vrot.slane %v1208, 5
      %v1211 = vor.u32 %v1207, %v1210
      %v1212 = vrot.slane %v1211, 4
      %v1214 = vshll.u32 %v1117, 16
      %v1216 = vrot.slane %v1214, 5
      %v1217 = vsel %vm516, %v1212, %v1216
      %v1219 = vshrl.u32 %v1118, 16
      %v1221 = vrot.slane %v1219, 4
      %v1222 = vshll.u32 %v1118, 16
      %v1224 = vrot.slane %v1222, 5
      %v1225 = vor.u32 %v1221, %v1224
      %v1226 = vrot.slane %v1225, 4
      %v1228 = vshll.u32 %v1119, 16
      %v1230 = vrot.slane %v1228, 5
      %v1231 = vsel %vm516, %v1226, %v1230
      %s1232 = scalar_lea.vmem %s3, 16
      %v1233 = vld [vmem:[%s1232] sm:$0xf]
      %v1234 = vunpack.c.l.b16 %v1133
      %v1235 = vunpack.c.l.b16 %v1147
      %v1236 = vunpack.c.l.b16 %v1161
      %v1237 = vunpack.c.l.b16 %v1175
      %v1238 = vunpack.c.l.b16 %v1189
      %v1239 = vunpack.c.l.b16 %v1203
      %v1240 = vunpack.c.l.b16 %v1217
      %v1241 = vunpack.c.l.b16 %v1231
      %v1242 = vpack.c.b16 %v1235, %v1234
      %v1243 = vpack.c.b16 %v1237, %v1236
      %v1244 = vpack.c.b16 %v1239, %v1238
      %v1245 = vpack.c.b16 %v1241, %v1240
      %v1247 = vsel %vm643, %v1242, 0
      %v1250 = vsel %vm643, %v1243, 0
      %v1253 = vsel %vm643, %v1244, 0
      %v1256 = vsel %vm643, %v1245, 0
      %v1259 = vsel %vm656, %v1233, 0
      %1261 = vmatprep.subr.bf16.mxu0 0
      %1262 = vmatpush1.bf16.msra.mxu0 0
      %1263 = vmatprep.subr.bf16.mxu0 0
      %1264 = vmatpush1.bf16.msra.mxu0 0
      %1265 = vmatprep.subr.bf16.mxu0 0
      %1266 = vmatpush1.bf16.msra.mxu0 0
      %1267 = vmatprep.subr.bf16.mxu0 0
      %1268 = vmatpush1.bf16.msra.mxu0 0
      %1269 = vmatprep.subr.bf16.mxu0 0
      %1270 = vmatpush1.bf16.msra.mxu0 0
      %1271 = vmatprep.subr.bf16.mxu0 0
      %1272 = vmatpush1.bf16.msra.mxu0 0
      %1273 = vmatprep.subr.bf16.mxu0 0
      %1274 = vmatpush1.bf16.msra.mxu0 0
      %1275 = vmatprep.subr.bf16.mxu0 0
      %1276 = vmatpush1.bf16.msra.mxu0 %v1259
      %1277 = vmatprep.subr.bf16.mxu0 0
      %1278 = vmatpush2.bf16.msra.mxu0 0
      %1279 = vmatprep.subr.bf16.mxu0 0
      %1280 = vmatpush2.bf16.msra.mxu0 0
      %1281 = vmatprep.subr.bf16.mxu0 0
      %1282 = vmatpush2.bf16.msra.mxu0 0
      %1283 = vmatprep.subr.bf16.mxu0 0
      %1284 = vmatpush2.bf16.msra.mxu0 0
      %1285 = vmatprep.subr.bf16.mxu0 0
      %1286 = vmatpush2.bf16.msra.mxu0 0
      %1287 = vmatprep.subr.bf16.mxu0 0
      %1288 = vmatpush2.bf16.msra.mxu0 0
      %1289 = vmatprep.subr.bf16.mxu0 0
      %1290 = vmatpush2.bf16.msra.mxu0 0
      %1291 = vmatprep.subr.bf16.mxu0 0
      %1292 = vmatpush2.bf16.msra.mxu0 0
      %1293 = vmatprep.mubr.bf16.mxu0 0
      %1294 = vmatmul.mubr.bf16.gmra.mxu0 %v1247
      %v1295 = vpop.f32.mrf.mxu0
      %v1296 = vadd.f32 0.0, %v1295
      %v1297 = vpop.f32.mrf.mxu0
      %v1298 = vpop.f32.mrf.mxu0
      %v1299 = vadd.f32 0.0, %v1298
      %v1300 = vpop.f32.mrf.mxu0
      %1301 = vmatprep.mubr.bf16.mxu0 0
      %1302 = vmatmul.mubr.bf16.gmra.mxu0 %v1250
      %v1303 = vpop.f32.mrf.mxu0
      %v1304 = vadd.f32 0.0, %v1303
      %v1305 = vpop.f32.mrf.mxu0
      %v1306 = vpop.f32.mrf.mxu0
      %v1307 = vadd.f32 0.0, %v1306
      %v1308 = vpop.f32.mrf.mxu0
      %1309 = vmatprep.mubr.bf16.mxu0 0
      %1310 = vmatmul.mubr.bf16.gmra.mxu0 %v1253
      %v1311 = vpop.f32.mrf.mxu0
      %v1312 = vadd.f32 0.0, %v1311
      %v1313 = vpop.f32.mrf.mxu0
      %v1314 = vpop.f32.mrf.mxu0
      %v1315 = vadd.f32 0.0, %v1314
      %v1316 = vpop.f32.mrf.mxu0
      %1317 = vmatprep.mubr.bf16.mxu0 0
      %1318 = vmatmul.mubr.bf16.gmra.mxu0 %v1256
      %v1319 = vpop.f32.mrf.mxu0
      %v1320 = vadd.f32 0.0, %v1319
      %v1321 = vpop.f32.mrf.mxu0
      %v1322 = vpop.f32.mrf.mxu0
      %v1323 = vadd.f32 0.0, %v1322
      %v1324 = vpop.f32.mrf.mxu0
      %1325 = vdwg.mxu0
      %v1326 = vadd.f32 %v1096, %v1296
      %v1327 = vadd.f32 %v1097, %v1299
      %v1328 = vadd.f32 %v1098, %v1304
      %v1329 = vadd.f32 %v1099, %v1307
      %v1330 = vadd.f32 %v1100, %v1312
      %v1331 = vadd.f32 %v1101, %v1315
      %v1332 = vadd.f32 %v1102, %v1320
      %v1333 = vadd.f32 %v1103, %v1323
      %v1334 = vld [vmem:[%s442] sm:$0xe]
      %v1335 = vld [vmem:[%s442 + $0x8] sm:$0xe]
      %v1336 = vld [vmem:[%s442 + $0x10] sm:$0xe]
      %v1337 = vld [vmem:[%s442 + $0x18] sm:$0xe]
      %v1338 = vld [vmem:[%s442 + $0x20] sm:$0xe]
      %v1339 = vld [vmem:[%s442 + $0x28] sm:$0xe]
      %v1340 = vld [vmem:[%s442 + $0x30] sm:$0xe]
      %v1341 = vld [vmem:[%s442 + $0x38] sm:$0xe]
      %v1358 = vrot.slane %v1334, 5
      %v1359 = vrot.slane %v1358, 4
      %v1360 = vrot.slane %v1105, 5
      %v1361 = vsel %vm851, %v1359, %v1360
      %v1362 = vrot.slane %v1335, 5
      %v1363 = vrot.slane %v1362, 4
      %v1364 = vrot.slane %v1107, 5
      %v1365 = vsel %vm851, %v1363, %v1364
      %v1366 = vrot.slane %v1336, 5
      %v1367 = vrot.slane %v1366, 4
      %v1368 = vrot.slane %v1109, 5
      %v1369 = vsel %vm851, %v1367, %v1368
      %v1370 = vrot.slane %v1337, 5
      %v1371 = vrot.slane %v1370, 4
      %v1372 = vrot.slane %v1111, 5
      %v1373 = vsel %vm851, %v1371, %v1372
      %v1374 = vrot.slane %v1338, 5
      %v1375 = vrot.slane %v1374, 4
      %v1376 = vrot.slane %v1113, 5
      %v1377 = vsel %vm851, %v1375, %v1376
      %v1378 = vrot.slane %v1339, 5
      %v1379 = vrot.slane %v1378, 4
      %v1380 = vrot.slane %v1115, 5
      %v1381 = vsel %vm851, %v1379, %v1380
      %v1382 = vrot.slane %v1340, 5
      %v1383 = vrot.slane %v1382, 4
      %v1384 = vrot.slane %v1117, 5
      %v1385 = vsel %vm851, %v1383, %v1384
      %v1386 = vrot.slane %v1341, 5
      %v1387 = vrot.slane %v1386, 4
      %v1388 = vrot.slane %v1119, 5
      %v1389 = vsel %vm851, %v1387, %v1388
      %s1390 = scalar_lea.vmem %s3, 20
      %v1391 = vld [vmem:[%s1390] sm:$0xf]
      %v1392 = vunpack.c.l.b16 %v1361
      %v1393 = vunpack.c.l.b16 %v1365
      %v1394 = vunpack.c.l.b16 %v1369
      %v1395 = vunpack.c.l.b16 %v1373
      %v1396 = vunpack.c.l.b16 %v1377
      %v1397 = vunpack.c.l.b16 %v1381
      %v1398 = vunpack.c.l.b16 %v1385
      %v1399 = vunpack.c.l.b16 %v1389
      %v1400 = vpack.c.b16 %v1393, %v1392
      %v1401 = vpack.c.b16 %v1395, %v1394
      %v1402 = vpack.c.b16 %v1397, %v1396
      %v1403 = vpack.c.b16 %v1399, %v1398
      %v1405 = vsel %vm643, %v1400, 0
      %v1408 = vsel %vm643, %v1401, 0
      %v1411 = vsel %vm643, %v1402, 0
      %v1414 = vsel %vm643, %v1403, 0
      %v1417 = vsel %vm656, %v1391, 0
      %1419 = vmatprep.subr.bf16.mxu0 0
      %1420 = vmatpush1.bf16.msra.mxu0 0
      %1421 = vmatprep.subr.bf16.mxu0 0
      %1422 = vmatpush1.bf16.msra.mxu0 0
      %1423 = vmatprep.subr.bf16.mxu0 0
      %1424 = vmatpush1.bf16.msra.mxu0 0
      %1425 = vmatprep.subr.bf16.mxu0 0
      %1426 = vmatpush1.bf16.msra.mxu0 0
      %1427 = vmatprep.subr.bf16.mxu0 0
      %1428 = vmatpush1.bf16.msra.mxu0 0
      %1429 = vmatprep.subr.bf16.mxu0 0
      %1430 = vmatpush1.bf16.msra.mxu0 0
      %1431 = vmatprep.subr.bf16.mxu0 0
      %1432 = vmatpush1.bf16.msra.mxu0 0
      %1433 = vmatprep.subr.bf16.mxu0 0
      %1434 = vmatpush1.bf16.msra.mxu0 %v1417
      %1435 = vmatprep.subr.bf16.mxu0 0
      %1436 = vmatpush2.bf16.msra.mxu0 0
      %1437 = vmatprep.subr.bf16.mxu0 0
      %1438 = vmatpush2.bf16.msra.mxu0 0
      %1439 = vmatprep.subr.bf16.mxu0 0
      %1440 = vmatpush2.bf16.msra.mxu0 0
      %1441 = vmatprep.subr.bf16.mxu0 0
      %1442 = vmatpush2.bf16.msra.mxu0 0
      %1443 = vmatprep.subr.bf16.mxu0 0
      %1444 = vmatpush2.bf16.msra.mxu0 0
      %1445 = vmatprep.subr.bf16.mxu0 0
      %1446 = vmatpush2.bf16.msra.mxu0 0
      %1447 = vmatprep.subr.bf16.mxu0 0
      %1448 = vmatpush2.bf16.msra.mxu0 0
      %1449 = vmatprep.subr.bf16.mxu0 0
      %1450 = vmatpush2.bf16.msra.mxu0 0
      %1451 = vmatprep.mubr.bf16.mxu0 0
      %1452 = vmatmul.mubr.bf16.gmra.mxu0 %v1405
      %v1453 = vpop.f32.mrf.mxu0
      %v1454 = vadd.f32 0.0, %v1453
      %v1455 = vpop.f32.mrf.mxu0
      %v1456 = vpop.f32.mrf.mxu0
      %v1457 = vadd.f32 0.0, %v1456
      %v1458 = vpop.f32.mrf.mxu0
      %1459 = vmatprep.mubr.bf16.mxu0 0
      %1460 = vmatmul.mubr.bf16.gmra.mxu0 %v1408
      %v1461 = vpop.f32.mrf.mxu0
      %v1462 = vadd.f32 0.0, %v1461
      %v1463 = vpop.f32.mrf.mxu0
      %v1464 = vpop.f32.mrf.mxu0
      %v1465 = vadd.f32 0.0, %v1464
      %v1466 = vpop.f32.mrf.mxu0
      %1467 = vmatprep.mubr.bf16.mxu0 0
      %1468 = vmatmul.mubr.bf16.gmra.mxu0 %v1411
      %v1469 = vpop.f32.mrf.mxu0
      %v1470 = vadd.f32 0.0, %v1469
      %v1471 = vpop.f32.mrf.mxu0
      %v1472 = vpop.f32.mrf.mxu0
      %v1473 = vadd.f32 0.0, %v1472
      %v1474 = vpop.f32.mrf.mxu0
      %1475 = vmatprep.mubr.bf16.mxu0 0
      %1476 = vmatmul.mubr.bf16.gmra.mxu0 %v1414
      %v1477 = vpop.f32.mrf.mxu0
      %v1478 = vadd.f32 0.0, %v1477
      %v1479 = vpop.f32.mrf.mxu0
      %v1480 = vpop.f32.mrf.mxu0
      %v1481 = vadd.f32 0.0, %v1480
      %v1482 = vpop.f32.mrf.mxu0
      %1483 = vdwg.mxu0
      %v1484 = vadd.f32 %v1326, %v1454
      %v1485 = vadd.f32 %v1327, %v1457
      %v1486 = vadd.f32 %v1328, %v1462
      %v1487 = vadd.f32 %v1329, %v1465
      %v1488 = vadd.f32 %v1330, %v1470
      %v1489 = vadd.f32 %v1331, %v1473
      %v1490 = vadd.f32 %v1332, %v1478
      %v1491 = vadd.f32 %v1333, %v1481
      %s1492 = scalar_lea.vmem [#allocation2], 16
      %v1493 = vld [vmem:[%s1492] sm:$0xf]
      %v1494 = vld [vmem:[%s1492 + $0x8] sm:$0xf]
      %v1495 = vld [vmem:[%s1492 + $0x10] sm:$0xf]
      %v1496 = vld [vmem:[%s1492 + $0x18] sm:$0xf]
      %v1497 = vld [vmem:[%s1492 + $0x20] sm:$0xf]
      %v1498 = vld [vmem:[%s1492 + $0x28] sm:$0xf]
      %v1499 = vld [vmem:[%s1492 + $0x30] sm:$0xf]
      %v1500 = vld [vmem:[%s1492 + $0x38] sm:$0xf]
      %s1501 = scalar_lea.vmem %s3, 24
      %v1502 = vld [vmem:[%s1501] sm:$0xf]
      %v1511 = vunpack.c.l.b16 %v1493
      %v1512 = vunpack.c.l.b16 %v1494
      %v1513 = vunpack.c.l.b16 %v1495
      %v1514 = vunpack.c.l.b16 %v1496
      %v1515 = vunpack.c.l.b16 %v1497
      %v1516 = vunpack.c.l.b16 %v1498
      %v1517 = vunpack.c.l.b16 %v1499
      %v1518 = vunpack.c.l.b16 %v1500
      %v1519 = vpack.c.b16 %v1512, %v1511
      %v1520 = vpack.c.b16 %v1514, %v1513
      %v1521 = vpack.c.b16 %v1516, %v1515
      %v1522 = vpack.c.b16 %v1518, %v1517
      %v1524 = vsel %vm643, %v1519, 0
      %v1527 = vsel %vm643, %v1520, 0
      %v1530 = vsel %vm643, %v1521, 0
      %v1533 = vsel %vm643, %v1522, 0
      %v1536 = vsel %vm656, %v1502, 0
      %1538 = vmatprep.subr.bf16.mxu0 0
      %1539 = vmatpush1.bf16.msra.mxu0 0
      %1540 = vmatprep.subr.bf16.mxu0 0
      %1541 = vmatpush1.bf16.msra.mxu0 0
      %1542 = vmatprep.subr.bf16.mxu0 0
      %1543 = vmatpush1.bf16.msra.mxu0 0
      %1544 = vmatprep.subr.bf16.mxu0 0
      %1545 = vmatpush1.bf16.msra.mxu0 0
      %1546 = vmatprep.subr.bf16.mxu0 0
      %1547 = vmatpush1.bf16.msra.mxu0 0
      %1548 = vmatprep.subr.bf16.mxu0 0
      %1549 = vmatpush1.bf16.msra.mxu0 0
      %1550 = vmatprep.subr.bf16.mxu0 0
      %1551 = vmatpush1.bf16.msra.mxu0 0
      %1552 = vmatprep.subr.bf16.mxu0 0
      %1553 = vmatpush1.bf16.msra.mxu0 %v1536
      %1554 = vmatprep.subr.bf16.mxu0 0
      %1555 = vmatpush2.bf16.msra.mxu0 0
      %1556 = vmatprep.subr.bf16.mxu0 0
      %1557 = vmatpush2.bf16.msra.mxu0 0
      %1558 = vmatprep.subr.bf16.mxu0 0
      %1559 = vmatpush2.bf16.msra.mxu0 0
      %1560 = vmatprep.subr.bf16.mxu0 0
      %1561 = vmatpush2.bf16.msra.mxu0 0
      %1562 = vmatprep.subr.bf16.mxu0 0
      %1563 = vmatpush2.bf16.msra.mxu0 0
      %1564 = vmatprep.subr.bf16.mxu0 0
      %1565 = vmatpush2.bf16.msra.mxu0 0
      %1566 = vmatprep.subr.bf16.mxu0 0
      %1567 = vmatpush2.bf16.msra.mxu0 0
      %1568 = vmatprep.subr.bf16.mxu0 0
      %1569 = vmatpush2.bf16.msra.mxu0 0
      %1570 = vmatprep.mubr.bf16.mxu0 0
      %1571 = vmatmul.mubr.bf16.gmra.mxu0 %v1524
      %v1572 = vpop.f32.mrf.mxu0
      %v1573 = vadd.f32 0.0, %v1572
      %v1574 = vpop.f32.mrf.mxu0
      %v1575 = vpop.f32.mrf.mxu0
      %v1576 = vadd.f32 0.0, %v1575
      %v1577 = vpop.f32.mrf.mxu0
      %1578 = vmatprep.mubr.bf16.mxu0 0
      %1579 = vmatmul.mubr.bf16.gmra.mxu0 %v1527
      %v1580 = vpop.f32.mrf.mxu0
      %v1581 = vadd.f32 0.0, %v1580
      %v1582 = vpop.f32.mrf.mxu0
      %v1583 = vpop.f32.mrf.mxu0
      %v1584 = vadd.f32 0.0, %v1583
      %v1585 = vpop.f32.mrf.mxu0
      %1586 = vmatprep.mubr.bf16.mxu0 0
      %1587 = vmatmul.mubr.bf16.gmra.mxu0 %v1530
      %v1588 = vpop.f32.mrf.mxu0
      %v1589 = vadd.f32 0.0, %v1588
      %v1590 = vpop.f32.mrf.mxu0
      %v1591 = vpop.f32.mrf.mxu0
      %v1592 = vadd.f32 0.0, %v1591
      %v1593 = vpop.f32.mrf.mxu0
      %1594 = vmatprep.mubr.bf16.mxu0 0
      %1595 = vmatmul.mubr.bf16.gmra.mxu0 %v1533
      %v1596 = vpop.f32.mrf.mxu0
      %v1597 = vadd.f32 0.0, %v1596
      %v1598 = vpop.f32.mrf.mxu0
      %v1599 = vpop.f32.mrf.mxu0
      %v1600 = vadd.f32 0.0, %v1599
      %v1601 = vpop.f32.mrf.mxu0
      %1602 = vdwg.mxu0
      %v1603 = vadd.f32 %v1484, %v1573
      %v1604 = vadd.f32 %v1485, %v1576
      %v1605 = vadd.f32 %v1486, %v1581
      %v1606 = vadd.f32 %v1487, %v1584
      %v1607 = vadd.f32 %v1488, %v1589
      %v1608 = vadd.f32 %v1489, %v1592
      %v1609 = vadd.f32 %v1490, %v1597
      %v1610 = vadd.f32 %v1491, %v1600
      %v1611 = vld [vmem:[%s1492] sm:$0xf]
      %v1612 = vld [vmem:[%s1492 + $0x4] sm:$0x1]
      %v1613 = vld [vmem:[%s1492 + $0x8] sm:$0xf]
      %v1614 = vld [vmem:[%s1492 + $0xc] sm:$0x1]
      %v1615 = vld [vmem:[%s1492 + $0x10] sm:$0xf]
      %v1616 = vld [vmem:[%s1492 + $0x14] sm:$0x1]
      %v1617 = vld [vmem:[%s1492 + $0x18] sm:$0xf]
      %v1618 = vld [vmem:[%s1492 + $0x1c] sm:$0x1]
      %v1619 = vld [vmem:[%s1492 + $0x20] sm:$0xf]
      %v1620 = vld [vmem:[%s1492 + $0x24] sm:$0x1]
      %v1621 = vld [vmem:[%s1492 + $0x28] sm:$0xf]
      %v1622 = vld [vmem:[%s1492 + $0x2c] sm:$0x1]
      %v1623 = vld [vmem:[%s1492 + $0x30] sm:$0xf]
      %v1624 = vld [vmem:[%s1492 + $0x34] sm:$0x1]
      %v1625 = vld [vmem:[%s1492 + $0x38] sm:$0xf]
      %v1626 = vld [vmem:[%s1492 + $0x3c] sm:$0x1]
      %v1628 = vshrl.u32 %v1611, 16
      %v1630 = vrot.slane %v1628, 4
      %v1631 = vshll.u32 %v1611, 16
      %v1633 = vrot.slane %v1631, 5
      %v1634 = vor.u32 %v1630, %v1633
      %v1635 = vrot.slane %v1634, 4
      %v1637 = vshll.u32 %v1612, 16
      %v1639 = vrot.slane %v1637, 5
      %v1640 = vsel %vm516, %v1635, %v1639
      %v1642 = vshrl.u32 %v1613, 16
      %v1644 = vrot.slane %v1642, 4
      %v1645 = vshll.u32 %v1613, 16
      %v1647 = vrot.slane %v1645, 5
      %v1648 = vor.u32 %v1644, %v1647
      %v1649 = vrot.slane %v1648, 4
      %v1651 = vshll.u32 %v1614, 16
      %v1653 = vrot.slane %v1651, 5
      %v1654 = vsel %vm516, %v1649, %v1653
      %v1656 = vshrl.u32 %v1615, 16
      %v1658 = vrot.slane %v1656, 4
      %v1659 = vshll.u32 %v1615, 16
      %v1661 = vrot.slane %v1659, 5
      %v1662 = vor.u32 %v1658, %v1661
      %v1663 = vrot.slane %v1662, 4
      %v1665 = vshll.u32 %v1616, 16
      %v1667 = vrot.slane %v1665, 5
      %v1668 = vsel %vm516, %v1663, %v1667
      %v1670 = vshrl.u32 %v1617, 16
      %v1672 = vrot.slane %v1670, 4
      %v1673 = vshll.u32 %v1617, 16
      %v1675 = vrot.slane %v1673, 5
      %v1676 = vor.u32 %v1672, %v1675
      %v1677 = vrot.slane %v1676, 4
      %v1679 = vshll.u32 %v1618, 16
      %v1681 = vrot.slane %v1679, 5
      %v1682 = vsel %vm516, %v1677, %v1681
      %v1684 = vshrl.u32 %v1619, 16
      %v1686 = vrot.slane %v1684, 4
      %v1687 = vshll.u32 %v1619, 16
      %v1689 = vrot.slane %v1687, 5
      %v1690 = vor.u32 %v1686, %v1689
      %v1691 = vrot.slane %v1690, 4
      %v1693 = vshll.u32 %v1620, 16
      %v1695 = vrot.slane %v1693, 5
      %v1696 = vsel %vm516, %v1691, %v1695
      %v1698 = vshrl.u32 %v1621, 16
      %v1700 = vrot.slane %v1698, 4
      %v1701 = vshll.u32 %v1621, 16
      %v1703 = vrot.slane %v1701, 5
      %v1704 = vor.u32 %v1700, %v1703
      %v1705 = vrot.slane %v1704, 4
      %v1707 = vshll.u32 %v1622, 16
      %v1709 = vrot.slane %v1707, 5
      %v1710 = vsel %vm516, %v1705, %v1709
      %v1712 = vshrl.u32 %v1623, 16
      %v1714 = vrot.slane %v1712, 4
      %v1715 = vshll.u32 %v1623, 16
      %v1717 = vrot.slane %v1715, 5
      %v1718 = vor.u32 %v1714, %v1717
      %v1719 = vrot.slane %v1718, 4
      %v1721 = vshll.u32 %v1624, 16
      %v1723 = vrot.slane %v1721, 5
      %v1724 = vsel %vm516, %v1719, %v1723
      %v1726 = vshrl.u32 %v1625, 16
      %v1728 = vrot.slane %v1726, 4
      %v1729 = vshll.u32 %v1625, 16
      %v1731 = vrot.slane %v1729, 5
      %v1732 = vor.u32 %v1728, %v1731
      %v1733 = vrot.slane %v1732, 4
      %v1735 = vshll.u32 %v1626, 16
      %v1737 = vrot.slane %v1735, 5
      %v1738 = vsel %vm516, %v1733, %v1737
      %s1739 = scalar_lea.vmem %s3, 28
      %v1740 = vld [vmem:[%s1739] sm:$0xf]
      %v1741 = vunpack.c.l.b16 %v1640
      %v1742 = vunpack.c.l.b16 %v1654
      %v1743 = vunpack.c.l.b16 %v1668
      %v1744 = vunpack.c.l.b16 %v1682
      %v1745 = vunpack.c.l.b16 %v1696
      %v1746 = vunpack.c.l.b16 %v1710
      %v1747 = vunpack.c.l.b16 %v1724
      %v1748 = vunpack.c.l.b16 %v1738
      %v1749 = vpack.c.b16 %v1742, %v1741
      %v1750 = vpack.c.b16 %v1744, %v1743
      %v1751 = vpack.c.b16 %v1746, %v1745
      %v1752 = vpack.c.b16 %v1748, %v1747
      %v1754 = vsel %vm643, %v1749, 0
      %v1757 = vsel %vm643, %v1750, 0
      %v1760 = vsel %vm643, %v1751, 0
      %v1763 = vsel %vm643, %v1752, 0
      %v1766 = vsel %vm656, %v1740, 0
      %1768 = vmatprep.subr.bf16.mxu0 0
      %1769 = vmatpush1.bf16.msra.mxu0 0
      %1770 = vmatprep.subr.bf16.mxu0 0
      %1771 = vmatpush1.bf16.msra.mxu0 0
      %1772 = vmatprep.subr.bf16.mxu0 0
      %1773 = vmatpush1.bf16.msra.mxu0 0
      %1774 = vmatprep.subr.bf16.mxu0 0
      %1775 = vmatpush1.bf16.msra.mxu0 0
      %1776 = vmatprep.subr.bf16.mxu0 0
      %1777 = vmatpush1.bf16.msra.mxu0 0
      %1778 = vmatprep.subr.bf16.mxu0 0
      %1779 = vmatpush1.bf16.msra.mxu0 0
      %1780 = vmatprep.subr.bf16.mxu0 0
      %1781 = vmatpush1.bf16.msra.mxu0 0
      %1782 = vmatprep.subr.bf16.mxu0 0
      %1783 = vmatpush1.bf16.msra.mxu0 %v1766
      %1784 = vmatprep.subr.bf16.mxu0 0
      %1785 = vmatpush2.bf16.msra.mxu0 0
      %1786 = vmatprep.subr.bf16.mxu0 0
      %1787 = vmatpush2.bf16.msra.mxu0 0
      %1788 = vmatprep.subr.bf16.mxu0 0
      %1789 = vmatpush2.bf16.msra.mxu0 0
      %1790 = vmatprep.subr.bf16.mxu0 0
      %1791 = vmatpush2.bf16.msra.mxu0 0
      %1792 = vmatprep.subr.bf16.mxu0 0
      %1793 = vmatpush2.bf16.msra.mxu0 0
      %1794 = vmatprep.subr.bf16.mxu0 0
      %1795 = vmatpush2.bf16.msra.mxu0 0
      %1796 = vmatprep.subr.bf16.mxu0 0
      %1797 = vmatpush2.bf16.msra.mxu0 0
      %1798 = vmatprep.subr.bf16.mxu0 0
      %1799 = vmatpush2.bf16.msra.mxu0 0
      %1800 = vmatprep.mubr.bf16.mxu0 0
      %1801 = vmatmul.mubr.bf16.gmra.mxu0 %v1754
      %v1802 = vpop.f32.mrf.mxu0
      %v1803 = vadd.f32 0.0, %v1802
      %v1804 = vpop.f32.mrf.mxu0
      %v1805 = vpop.f32.mrf.mxu0
      %v1806 = vadd.f32 0.0, %v1805
      %v1807 = vpop.f32.mrf.mxu0
      %1808 = vmatprep.mubr.bf16.mxu0 0
      %1809 = vmatmul.mubr.bf16.gmra.mxu0 %v1757
      %v1810 = vpop.f32.mrf.mxu0
      %v1811 = vadd.f32 0.0, %v1810
      %v1812 = vpop.f32.mrf.mxu0
      %v1813 = vpop.f32.mrf.mxu0
      %v1814 = vadd.f32 0.0, %v1813
      %v1815 = vpop.f32.mrf.mxu0
      %1816 = vmatprep.mubr.bf16.mxu0 0
      %1817 = vmatmul.mubr.bf16.gmra.mxu0 %v1760
      %v1818 = vpop.f32.mrf.mxu0
      %v1819 = vadd.f32 0.0, %v1818
      %v1820 = vpop.f32.mrf.mxu0
      %v1821 = vpop.f32.mrf.mxu0
      %v1822 = vadd.f32 0.0, %v1821
      %v1823 = vpop.f32.mrf.mxu0
      %1824 = vmatprep.mubr.bf16.mxu0 0
      %1825 = vmatmul.mubr.bf16.gmra.mxu0 %v1763
      %v1826 = vpop.f32.mrf.mxu0
      %v1827 = vadd.f32 0.0, %v1826
      %v1828 = vpop.f32.mrf.mxu0
      %v1829 = vpop.f32.mrf.mxu0
      %v1830 = vadd.f32 0.0, %v1829
      %v1831 = vpop.f32.mrf.mxu0
      %1832 = vdwg.mxu0
      %v1833 = vadd.f32 %v1603, %v1803
      %v1834 = vadd.f32 %v1604, %v1806
      %v1835 = vadd.f32 %v1605, %v1811
      %v1836 = vadd.f32 %v1606, %v1814
      %v1837 = vadd.f32 %v1607, %v1819
      %v1838 = vadd.f32 %v1608, %v1822
      %v1839 = vadd.f32 %v1609, %v1827
      %v1840 = vadd.f32 %v1610, %v1830
      %v1841 = vld [vmem:[%s1492] sm:$0xe]
      %v1842 = vld [vmem:[%s1492 + $0x8] sm:$0xe]
      %v1843 = vld [vmem:[%s1492 + $0x10] sm:$0xe]
      %v1844 = vld [vmem:[%s1492 + $0x18] sm:$0xe]
      %v1845 = vld [vmem:[%s1492 + $0x20] sm:$0xe]
      %v1846 = vld [vmem:[%s1492 + $0x28] sm:$0xe]
      %v1847 = vld [vmem:[%s1492 + $0x30] sm:$0xe]
      %v1848 = vld [vmem:[%s1492 + $0x38] sm:$0xe]
      %v1865 = vrot.slane %v1841, 5
      %v1866 = vrot.slane %v1865, 4
      %v1867 = vrot.slane %v1612, 5
      %v1868 = vsel %vm851, %v1866, %v1867
      %v1869 = vrot.slane %v1842, 5
      %v1870 = vrot.slane %v1869, 4
      %v1871 = vrot.slane %v1614, 5
      %v1872 = vsel %vm851, %v1870, %v1871
      %v1873 = vrot.slane %v1843, 5
      %v1874 = vrot.slane %v1873, 4
      %v1875 = vrot.slane %v1616, 5
      %v1876 = vsel %vm851, %v1874, %v1875
      %v1877 = vrot.slane %v1844, 5
      %v1878 = vrot.slane %v1877, 4
      %v1879 = vrot.slane %v1618, 5
      %v1880 = vsel %vm851, %v1878, %v1879
      %v1881 = vrot.slane %v1845, 5
      %v1882 = vrot.slane %v1881, 4
      %v1883 = vrot.slane %v1620, 5
      %v1884 = vsel %vm851, %v1882, %v1883
      %v1885 = vrot.slane %v1846, 5
      %v1886 = vrot.slane %v1885, 4
      %v1887 = vrot.slane %v1622, 5
      %v1888 = vsel %vm851, %v1886, %v1887
      %v1889 = vrot.slane %v1847, 5
      %v1890 = vrot.slane %v1889, 4
      %v1891 = vrot.slane %v1624, 5
      %v1892 = vsel %vm851, %v1890, %v1891
      %v1893 = vrot.slane %v1848, 5
      %v1894 = vrot.slane %v1893, 4
      %v1895 = vrot.slane %v1626, 5
      %v1896 = vsel %vm851, %v1894, %v1895
      %s1897 = scalar_lea.vmem %s3, 32
      %v1898 = vld [vmem:[%s1897] sm:$0xf]
      %v1899 = vunpack.c.l.b16 %v1868
      %v1900 = vunpack.c.l.b16 %v1872
      %v1901 = vunpack.c.l.b16 %v1876
      %v1902 = vunpack.c.l.b16 %v1880
      %v1903 = vunpack.c.l.b16 %v1884
      %v1904 = vunpack.c.l.b16 %v1888
      %v1905 = vunpack.c.l.b16 %v1892
      %v1906 = vunpack.c.l.b16 %v1896
      %v1907 = vpack.c.b16 %v1900, %v1899
      %v1908 = vpack.c.b16 %v1902, %v1901
      %v1909 = vpack.c.b16 %v1904, %v1903
      %v1910 = vpack.c.b16 %v1906, %v1905
      %v1912 = vsel %vm643, %v1907, 0
      %v1915 = vsel %vm643, %v1908, 0
      %v1918 = vsel %vm643, %v1909, 0
      %v1921 = vsel %vm643, %v1910, 0
      %v1924 = vsel %vm656, %v1898, 0
      %1926 = vmatprep.subr.bf16.mxu0 0
      %1927 = vmatpush1.bf16.msra.mxu0 0
      %1928 = vmatprep.subr.bf16.mxu0 0
      %1929 = vmatpush1.bf16.msra.mxu0 0
      %1930 = vmatprep.subr.bf16.mxu0 0
      %1931 = vmatpush1.bf16.msra.mxu0 0
      %1932 = vmatprep.subr.bf16.mxu0 0
      %1933 = vmatpush1.bf16.msra.mxu0 0
      %1934 = vmatprep.subr.bf16.mxu0 0
      %1935 = vmatpush1.bf16.msra.mxu0 0
      %1936 = vmatprep.subr.bf16.mxu0 0
      %1937 = vmatpush1.bf16.msra.mxu0 0
      %1938 = vmatprep.subr.bf16.mxu0 0
      %1939 = vmatpush1.bf16.msra.mxu0 0
      %1940 = vmatprep.subr.bf16.mxu0 0
      %1941 = vmatpush1.bf16.msra.mxu0 %v1924
      %1942 = vmatprep.subr.bf16.mxu0 0
      %1943 = vmatpush2.bf16.msra.mxu0 0
      %1944 = vmatprep.subr.bf16.mxu0 0
      %1945 = vmatpush2.bf16.msra.mxu0 0
      %1946 = vmatprep.subr.bf16.mxu0 0
      %1947 = vmatpush2.bf16.msra.mxu0 0
      %1948 = vmatprep.subr.bf16.mxu0 0
      %1949 = vmatpush2.bf16.msra.mxu0 0
      %1950 = vmatprep.subr.bf16.mxu0 0
      %1951 = vmatpush2.bf16.msra.mxu0 0
      %1952 = vmatprep.subr.bf16.mxu0 0
      %1953 = vmatpush2.bf16.msra.mxu0 0
      %1954 = vmatprep.subr.bf16.mxu0 0
      %1955 = vmatpush2.bf16.msra.mxu0 0
      %1956 = vmatprep.subr.bf16.mxu0 0
      %1957 = vmatpush2.bf16.msra.mxu0 0
      %1958 = vmatprep.mubr.bf16.mxu0 0
      %1959 = vmatmul.mubr.bf16.gmra.mxu0 %v1912
      %v1960 = vpop.f32.mrf.mxu0
      %v1961 = vadd.f32 0.0, %v1960
      %v1962 = vpop.f32.mrf.mxu0
      %v1963 = vpop.f32.mrf.mxu0
      %v1964 = vadd.f32 0.0, %v1963
      %v1965 = vpop.f32.mrf.mxu0
      %1966 = vmatprep.mubr.bf16.mxu0 0
      %1967 = vmatmul.mubr.bf16.gmra.mxu0 %v1915
      %v1968 = vpop.f32.mrf.mxu0
      %v1969 = vadd.f32 0.0, %v1968
      %v1970 = vpop.f32.mrf.mxu0
      %v1971 = vpop.f32.mrf.mxu0
      %v1972 = vadd.f32 0.0, %v1971
      %v1973 = vpop.f32.mrf.mxu0
      %1974 = vmatprep.mubr.bf16.mxu0 0
      %1975 = vmatmul.mubr.bf16.gmra.mxu0 %v1918
      %v1976 = vpop.f32.mrf.mxu0
      %v1977 = vadd.f32 0.0, %v1976
      %v1978 = vpop.f32.mrf.mxu0
      %v1979 = vpop.f32.mrf.mxu0
      %v1980 = vadd.f32 0.0, %v1979
      %v1981 = vpop.f32.mrf.mxu0
      %1982 = vmatprep.mubr.bf16.mxu0 0
      %1983 = vmatmul.mubr.bf16.gmra.mxu0 %v1921
      %v1984 = vpop.f32.mrf.mxu0
      %v1985 = vadd.f32 0.0, %v1984
      %v1986 = vpop.f32.mrf.mxu0
      %v1987 = vpop.f32.mrf.mxu0
      %v1988 = vadd.f32 0.0, %v1987
      %v1989 = vpop.f32.mrf.mxu0
      %1990 = vdwg.mxu0
      %v1991 = vadd.f32 %v1833, %v1961
      %v1992 = vadd.f32 %v1834, %v1964
      %v1993 = vadd.f32 %v1835, %v1969
      %v1994 = vadd.f32 %v1836, %v1972
      %v1995 = vadd.f32 %v1837, %v1977
      %v1996 = vadd.f32 %v1838, %v1980
      %v1997 = vadd.f32 %v1839, %v1985
      %v1998 = vadd.f32 %v1840, %v1988
      %1999 = vst.msk [vmem:[%s262] sm:$0xff] %vm643, %v1991
      %2000 = vst.msk [vmem:[%s262 + $0x8] sm:$0xff] %vm643, %v1992
      %2001 = vst.msk [vmem:[%s262 + $0x10] sm:$0xff] %vm643, %v1993
      %2002 = vst.msk [vmem:[%s262 + $0x18] sm:$0xff] %vm643, %v1994
      %2003 = vst.msk [vmem:[%s262 + $0x20] sm:$0xff] %vm643, %v1995
      %2004 = vst.msk [vmem:[%s262 + $0x28] sm:$0xff] %vm643, %v1996
      %2005 = vst.msk [vmem:[%s262 + $0x30] sm:$0xff] %vm643, %v1997
      %2006 = vst.msk [vmem:[%s262 + $0x38] sm:$0xff] %vm643, %v1998
      %v2007 = vsel %vm643, %v1991, 0.0
      %v2008 = vsel %vm643, %v1992, 0.0
      %v2009 = vadd.f32 %v2007, %v2008
      %v2010 = vsel %vm643, %v1993, 0.0
      %v2011 = vadd.f32 %v2009, %v2010
      %v2012 = vsel %vm643, %v1994, 0.0
      %v2013 = vadd.f32 %v2011, %v2012
      %v2014 = vsel %vm643, %v1995, 0.0
      %v2015 = vadd.f32 %v2013, %v2014
      %v2016 = vsel %vm643, %v1996, 0.0
      %v2017 = vadd.f32 %v2015, %v2016
      %v2018 = vsel %vm643, %v1997, 0.0
      %v2019 = vadd.f32 %v2017, %v2018
      %v2020 = vsel %vm643, %v1998, 0.0
      %v2021 = vadd.f32 %v2019, %v2020
      %v2022 = vrot.slane %v2021, 4
      %v2023 = vadd.f32 %v2021, %v2022
      %v2024 = vrot.slane %v2023, 2
      %v2025 = vadd.f32 %v2023, %v2024
      %v2026 = vrot.slane %v2025, 1
      %v2027 = vadd.f32 %v2025, %v2026
      %2028 = vst.msk [vmem:[%s265] sm:$0x1] %vm310, %v2027
      %v2029 = vmul.f32 %v1991, %v1991
      %v2030 = vmul.f32 %v1992, %v1992
      %v2031 = vmul.f32 %v1993, %v1993
      %v2032 = vmul.f32 %v1994, %v1994
      %v2033 = vmul.f32 %v1995, %v1995
      %v2034 = vmul.f32 %v1996, %v1996
      %v2035 = vmul.f32 %v1997, %v1997
      %v2036 = vmul.f32 %v1998, %v1998
      %v2037 = vsel %vm643, %v2029, 0.0
      %v2038 = vsel %vm643, %v2030, 0.0
      %v2039 = vadd.f32 %v2037, %v2038
      %v2040 = vsel %vm643, %v2031, 0.0
      %v2041 = vadd.f32 %v2039, %v2040
      %v2042 = vsel %vm643, %v2032, 0.0
      %v2043 = vadd.f32 %v2041, %v2042
      %v2044 = vsel %vm643, %v2033, 0.0
      %v2045 = vadd.f32 %v2043, %v2044
      %v2046 = vsel %vm643, %v2034, 0.0
      %v2047 = vadd.f32 %v2045, %v2046
      %v2048 = vsel %vm643, %v2035, 0.0
      %v2049 = vadd.f32 %v2047, %v2048
      %v2050 = vsel %vm643, %v2036, 0.0
      %v2051 = vadd.f32 %v2049, %v2050
      %v2052 = vrot.slane %v2051, 4
      %v2053 = vadd.f32 %v2051, %v2052
      %v2054 = vrot.slane %v2053, 2
      %v2055 = vadd.f32 %v2053, %v2054
      %v2056 = vrot.slane %v2055, 1
      %v2057 = vadd.f32 %v2055, %v2056
      %2058 = vst.msk [vmem:[%s268] sm:$0x1] %vm310, %v2057
      %p2059 = scmp.lt.s32.totalorder %s18, 1
      %s2060 = scalar_select %p2059, %s18, 1
      %s2061 = smul.addr %s2060, 8
      %s2062 = smul.addr %s2061, 8
      %s2063 = scalar_lea.vmem %s4, %s2062
      %p2064 = scmp.lt.s32.totalorder %s18, 1
      %s2065 = scalar_select %p2064, %s18, 1
      %s2066 = scalar_lea.vmem %s5, %s2065
      %p2067 = scmp.lt.s32.totalorder %s18, 1
      %s2068 = scalar_select %p2067, %s18, 1
      %s2069 = scalar_lea.vmem %s6, %s2068
      // Predicated region
      $region37: #{block_forward.4} parent=35 // pred_check
        %p2070 = pneg %p125
      $region38: #{block_forward.4} parent=35 // pred_check_branch
        %2072 = sbr.rel (%p2070) target = $region40
      $region39: #{block_forward.4} parent=35 // pred_region
        _
      $region40: #{block_forward.4} parent=35 // pred_fallthru
        _
      // Predicated region
      $region41: #{block_forward.4} parent=35 // pred_check
        %p2073 = pneg %p151
      $region42: #{block_forward.4} parent=35 // pred_check_branch
        %2075 = sbr.rel (%p2073) target = $region44
      $region43: #{block_forward.4} parent=35 // pred_region
        _
      $region44: #{block_forward.4} parent=35 // pred_fallthru
        _
      // Predicated region
      $region45: #{block_forward.4} parent=35 // pred_check
        %p2076 = pneg %p177
      $region46: #{block_forward.4} parent=35 // pred_check_branch
        %2078 = sbr.rel (%p2076) target = $region48
      $region47: #{block_forward.4} parent=35 // pred_region
        _
      $region48: #{block_forward.4} parent=35 // pred_fallthru
        _
    $region36: #{block_forward.4} parent=5 // pred_fallthru
      _
    %p2079 = scmp.le.s32.totalorder 2, %s13
    // Predicated region
    $region49: #{block_forward.4} parent=5 // pred_check
      %p2080 = pneg %p2079
    $region50: #{block_forward.4} parent=5 // pred_check_branch
      %2082 = sbr.rel (%p2080) target = $region52
    $region51: #{block_forward.4} parent=5 // pred_region
      %s2083 = ssub.s32 %s13, 2
      // Predicated region
      $region53: #{block_forward.4} parent=51 // pred_check
        %p2084 = pneg %p131
      $region54: #{block_forward.4} parent=51 // pred_check_branch
        %2086 = sbr.rel (%p2084) target = $region56
      $region55: #{block_forward.4} parent=51 // pred_region
        %p2087 = scmp.lt.s32.totalorder %s19, 1
        %s2088 = scalar_select %p2087, %s19, 1
        %s2089 = smul.addr %s2088, 8
        %s2090 = smul.addr %s2089, 8
        %s2091 = scalar_lea.vmem %s4, %s2090
      $region56: #{block_forward.4} parent=51 // pred_fallthru
        _
      // Predicated region
      $region57: #{block_forward.4} parent=51 // pred_check
        %p2092 = pneg %p157
      $region58: #{block_forward.4} parent=51 // pred_check_branch
        %2094 = sbr.rel (%p2092) target = $region60
      $region59: #{block_forward.4} parent=51 // pred_region
        %p2095 = scmp.lt.s32.totalorder %s19, 1
        %s2096 = scalar_select %p2095, %s19, 1
        %s2097 = scalar_lea.vmem %s5, %s2096
      $region60: #{block_forward.4} parent=51 // pred_fallthru
        _
      // Predicated region
      $region61: #{block_forward.4} parent=51 // pred_check
        %p2098 = pneg %p183
      $region62: #{block_forward.4} parent=51 // pred_check_branch
        %2100 = sbr.rel (%p2098) target = $region64
      $region63: #{block_forward.4} parent=51 // pred_region
        %p2101 = scmp.lt.s32.totalorder %s19, 1
        %s2102 = scalar_select %p2101, %s19, 1
        %s2103 = scalar_lea.vmem %s6, %s2102
      $region64: #{block_forward.4} parent=51 // pred_fallthru
        _
    $region52: #{block_forward.4} parent=5 // pred_fallthru
      _
  $region6: #{block_forward.4} parent=0 // loop_footer
    %s17 = sadd.s32 1, %s13
  $region7: #{block_forward.4} parent=0 // loop_footer_branch
    %12 = sbr.rel target = $region3
  $region8: #{block_forward.4} parent=0 // loop_exit
    _

</llo_original>
